<compile_context>
chip_gen: v5e
topology: v5e:2x2
jax: 0.10.0
libtpu: 0.0.40
codegen_flags: <defaults>
</compile_context>

<pallas_src>
import math
import functools

import jax
import jax.numpy as jnp
from jax.experimental import pallas as pl
from jax.experimental.pallas import tpu as pltpu

LN_EPS = 1e-5
CHEBY_ORDER = 4          # -> 5 Chebyshev terms
NUM_T = CHEBY_ORDER + 1


# ----------------------------------------------------------------------------
# Hardware / planning helpers.
# ----------------------------------------------------------------------------
def _vmem_capacity_bytes():
    try:
        info = pltpu.get_tpu_info()
        cap = getattr(info, "vmem_capacity_bytes", None)
        if cap:
            return int(cap)
    except Exception:
        pass
    return 64 * 2 ** 20          # conservative fallback (v7x per-TC VMEM)


def _has_bf16_eup():
    """bf16 transcendental path only on v6e/v7x-class chips."""
    try:
        kind = jax.devices()[0].device_kind.lower()
    except Exception:
        return False
    return not any(tag in kind for tag in ("v2", "v3", "v4", "v5"))


def _pick_tm(M, B, cap=1024):
    """Largest multiple of 8 dividing M (<= cap); keep >=2 parallel tiles at B==1."""
    if M % 8 != 0:
        return M                 # full-extent block is always legal
    tm, d = 8, 8
    while d <= min(M, cap):
        if M % d == 0:
            tm = d
        d += 8
    if B == 1 and tm == M and M % 16 == 0:
        tm = M // 2              # leave work for the 2nd TensorCore (v7x)
    return tm


def _plan(B, D, H, n_layer, tm):
    """Explicit VMEM budget -> (resident_weights, vmem_limit_bytes)."""
    f32, bf16 = 4, 2
    act = 2 * 2 * tm * D * f32                                  # x + out tiles, 2 bufs each
    small = 2 * (n_layer * B * 2 * D + n_layer * 8 * D) * f32   # ss + vecs (2 bufs)
    small += 2 * n_layer * H * f32                              # b1
    t_slab = tm * NUM_T * D * bf16                              # Chebyshev scratch
    work = tm * H * f32 + 8 * tm * D * f32                      # FFN hidden + temporaries
    per_layer_w = (NUM_T * D * D + 2 * D * H) * bf16            # cheby + w1 + w2
    base = act + small + t_slab + work
    est_resident = int(1.25 * (base + 2 * n_layer * per_layer_w))
    est_streamed = int(1.25 * (base + 2 * per_layer_w))

    cap = int(0.75 * _vmem_capacity_bytes())                    # leave compiler headroom
    resident = est_resident <= cap
    est = est_resident if resident else est_streamed
    vmem_limit = int(min(cap, max(est, 32 * 2 ** 20)))
    return resident, vmem_limit


# ----------------------------------------------------------------------------
# Fused Pallas kernel: all decoder blocks, one (tm, D) row-tile per (b, i).
# Grid = (B, M//tm, n_layer); output VMEM buffer is the resident activation.
# ----------------------------------------------------------------------------
def _make_decoder_kernel(B, D, H, resident, bf16_eup):
    cdt = jnp.bfloat16 if bf16_eup else jnp.float32

    def kernel(x_ref, ss_ref, vec_ref, b1_ref, cheby_ref, w1_ref, w2_ref,
               o_ref, t_scr):
        b = pl.program_id(0)
        layer = pl.program_id(2)

        # Layer 0: load the input tile into the resident output buffer.
        @pl.when(layer == 0)
        def _():
            o_ref[...] = x_ref[...]

        x = o_ref[...]                          # (tm, D) f32, resident across layers

        def ln(v):                              # single-pass LayerNorm
            mu = jnp.mean(v, axis=-1, keepdims=True)
            var = jnp.mean(v * v, axis=-1, keepdims=True) - mu * mu
            return (v - mu) * jax.lax.rsqrt(var + LN_EPS)

        ss = ss_ref[layer * B + b]              # (2, D)  per (layer, batch)
        vec = vec_ref[layer]                    # (8, D)  packed per-layer vectors
        b1 = b1_ref[layer]                      # (1, H)  linear1 bias

        scale = ss[0:1, :]
        shift = ss[1:2, :]
        b2    = vec[0:1, :]
        g_blk = vec[1:2, :]
        b_blk = vec[2:3, :]
        g_out = vec[3:4, :]
        b_out = vec[4:5, :]

        if resident:                            # weight stack fully resident in VMEM
            cheby_w = cheby_ref[layer]          # (5D, D) bf16
            w1 = w1_ref[layer]                  # (D, H)  bf16
            w2 = w2_ref[layer]                  # (H, D)  bf16
        else:                                   # streamed one layer per grid step
            cheby_w = cheby_ref[...]
            w1 = w1_ref[...]
            w2 = w2_ref[...]

        # --- AdaLayerNorm (elementwise_affine=False) + time conditioning ---
        xn = ln(x) * (1.0 + scale) + shift
        res1 = xn

        # --- ChebyKANLayer(order=4): tanh -> T0..T4 -> ONE fused K=5D MXU dot ---
        t = jnp.tanh(xn.astype(cdt))
        one = jnp.ones_like(t)
        two_t = t + t
        T2 = two_t * t - one
        T3 = two_t * T2 - t
        T4 = two_t * T3 - T2
        t_scr[:, 0 * D:1 * D] = one.astype(jnp.bfloat16)
        t_scr[:, 1 * D:2 * D] = t.astype(jnp.bfloat16)
        t_scr[:, 2 * D:3 * D] = T2.astype(jnp.bfloat16)
        t_scr[:, 3 * D:4 * D] = T3.astype(jnp.bfloat16)
        t_scr[:, 4 * D:5 * D] = T4.astype(jnp.bfloat16)
        y = jnp.dot(t_scr[...], cheby_w, preferred_element_type=jnp.float32)
        res2 = y + res1

        # --- feed-forward: SiLU(linear1) -> linear2 (dropout = identity) ---
        h = jnp.dot(res2.astype(jnp.bfloat16), w1,
                    preferred_element_type=jnp.float32) + b1
        ha = h.astype(cdt)
        ha = ha * jax.nn.sigmoid(ha)            # SiLU
        ff = jnp.dot(ha.astype(jnp.bfloat16), w2,
                     preferred_element_type=jnp.float32) + b2
        xo = ff + res2

        # --- block-internal LayerNorm (affine) ---
        xo = ln(xo) * g_blk + b_blk
        # --- outer LayerNorm from Decoder.blocks[i][1] (affine) ---
        xo = ln(xo) * g_out + b_out

        # Keep the result resident; HBM writeback happens when (b, i) advances.
        o_ref[...] = xo

    return kernel


# ----------------------------------------------------------------------------
# Parameter init (deterministic, mimics torch module shapes; stacked by layer).
# ----------------------------------------------------------------------------
def init_decoder_params(key, emb_dim, n_layer):
    D, H = emb_dim, 4 * emb_dim
    k = jax.random.split(key, 6)
    cheby = (jax.random.normal(k[0], (n_layer, NUM_T, D, D), jnp.float32)
             * (1.0 / (D * NUM_T)))
    b2 = jax.random.normal(k[4], (n_layer, D), jnp.float32) * 0.02

    # Pack the five per-layer (D,) vectors into one (8, D) slab:
    #   row 0: linear2 bias, 1: block-LN gamma, 2: block-LN beta,
    #   row 3: outer-LN gamma, 4: outer-LN beta, rows 5..7: padding.
    vecs = jnp.zeros((n_layer, 8, D), jnp.float32)
    vecs = vecs.at[:, 0, :].set(b2)
    vecs = vecs.at[:, 1, :].set(1.0)
    vecs = vecs.at[:, 3, :].set(1.0)

    return dict(
        ada_w=jax.random.normal(k[1], (n_layer, 2 * D, D), jnp.float32) * 0.02,
        ada_b=jnp.zeros((n_layer, 2 * D), jnp.float32),
        # Fused Chebyshev weight: rows [t*D:(t+1)*D] hold coefficient block T_t.
        cheby=cheby.reshape(n_layer, NUM_T * D, D).astype(jnp.bfloat16),
        w1=(jax.random.normal(k[2], (n_layer, D, H), jnp.float32) * 0.02
            ).astype(jnp.bfloat16),
        b1=jax.random.normal(k[5], (n_layer, 1, H), jnp.float32) * 0.02,
        w2=(jax.random.normal(k[3], (n_layer, H, D), jnp.float32) * 0.02
            ).astype(jnp.bfloat16),
        vecs=vecs,
    )


# ----------------------------------------------------------------------------
# Decoder forward.
# ----------------------------------------------------------------------------
@functools.partial(jax.jit, static_argnames=("tm",))
def decoder_forward(x, t, params, *, tm=None):
    """x: [B, L, N, D] (channels-last, D = emb_dim), t: [B] timesteps."""
    B, L, N, D = x.shape
    M = L * N
    n_layer, _, H = params["w1"].shape
    if tm is None:
        tm = _pick_tm(M, B)

    # --- AdaLayerNorm conditioning (per layer / per batch) in plain JAX ---
    half = D // 2
    freq = jnp.exp(jnp.arange(half, dtype=jnp.float32)
                   * (-math.log(10000.0) / (half - 1)))
    emb = t.astype(jnp.float32)[:, None] * freq[None, :]
    emb = jnp.concatenate([jnp.sin(emb), jnp.cos(emb)], axis=-1)       # [B, D]
    emb = emb * jax.nn.sigmoid(emb)                                    # SiLU
    emb2 = (jnp.einsum("bd,lkd->lbk", emb, params["ada_w"])
            + params["ada_b"][:, None, :])                             # [L, B, 2D]
    ss = emb2.reshape(n_layer * B, 2, D)    # row l*B+b: [0]=scale, [1]=shift

    x_flat = x.reshape(B, M, D).astype(jnp.float32)
    grid = (B, M // tm, n_layer)

    resident, vmem_limit = _plan(B, D, H, n_layer, tm)
    bf16_eup = _has_bf16_eup()
    kernel = _make_decoder_kernel(B, D, H, resident, bf16_eup)

    if resident:
        # Whole layer-stacked weights DMA'd once and kept resident in VMEM
        # (constant block index => Pallas never re-fetches them).
        w_specs = [
            pl.BlockSpec((n_layer, NUM_T * D, D), lambda b, i, l: (0, 0, 0)),
            pl.BlockSpec((n_layer, D, H), lambda b, i, l: (0, 0, 0)),
            pl.BlockSpec((n_layer, H, D), lambda b, i, l: (0, 0, 0)),
        ]
    else:
        # Fallback: stream one layer's weights per grid step (double-buffered).
        w_specs = [
            pl.BlockSpec((None, NUM_T * D, D), lambda b, i, l: (l, 0, 0)),
            pl.BlockSpec((None, D, H), lambda b, i, l: (l, 0, 0)),
            pl.BlockSpec((None, H, D), lambda b, i, l: (l, 0, 0)),
        ]

    out = pl.pallas_call(
        kernel,
        out_shape=jax.ShapeDtypeStruct((B, M, D), jnp.float32),
        grid_spec=pltpu.PrefetchScalarGridSpec(
            num_scalar_prefetch=0,
            grid=grid,
            in_specs=[
                # x tile: block index constant across the layer axis -> DMA'd once.
                pl.BlockSpec((None, tm, D), lambda b, i, l: (b, i, 0)),
                # scale/shift (n_layer*B, 2, D): resident, sliced by layer*B+b.
                pl.BlockSpec((n_layer * B, 2, D), lambda b, i, l: (0, 0, 0)),
                # packed per-layer vectors (n_layer, 8, D): resident.
                pl.BlockSpec((n_layer, 8, D), lambda b, i, l: (0, 0, 0)),
                # linear1 bias (n_layer, 1, H): resident.
                pl.BlockSpec((n_layer, 1, H), lambda b, i, l: (0, 0, 0)),
            ] + w_specs,
            # Same block index across the layer axis => activation tile stays
            # resident in VMEM for all layers; HBM writeback once per (b, i).
            out_specs=pl.BlockSpec((None, tm, D), lambda b, i, l: (b, i, 0)),
            scratch_shapes=[pltpu.VMEM((tm, NUM_T * D), jnp.bfloat16)],
        ),
        compiler_params=pltpu.CompilerParams(
            dimension_semantics=("parallel", "parallel", "arbitrary"),
            vmem_limit_bytes=vmem_limit,
        ),
    )(x_flat, ss, params["vecs"], params["b1"], params["cheby"],
      params["w1"], params["w2"])

    return out.reshape(B, L, N, D)


if __name__ == "__main__":
    # Small but lane-dense shapes: D (emb_dim) = 128 keeps stores unmasked.
    B, L, N, D = 2, 8, 16, 128   # batch, time steps, nodes, emb_dim
    n_layer = 2

    key = jax.random.PRNGKey(0)
    kx, kt, kp = jax.random.split(key, 3)
    x = jax.random.normal(kx, (B, L, N, D), jnp.float32)
    t = jax.random.randint(kt, (B,), 0, 100).astype(jnp.float32)
    params = init_decoder_params(kp, D, n_layer)

    out = decoder_forward(x, t, params)
    out = jax.block_until_ready(out)
    assert out.shape == (B, L, N, D) and bool(jnp.all(jnp.isfinite(out)))
    print("KERNEL_OK")
</pallas_src>

<mosaic_0001>
module attributes {stable_mosaic.version = 11 : i64} {
  func.func @kernel(%arg0: i32, %arg1: i32, %arg2: i32, %arg3: memref<1x128x128xf32, #tpu.memory_space<vmem>>, %arg4: memref<4x2x128xf32, #tpu.memory_space<vmem>>, %arg5: memref<2x8x128xf32, #tpu.memory_space<vmem>>, %arg6: memref<2x1x512xf32, #tpu.memory_space<vmem>>, %arg7: memref<2x640x128xbf16, #tpu.memory_space<vmem>>, %arg8: memref<2x128x512xbf16, #tpu.memory_space<vmem>>, %arg9: memref<2x512x128xbf16, #tpu.memory_space<vmem>>, %arg10: memref<1x128x128xf32, #tpu.memory_space<vmem>>, %arg11: memref<128x640xbf16, #tpu.memory_space<vmem>>) attributes {dimension_semantics = [#tpu.dimension_semantics<parallel>, #tpu.dimension_semantics<parallel>, #tpu.dimension_semantics<arbitrary>], iteration_bounds = array<i64: 2, 1, 2>, scalar_prefetch = 0 : i64, scratch_operands = 1 : i64, tpu.core_type = #tpu.core_type<tc>, window_params = [{transform_indices = @transform_0, window_bounds = array<i64: 1, 128, 128>}, {pipeline_mode = #tpu.pipeline_mode<synchronous>, transform_indices = @transform_1, window_bounds = array<i64: 4, 2, 128>}, {pipeline_mode = #tpu.pipeline_mode<synchronous>, transform_indices = @transform_2, window_bounds = array<i64: 2, 8, 128>}, {pipeline_mode = #tpu.pipeline_mode<synchronous>, transform_indices = @transform_3, window_bounds = array<i64: 2, 1, 512>}, {pipeline_mode = #tpu.pipeline_mode<synchronous>, transform_indices = @transform_4, window_bounds = array<i64: 2, 640, 128>}, {pipeline_mode = #tpu.pipeline_mode<synchronous>, transform_indices = @transform_5, window_bounds = array<i64: 2, 128, 512>}, {pipeline_mode = #tpu.pipeline_mode<synchronous>, transform_indices = @transform_6, window_bounds = array<i64: 2, 512, 128>}, {transform_indices = @transform_7, window_bounds = array<i64: 1, 128, 128>}]} {
    %c0_i32 = arith.constant 0 : i32
    %0 = arith.cmpi eq, %arg2, %c0_i32 : i32
    %1 = arith.extui %0 : i1 to i32
    %c0_i32_0 = arith.constant 0 : i32
    %2 = arith.cmpi ne, %1, %c0_i32_0 : i32
    scf.if %2 {
      %c0_46 = arith.constant 0 : index
      %c0_47 = arith.constant 0 : index
      %c0_48 = arith.constant 0 : index
      %136 = vector.load %arg3[%c0_46, %c0_47, %c0_48] : memref<1x128x128xf32, #tpu.memory_space<vmem>>, vector<1x128x128xf32>
      %137 = vector.shape_cast %136 : vector<1x128x128xf32> to vector<128x128xf32>
      %c0_49 = arith.constant 0 : index
      %c0_50 = arith.constant 0 : index
      %c0_51 = arith.constant 0 : index
      %138 = vector.load %arg10[%c0_49, %c0_50, %c0_51] : memref<1x128x128xf32, #tpu.memory_space<vmem>>, vector<1x128x128xf32>
      %139 = vector.shape_cast %138 : vector<1x128x128xf32> to vector<128x128xf32>
      %140 = vector.shape_cast %137 : vector<128x128xf32> to vector<1x128x128xf32>
      tpu.vector_store %arg10[%c0_49, %c0_50, %c0_51], %140 {strides = array<i32>} : memref<1x128x128xf32, #tpu.memory_space<vmem>>, vector<1x128x128xf32>,
    } else {
    }
    %c0 = arith.constant 0 : index
    %c0_1 = arith.constant 0 : index
    %c0_2 = arith.constant 0 : index
    %3 = vector.load %arg10[%c0, %c0_1, %c0_2] : memref<1x128x128xf32, #tpu.memory_space<vmem>>, vector<1x128x128xf32>
    %4 = vector.shape_cast %3 : vector<1x128x128xf32> to vector<128x128xf32>
    %c2_i32 = arith.constant 2 : i32
    %5 = arith.muli %arg2, %c2_i32 : i32
    %6 = arith.addi %5, %arg0 : i32
    %7 = arith.index_cast %6 : i32 to index
    %c0_3 = arith.constant 0 : index
    %c0_4 = arith.constant 0 : index
    %8 = vector.load %arg4[%7, %c0_3, %c0_4] : memref<4x2x128xf32, #tpu.memory_space<vmem>>, vector<1x2x128xf32>
    %9 = vector.shape_cast %8 : vector<1x2x128xf32> to vector<2x128xf32>
    %10 = arith.index_cast %arg2 : i32 to index
    %c0_5 = arith.constant 0 : index
    %c0_6 = arith.constant 0 : index
    %11 = vector.load %arg5[%10, %c0_5, %c0_6] : memref<2x8x128xf32, #tpu.memory_space<vmem>>, vector<1x8x128xf32>
    %12 = vector.shape_cast %11 : vector<1x8x128xf32> to vector<8x128xf32>
    %13 = arith.index_cast %arg2 : i32 to index
    %c0_7 = arith.constant 0 : index
    %c0_8 = arith.constant 0 : index
    %14 = vector.load %arg6[%13, %c0_7, %c0_8] : memref<2x1x512xf32, #tpu.memory_space<vmem>>, vector<1x1x512xf32>
    %15 = vector.shape_cast %14 : vector<1x1x512xf32> to vector<1x512xf32>
    %16 = vector.extract_strided_slice %9 {offsets = [0, 0], sizes = [1, 128], strides = [1, 1]} : vector<2x128xf32> to vector<1x128xf32>
    %17 = vector.extract_strided_slice %9 {offsets = [1, 0], sizes = [1, 128], strides = [1, 1]} : vector<2x128xf32> to vector<1x128xf32>
    %18 = vector.extract_strided_slice %12 {offsets = [0, 0], sizes = [1, 128], strides = [1, 1]} : vector<8x128xf32> to vector<1x128xf32>
    %19 = vector.extract_strided_slice %12 {offsets = [1, 0], sizes = [1, 128], strides = [1, 1]} : vector<8x128xf32> to vector<1x128xf32>
    %20 = vector.extract_strided_slice %12 {offsets = [2, 0], sizes = [1, 128], strides = [1, 1]} : vector<8x128xf32> to vector<1x128xf32>
    %21 = vector.extract_strided_slice %12 {offsets = [3, 0], sizes = [1, 128], strides = [1, 1]} : vector<8x128xf32> to vector<1x128xf32>
    %22 = vector.extract_strided_slice %12 {offsets = [4, 0], sizes = [1, 128], strides = [1, 1]} : vector<8x128xf32> to vector<1x128xf32>
    %23 = arith.index_cast %arg2 : i32 to index
    %c0_9 = arith.constant 0 : index
    %c0_10 = arith.constant 0 : index
    %24 = vector.load %arg7[%23, %c0_9, %c0_10] : memref<2x640x128xbf16, #tpu.memory_space<vmem>>, vector<1x640x128xbf16>
    %25 = vector.shape_cast %24 : vector<1x640x128xbf16> to vector<640x128xbf16>
    %26 = arith.index_cast %arg2 : i32 to index
    %c0_11 = arith.constant 0 : index
    %c0_12 = arith.constant 0 : index
    %27 = vector.load %arg8[%26, %c0_11, %c0_12] : memref<2x128x512xbf16, #tpu.memory_space<vmem>>, vector<1x128x512xbf16>
    %28 = vector.shape_cast %27 : vector<1x128x512xbf16> to vector<128x512xbf16>
    %29 = arith.index_cast %arg2 : i32 to index
    %c0_13 = arith.constant 0 : index
    %c0_14 = arith.constant 0 : index
    %30 = vector.load %arg9[%29, %c0_13, %c0_14] : memref<2x512x128xbf16, #tpu.memory_space<vmem>>, vector<1x512x128xbf16>
    %31 = vector.shape_cast %30 : vector<1x512x128xbf16> to vector<512x128xbf16>
    %cst = arith.constant dense<0.000000e+00> : vector<128xf32>
    %32 = vector.multi_reduction <add>, %4, %cst [1] : vector<128x128xf32> to vector<128xf32>
    %33 = vector.shape_cast %32 : vector<128xf32> to vector<128x1xf32>
    %cst_15 = arith.constant 1.280000e+02 : f32
    %34 = vector.broadcast %cst_15 : f32 to vector<128x1xf32>
    %35 = arith.divf %33, %34 : vector<128x1xf32>
    %36 = arith.mulf %4, %4 : vector<128x128xf32>
    %cst_16 = arith.constant dense<0.000000e+00> : vector<128xf32>
    %37 = vector.multi_reduction <add>, %36, %cst_16 [1] : vector<128x128xf32> to vector<128xf32>
    %38 = vector.shape_cast %37 : vector<128xf32> to vector<128x1xf32>
    %cst_17 = arith.constant 1.280000e+02 : f32
    %39 = vector.broadcast %cst_17 : f32 to vector<128x1xf32>
    %40 = arith.divf %38, %39 : vector<128x1xf32>
    %41 = arith.mulf %35, %35 : vector<128x1xf32>
    %42 = arith.subf %40, %41 : vector<128x1xf32>
    %43 = vector.broadcast %35 : vector<128x1xf32> to vector<128x128xf32>
    %44 = arith.subf %4, %43 : vector<128x128xf32>
    %cst_18 = arith.constant 9.99999974E-6 : f32
    %45 = vector.broadcast %cst_18 : f32 to vector<128x1xf32>
    %46 = arith.addf %42, %45 : vector<128x1xf32>
    %47 = math.rsqrt %46 : vector<128x1xf32>
    %48 = vector.broadcast %47 : vector<128x1xf32> to vector<128x128xf32>
    %49 = arith.mulf %44, %48 : vector<128x128xf32>
    %cst_19 = arith.constant 1.000000e+00 : f32
    %50 = vector.broadcast %cst_19 : f32 to vector<1x128xf32>
    %51 = arith.addf %50, %16 : vector<1x128xf32>
    %52 = vector.broadcast %51 : vector<1x128xf32> to vector<128x128xf32>
    %53 = arith.mulf %49, %52 : vector<128x128xf32>
    %54 = vector.broadcast %17 : vector<1x128xf32> to vector<128x128xf32>
    %55 = arith.addf %53, %54 : vector<128x128xf32>
    %56 = arith.truncf %55 : vector<128x128xf32> to vector<128x128xbf16>
    %57 = math.tanh %56 : vector<128x128xbf16>
    %cst_20 = arith.constant 1.000000e+00 : bf16
    %58 = vector.broadcast %cst_20 : bf16 to vector<128x128xbf16>
    %59 = arith.addf %57, %57 : vector<128x128xbf16>
    %60 = arith.mulf %59, %57 : vector<128x128xbf16>
    %61 = arith.subf %60, %58 : vector<128x128xbf16>
    %62 = arith.mulf %59, %61 : vector<128x128xbf16>
    %63 = arith.subf %62, %57 : vector<128x128xbf16>
    %64 = arith.mulf %59, %63 : vector<128x128xbf16>
    %65 = arith.subf %64, %61 : vector<128x128xbf16>
    %c0_21 = arith.constant 0 : index
    %c0_22 = arith.constant 0 : index
    %66 = vector.load %arg11[%c0_21, %c0_22] : memref<128x640xbf16, #tpu.memory_space<vmem>>, vector<128x128xbf16>
    tpu.vector_store %arg11[%c0_21, %c0_22], %58 {strides = array<i32>} : memref<128x640xbf16, #tpu.memory_space<vmem>>, vector<128x128xbf16>,
    %c0_23 = arith.constant 0 : index
    %c128 = arith.constant 128 : index
    %67 = vector.load %arg11[%c0_23, %c128] : memref<128x640xbf16, #tpu.memory_space<vmem>>, vector<128x128xbf16>
    tpu.vector_store %arg11[%c0_23, %c128], %57 {strides = array<i32>} : memref<128x640xbf16, #tpu.memory_space<vmem>>, vector<128x128xbf16>,
    %c0_24 = arith.constant 0 : index
    %c256 = arith.constant 256 : index
    %68 = vector.load %arg11[%c0_24, %c256] : memref<128x640xbf16, #tpu.memory_space<vmem>>, vector<128x128xbf16>
    tpu.vector_store %arg11[%c0_24, %c256], %61 {strides = array<i32>} : memref<128x640xbf16, #tpu.memory_space<vmem>>, vector<128x128xbf16>,
    %c0_25 = arith.constant 0 : index
    %c384 = arith.constant 384 : index
    %69 = vector.load %arg11[%c0_25, %c384] : memref<128x640xbf16, #tpu.memory_space<vmem>>, vector<128x128xbf16>
    tpu.vector_store %arg11[%c0_25, %c384], %63 {strides = array<i32>} : memref<128x640xbf16, #tpu.memory_space<vmem>>, vector<128x128xbf16>,
    %c0_26 = arith.constant 0 : index
    %c512 = arith.constant 512 : index
    %70 = vector.load %arg11[%c0_26, %c512] : memref<128x640xbf16, #tpu.memory_space<vmem>>, vector<128x128xbf16>
    tpu.vector_store %arg11[%c0_26, %c512], %65 {strides = array<i32>} : memref<128x640xbf16, #tpu.memory_space<vmem>>, vector<128x128xbf16>,
    %c0_27 = arith.constant 0 : index
    %c0_28 = arith.constant 0 : index
    %71 = vector.load %arg11[%c0_27, %c0_28] : memref<128x640xbf16, #tpu.memory_space<vmem>>, vector<128x640xbf16>
    %cst_29 = arith.constant dense<0.000000e+00> : vector<128x128xf32>
    %72 = tpu.matmul %71, %25, %cst_29 {dimension_numbers = #tpu.dot_dimension_numbers<[1], [0], [0], [1], [0, 0, 1, 1], [], []>} : vector<128x640xbf16>, vector<640x128xbf16>, vector<128x128xf32> -> vector<128x128xf32>
    %73 = arith.addf %72, %55 : vector<128x128xf32>
    %74 = arith.truncf %73 : vector<128x128xf32> to vector<128x128xbf16>
    %cst_30 = arith.constant dense<0.000000e+00> : vector<128x512xf32>
    %75 = tpu.matmul %74, %28, %cst_30 {dimension_numbers = #tpu.dot_dimension_numbers<[1], [0], [0], [1], [0, 0, 1, 1], [], []>} : vector<128x128xbf16>, vector<128x512xbf16>, vector<128x512xf32> -> vector<128x512xf32>
    %76 = vector.broadcast %15 : vector<1x512xf32> to vector<128x512xf32>
    %77 = arith.addf %75, %76 : vector<128x512xf32>
    %78 = arith.truncf %77 : vector<128x512xf32> to vector<128x512xbf16>
    %79 = arith.negf %78 : vector<128x512xbf16>
    %80 = math.exp %79 : vector<128x512xbf16>
    %cst_31 = arith.constant 1.000000e+00 : bf16
    %81 = vector.broadcast %cst_31 : bf16 to vector<128x512xbf16>
    %82 = arith.addf %81, %80 : vector<128x512xbf16>
    %83 = arith.divf %81, %82 : vector<128x512xbf16>
    %84 = arith.mulf %78, %83 : vector<128x512xbf16>
    %cst_32 = arith.constant dense<0.000000e+00> : vector<128x128xf32>
    %85 = tpu.matmul %84, %31, %cst_32 {dimension_numbers = #tpu.dot_dimension_numbers<[1], [0], [0], [1], [0, 0, 1, 1], [], []>} : vector<128x512xbf16>, vector<512x128xbf16>, vector<128x128xf32> -> vector<128x128xf32>
    %86 = vector.broadcast %18 : vector<1x128xf32> to vector<128x128xf32>
    %87 = arith.addf %85, %86 : vector<128x128xf32>
    %88 = arith.addf %87, %73 : vector<128x128xf32>
    %cst_33 = arith.constant dense<0.000000e+00> : vector<128xf32>
    %89 = vector.multi_reduction <add>, %88, %cst_33 [1] : vector<128x128xf32> to vector<128xf32>
    %90 = vector.shape_cast %89 : vector<128xf32> to vector<128x1xf32>
    %cst_34 = arith.constant 1.280000e+02 : f32
    %91 = vector.broadcast %cst_34 : f32 to vector<128x1xf32>
    %92 = arith.divf %90, %91 : vector<128x1xf32>
    %93 = arith.mulf %88, %88 : vector<128x128xf32>
    %cst_35 = arith.constant dense<0.000000e+00> : vector<128xf32>
    %94 = vector.multi_reduction <add>, %93, %cst_35 [1] : vector<128x128xf32> to vector<128xf32>
    %95 = vector.shape_cast %94 : vector<128xf32> to vector<128x1xf32>
    %cst_36 = arith.constant 1.280000e+02 : f32
    %96 = vector.broadcast %cst_36 : f32 to vector<128x1xf32>
    %97 = arith.divf %95, %96 : vector<128x1xf32>
    %98 = arith.mulf %92, %92 : vector<128x1xf32>
    %99 = arith.subf %97, %98 : vector<128x1xf32>
    %100 = vector.broadcast %92 : vector<128x1xf32> to vector<128x128xf32>
    %101 = arith.subf %88, %100 : vector<128x128xf32>
    %cst_37 = arith.constant 9.99999974E-6 : f32
    %102 = vector.broadcast %cst_37 : f32 to vector<128x1xf32>
    %103 = arith.addf %99, %102 : vector<128x1xf32>
    %104 = math.rsqrt %103 : vector<128x1xf32>
    %105 = vector.broadcast %104 : vector<128x1xf32> to vector<128x128xf32>
    %106 = arith.mulf %101, %105 : vector<128x128xf32>
    %107 = vector.broadcast %19 : vector<1x128xf32> to vector<128x128xf32>
    %108 = arith.mulf %106, %107 : vector<128x128xf32>
    %109 = vector.broadcast %20 : vector<1x128xf32> to vector<128x128xf32>
    %110 = arith.addf %108, %109 : vector<128x128xf32>
    %cst_38 = arith.constant dense<0.000000e+00> : vector<128xf32>
    %111 = vector.multi_reduction <add>, %110, %cst_38 [1] : vector<128x128xf32> to vector<128xf32>
    %112 = vector.shape_cast %111 : vector<128xf32> to vector<128x1xf32>
    %cst_39 = arith.constant 1.280000e+02 : f32
    %113 = vector.broadcast %cst_39 : f32 to vector<128x1xf32>
    %114 = arith.divf %112, %113 : vector<128x1xf32>
    %115 = arith.mulf %110, %110 : vector<128x128xf32>
    %cst_40 = arith.constant dense<0.000000e+00> : vector<128xf32>
    %116 = vector.multi_reduction <add>, %115, %cst_40 [1] : vector<128x128xf32> to vector<128xf32>
    %117 = vector.shape_cast %116 : vector<128xf32> to vector<128x1xf32>
    %cst_41 = arith.constant 1.280000e+02 : f32
    %118 = vector.broadcast %cst_41 : f32 to vector<128x1xf32>
    %119 = arith.divf %117, %118 : vector<128x1xf32>
    %120 = arith.mulf %114, %114 : vector<128x1xf32>
    %121 = arith.subf %119, %120 : vector<128x1xf32>
    %122 = vector.broadcast %114 : vector<128x1xf32> to vector<128x128xf32>
    %123 = arith.subf %110, %122 : vector<128x128xf32>
    %cst_42 = arith.constant 9.99999974E-6 : f32
    %124 = vector.broadcast %cst_42 : f32 to vector<128x1xf32>
    %125 = arith.addf %121, %124 : vector<128x1xf32>
    %126 = math.rsqrt %125 : vector<128x1xf32>
    %127 = vector.broadcast %126 : vector<128x1xf32> to vector<128x128xf32>
    %128 = arith.mulf %123, %127 : vector<128x128xf32>
    %129 = vector.broadcast %21 : vector<1x128xf32> to vector<128x128xf32>
    %130 = arith.mulf %128, %129 : vector<128x128xf32>
    %131 = vector.broadcast %22 : vector<1x128xf32> to vector<128x128xf32>
    %132 = arith.addf %130, %131 : vector<128x128xf32>
    %c0_43 = arith.constant 0 : index
    %c0_44 = arith.constant 0 : index
    %c0_45 = arith.constant 0 : index
    %133 = vector.load %arg10[%c0_43, %c0_44, %c0_45] : memref<1x128x128xf32, #tpu.memory_space<vmem>>, vector<1x128x128xf32>
    %134 = vector.shape_cast %133 : vector<1x128x128xf32> to vector<128x128xf32>
    %135 = vector.shape_cast %132 : vector<128x128xf32> to vector<1x128x128xf32>
    tpu.vector_store %arg10[%c0_43, %c0_44, %c0_45], %135 {strides = array<i32>} : memref<1x128x128xf32, #tpu.memory_space<vmem>>, vector<1x128x128xf32>,
    return
  }
  func.func @transform_0(%arg0: i32, %arg1: i32, %arg2: i32) -> (i32, i32, i32) {
    %c0_i32 = arith.constant 0 : i32
    %c0_i32_0 = arith.constant 0 : i32
    return %arg0, %arg1, %c0_i32 : i32, i32, i32
  }
  func.func @transform_1(%arg0: i32, %arg1: i32, %arg2: i32) -> (i32, i32, i32) {
    %c0_i32 = arith.constant 0 : i32
    %c0_i32_0 = arith.constant 0 : i32
    %c0_i32_1 = arith.constant 0 : i32
    %c0_i32_2 = arith.constant 0 : i32
    return %c0_i32, %c0_i32_0, %c0_i32_1 : i32, i32, i32
  }
  func.func @transform_2(%arg0: i32, %arg1: i32, %arg2: i32) -> (i32, i32, i32) {
    %c0_i32 = arith.constant 0 : i32
    %c0_i32_0 = arith.constant 0 : i32
    %c0_i32_1 = arith.constant 0 : i32
    %c0_i32_2 = arith.constant 0 : i32
    return %c0_i32, %c0_i32_0, %c0_i32_1 : i32, i32, i32
  }
  func.func @transform_3(%arg0: i32, %arg1: i32, %arg2: i32) -> (i32, i32, i32) {
    %c0_i32 = arith.constant 0 : i32
    %c0_i32_0 = arith.constant 0 : i32
    %c0_i32_1 = arith.constant 0 : i32
    %c0_i32_2 = arith.constant 0 : i32
    return %c0_i32, %c0_i32_0, %c0_i32_1 : i32, i32, i32
  }
  func.func @transform_4(%arg0: i32, %arg1: i32, %arg2: i32) -> (i32, i32, i32) {
    %c0_i32 = arith.constant 0 : i32
    %c0_i32_0 = arith.constant 0 : i32
    %c0_i32_1 = arith.constant 0 : i32
    %c0_i32_2 = arith.constant 0 : i32
    return %c0_i32, %c0_i32_0, %c0_i32_1 : i32, i32, i32
  }
  func.func @transform_5(%arg0: i32, %arg1: i32, %arg2: i32) -> (i32, i32, i32) {
    %c0_i32 = arith.constant 0 : i32
    %c0_i32_0 = arith.constant 0 : i32
    %c0_i32_1 = arith.constant 0 : i32
    %c0_i32_2 = arith.constant 0 : i32
    return %c0_i32, %c0_i32_0, %c0_i32_1 : i32, i32, i32
  }
  func.func @transform_6(%arg0: i32, %arg1: i32, %arg2: i32) -> (i32, i32, i32) {
    %c0_i32 = arith.constant 0 : i32
    %c0_i32_0 = arith.constant 0 : i32
    %c0_i32_1 = arith.constant 0 : i32
    %c0_i32_2 = arith.constant 0 : i32
    return %c0_i32, %c0_i32_0, %c0_i32_1 : i32, i32, i32
  }
  func.func @transform_7(%arg0: i32, %arg1: i32, %arg2: i32) -> (i32, i32, i32) {
    %c0_i32 = arith.constant 0 : i32
    %c0_i32_0 = arith.constant 0 : i32
    return %arg0, %arg1, %c0_i32 : i32, i32, i32
  }
}

</mosaic_0001>

<llo_original>
// kernel: decoder_forward.1
$region0: #{decoder_forward.1}
  #allocation0 [shape = 'u32[]', space=smem, size = 0x4, offset = 0x4, fixed_abs, tag = 'smem constant byte address 0x4 - core index']
  #allocation1 [shape = 'u32[72,128]{1,0:T(1,128)}', space=vmem, size = 0x9000, scoped, tag = 'internal scratch']
  #allocation2 [shape = 'bf16[128,640]{1,0:T(8,128)(2,1)}', space=vmem, size = 0x28000, scoped, tag = 'scratch operand']
  %s0 = inlined_call_operand.hbm [shape: f32[2,128,128], index: 0, kind: input, shape index: {}]
  %s1 = inlined_call_operand.vmem [shape: f32[4,2,128], index: 1, kind: input, shape index: {}]
  %s2 = inlined_call_operand.vmem [shape: f32[2,8,128], index: 2, kind: input, shape index: {}]
  %s3 = inlined_call_operand.vmem [shape: f32[2,1,512], index: 3, kind: input, shape index: {}]
  %s4 = inlined_call_operand.hbm [shape: bf16[2,640,128], index: 4, kind: input, shape index: {}]
  %s5 = inlined_call_operand.vmem [shape: bf16[2,128,512], index: 5, kind: input, shape index: {}]
  %s6 = inlined_call_operand.hbm [shape: bf16[2,512,128], index: 6, kind: input, shape index: {}]
  %s7 = inlined_call_operand.hbm [shape: f32[2,128,128], index: 7, kind: output, shape index: {}]
  %s8 = sld [smem:[#allocation0]]
  $region77: #{decoder_forward.1} parent=0
    _
  %s10 = ssub.s32 1, %s8
  %s11 = scalar_select 0, %s10, %s8
  $region1: #{decoder_forward.1} parent=0
    #allocation3 [shape = 'u8[131072]{0}', space=vmem, size = 0x20000, scoped, tag = 'input window, operand 0']
    #allocation4 [shape = 's32[2]{0}', space=sflag, size = 0x8, scoped, tag = 'scoped memory for decoder_forward.1']
    #allocation5 [shape = 's32[2]{0}', space=sflag, size = 0x8, scoped, tag = 'scoped memory for decoder_forward.1']
    #allocation6 [shape = 'u8[327680]{0}', space=vmem, size = 0x50000, scoped, tag = 'input window, operand 4, single buffered']
    #allocation7 [shape = 's32[1]{0}', space=sflag, size = 0x4, scoped, tag = 'scoped memory for decoder_forward.1']
    #allocation8 [shape = 'u8[262144]{0}', space=vmem, size = 0x40000, scoped, tag = 'input window, operand 6, single buffered']
    #allocation9 [shape = 'u8[131072]{0}', space=vmem, size = 0x20000, scoped, tag = 'output window, operand 0']
    %12 = vsyncpa [#allocation4], 0
    %s13 = scalar_lea.sflag [#allocation4], 1
    %14 = vsyncpa %s13, 0
    %15 = vsyncpa [#allocation7], 0
    %16 = vsyncpa [#allocation5], 0
    %s17 = scalar_lea.sflag [#allocation5], 1
    %18 = vsyncpa %s17, 0
    loop: start=0, step=1, limit=6
    $region2: #{decoder_forward.1} parent=1 // loop_pre_header
      _
    $region3: #{decoder_forward.1} parent=1 // loop_header
      %s20 = sphi 0, %s24
      %p21 = scmp.ge.s32.totalorder %s20, 6
      %s27 = sphi 0, %s46
      %s28 = sphi 0, %s42
      %s29 = sphi 0, %s38
      %s30 = sphi 0, %s27
      %s31 = sphi 0, %s28
      %s32 = sphi 0, %s29
      %s33 = sphi 0, %s30
      %s34 = sphi 0, %s31
      %s35 = sphi 0, %s32
      %s51 = sphi 0, %s53
      %s54 = sphi 0, %s51
      %s55 = sphi 0, %s54
      %s71 = sphi 0, %s55
      %s75 = sphi 0, %s75
      %s77 = sphi 0, %s75
      %s78 = sphi 0, %s77
      %s92 = sphi 0, %s78
      %s96 = sphi 0, %s96
      %s98 = sphi 0, %s96
      %s99 = sphi 0, %s98
      %s113 = sphi 0, %s99
      %s117 = sphi 0, %s117
      %s119 = sphi 0, %s117
      %s120 = sphi 0, %s119
      %s134 = sphi 0, %s120
      %s138 = sphi 0, %s138
      %s140 = sphi 0, %s138
      %s141 = sphi 0, %s140
      %s155 = sphi 0, %s141
      %s159 = sphi 0, %s159
      %s161 = sphi 0, %s159
      %s162 = sphi 0, %s161
      %s176 = sphi 0, %s162
      %s180 = sphi 0, %s180
      %s182 = sphi 0, %s180
      %s183 = sphi 0, %s182
      %s197 = sphi 0, %s183
      %s205 = sphi 0, %s207
      %s208 = sphi 0, %s205
      %s209 = sphi 0, %s208
      %s225 = sphi 0, %s209
    $region4: #{decoder_forward.1} parent=1 // loop_header_branch
      %23 = sbr.rel (%p21) target = $region8
    $region5: #{decoder_forward.1} parent=1 // loop_body
      %s25 = ssub.s32 %s20, 1
      %s26 = ssub.s32 %s20, 2
      %s36 = sadd.s32 1, %s29
      %p37 = scmp.ge.s32.totalorder %s36, 2
      %s38 = scalar_select %p37, 0, %s36
      %s39 = sadd.s32 1, %s28
      %s40 = scalar_select %p37, %s39, %s28
      %p41 = scmp.ge.s32.totalorder %s40, 1
      %s42 = scalar_select %p41, 0, %s40
      %s43 = sadd.s32 1, %s27
      %s44 = scalar_select %p41, %s43, %s27
      %p45 = scmp.ge.s32.totalorder %s44, 2
      %s46 = scalar_select %p45, 0, %s44
      %s47 = ssub.s32 %s27, %s46
      %s48 = ssub.s32 %s28, %s42
      %s49 = sor.u32 %s47, %s48
      %p50 = scmp.eq.s32.totalorder %s49, 0
      %s52 = sadd.s32 %s51, 1
      %s53 = scalar_select %p50, %s51, %s52
      %p56 = pneg %p50
      %p57 = scmp.eq.s32.totalorder %s20, 3
      %p58 = por %p56, %p57
      %p59 = scmp.ne.s32.totalorder %s51, %s54
      %p60 = scmp.eq.s32.totalorder %s20, 0
      %p61 = por %p59, %p60
      %p62 = scmp.ne.s32.totalorder %s51, %s54
      %p63 = scmp.eq.s32.totalorder %s25, 3
      %p64 = por %p62, %p63
      %p65 = scmp.ne.s32.totalorder %s54, %s55
      %p66 = scmp.eq.s32.totalorder %s25, 0
      %p67 = por %p65, %p66
      %p68 = scmp.ne.s32.totalorder %s54, %s55
      %p69 = scmp.eq.s32.totalorder %s26, 3
      %p70 = por %p68, %p69
      %p72 = scmp.ne.s32.totalorder %s55, %s71
      %p73 = scmp.eq.s32.totalorder %s26, 0
      %p74 = por %p72, %p73
      %s76 = sadd.s32 %s75, 1
      %p79 = scmp.eq.s32.totalorder %s20, 3
      %p80 = scmp.ne.s32.totalorder %s75, %s77
      %p81 = scmp.eq.s32.totalorder %s20, 0
      %p82 = por %p80, %p81
      %p83 = scmp.ne.s32.totalorder %s75, %s77
      %p84 = scmp.eq.s32.totalorder %s25, 3
      %p85 = por %p83, %p84
      %p86 = scmp.ne.s32.totalorder %s77, %s78
      %p87 = scmp.eq.s32.totalorder %s25, 0
      %p88 = por %p86, %p87
      %p89 = scmp.ne.s32.totalorder %s77, %s78
      %p90 = scmp.eq.s32.totalorder %s26, 3
      %p91 = por %p89, %p90
      %p93 = scmp.ne.s32.totalorder %s78, %s92
      %p94 = scmp.eq.s32.totalorder %s26, 0
      %p95 = por %p93, %p94
      %s97 = sadd.s32 %s96, 1
      %p100 = scmp.eq.s32.totalorder %s20, 3
      %p101 = scmp.ne.s32.totalorder %s96, %s98
      %p102 = scmp.eq.s32.totalorder %s20, 0
      %p103 = por %p101, %p102
      %p104 = scmp.ne.s32.totalorder %s96, %s98
      %p105 = scmp.eq.s32.totalorder %s25, 3
      %p106 = por %p104, %p105
      %p107 = scmp.ne.s32.totalorder %s98, %s99
      %p108 = scmp.eq.s32.totalorder %s25, 0
      %p109 = por %p107, %p108
      %p110 = scmp.ne.s32.totalorder %s98, %s99
      %p111 = scmp.eq.s32.totalorder %s26, 3
      %p112 = por %p110, %p111
      %p114 = scmp.ne.s32.totalorder %s99, %s113
      %p115 = scmp.eq.s32.totalorder %s26, 0
      %p116 = por %p114, %p115
      %s118 = sadd.s32 %s117, 1
      %p121 = scmp.eq.s32.totalorder %s20, 3
      %p122 = scmp.ne.s32.totalorder %s117, %s119
      %p123 = scmp.eq.s32.totalorder %s20, 0
      %p124 = por %p122, %p123
      %p125 = scmp.ne.s32.totalorder %s117, %s119
      %p126 = scmp.eq.s32.totalorder %s25, 3
      %p127 = por %p125, %p126
      %p128 = scmp.ne.s32.totalorder %s119, %s120
      %p129 = scmp.eq.s32.totalorder %s25, 0
      %p130 = por %p128, %p129
      %p131 = scmp.ne.s32.totalorder %s119, %s120
      %p132 = scmp.eq.s32.totalorder %s26, 3
      %p133 = por %p131, %p132
      %p135 = scmp.ne.s32.totalorder %s120, %s134
      %p136 = scmp.eq.s32.totalorder %s26, 0
      %p137 = por %p135, %p136
      %s139 = sadd.s32 %s138, 1
      %p142 = scmp.eq.s32.totalorder %s20, 3
      %p143 = scmp.ne.s32.totalorder %s138, %s140
      %p144 = scmp.eq.s32.totalorder %s20, 0
      %p145 = por %p143, %p144
      %p146 = scmp.ne.s32.totalorder %s138, %s140
      %p147 = scmp.eq.s32.totalorder %s25, 3
      %p148 = por %p146, %p147
      %p149 = scmp.ne.s32.totalorder %s140, %s141
      %p150 = scmp.eq.s32.totalorder %s25, 0
      %p151 = por %p149, %p150
      %p152 = scmp.ne.s32.totalorder %s140, %s141
      %p153 = scmp.eq.s32.totalorder %s26, 3
      %p154 = por %p152, %p153
      %p156 = scmp.ne.s32.totalorder %s141, %s155
      %p157 = scmp.eq.s32.totalorder %s26, 0
      %p158 = por %p156, %p157
      %s160 = sadd.s32 %s159, 1
      %p163 = scmp.eq.s32.totalorder %s20, 3
      %p164 = scmp.ne.s32.totalorder %s159, %s161
      %p165 = scmp.eq.s32.totalorder %s20, 0
      %p166 = por %p164, %p165
      %p167 = scmp.ne.s32.totalorder %s159, %s161
      %p168 = scmp.eq.s32.totalorder %s25, 3
      %p169 = por %p167, %p168
      %p170 = scmp.ne.s32.totalorder %s161, %s162
      %p171 = scmp.eq.s32.totalorder %s25, 0
      %p172 = por %p170, %p171
      %p173 = scmp.ne.s32.totalorder %s161, %s162
      %p174 = scmp.eq.s32.totalorder %s26, 3
      %p175 = por %p173, %p174
      %p177 = scmp.ne.s32.totalorder %s162, %s176
      %p178 = scmp.eq.s32.totalorder %s26, 0
      %p179 = por %p177, %p178
      %s181 = sadd.s32 %s180, 1
      %p184 = scmp.eq.s32.totalorder %s20, 3
      %p185 = scmp.ne.s32.totalorder %s180, %s182
      %p186 = scmp.eq.s32.totalorder %s20, 0
      %p187 = por %p185, %p186
      %p188 = scmp.ne.s32.totalorder %s180, %s182
      %p189 = scmp.eq.s32.totalorder %s25, 3
      %p190 = por %p188, %p189
      %p191 = scmp.ne.s32.totalorder %s182, %s183
      %p192 = scmp.eq.s32.totalorder %s25, 0
      %p193 = por %p191, %p192
      %p194 = scmp.ne.s32.totalorder %s182, %s183
      %p195 = scmp.eq.s32.totalorder %s26, 3
      %p196 = por %p194, %p195
      %p198 = scmp.ne.s32.totalorder %s183, %s197
      %p199 = scmp.eq.s32.totalorder %s26, 0
      %p200 = por %p198, %p199
      %s201 = ssub.s32 %s27, %s46
      %s202 = ssub.s32 %s28, %s42
      %s203 = sor.u32 %s201, %s202
      %p204 = scmp.eq.s32.totalorder %s203, 0
      %s206 = sadd.s32 %s205, 1
      %s207 = scalar_select %p204, %s205, %s206
      %p210 = pneg %p204
      %p211 = scmp.eq.s32.totalorder %s20, 3
      %p212 = por %p210, %p211
      %p213 = scmp.ne.s32.totalorder %s205, %s208
      %p214 = scmp.eq.s32.totalorder %s20, 0
      %p215 = por %p213, %p214
      %p216 = scmp.ne.s32.totalorder %s205, %s208
      %p217 = scmp.eq.s32.totalorder %s25, 3
      %p218 = por %p216, %p217
      %p219 = scmp.ne.s32.totalorder %s208, %s209
      %p220 = scmp.eq.s32.totalorder %s25, 0
      %p221 = por %p219, %p220
      %p222 = scmp.ne.s32.totalorder %s208, %s209
      %p223 = scmp.eq.s32.totalorder %s26, 3
      %p224 = por %p222, %p223
      %p226 = scmp.ne.s32.totalorder %s209, %s225
      %p227 = scmp.eq.s32.totalorder %s26, 0
      %p228 = por %p226, %p227
      %p229 = scmp.le.s32.totalorder 1, %s20
      %p230 = scmp.lt.s32.totalorder %s20, 5
      %p231 = pnand %p229, %p230
      %p232 = pneg %p231
      // Predicated region
      $region9: #{decoder_forward.1} parent=5 // pred_check
        _
      $region10: #{decoder_forward.1} parent=5 // pred_check_branch
        %234 = sbr.rel (%p231) target = $region12
      $region11: #{decoder_forward.1} parent=5 // pred_region
        %s235 = ssub.s32 %s20, 1
        // Predicated region
        $region13: #{decoder_forward.1} parent=11 // pred_check
          %p236 = pneg %p88
        $region14: #{decoder_forward.1} parent=11 // pred_check_branch
          %238 = sbr.rel (%p236) target = $region16
        $region15: #{decoder_forward.1} parent=11 // pred_region
          _
        $region16: #{decoder_forward.1} parent=11 // pred_fallthru
          _
        // Predicated region
        $region17: #{decoder_forward.1} parent=11 // pred_check
          %p239 = pneg %p109
        $region18: #{decoder_forward.1} parent=11 // pred_check_branch
          %241 = sbr.rel (%p239) target = $region20
        $region19: #{decoder_forward.1} parent=11 // pred_region
          _
        $region20: #{decoder_forward.1} parent=11 // pred_fallthru
          _
        // Predicated region
        $region21: #{decoder_forward.1} parent=11 // pred_check
          %p242 = pneg %p130
        $region22: #{decoder_forward.1} parent=11 // pred_check_branch
          %244 = sbr.rel (%p242) target = $region24
        $region23: #{decoder_forward.1} parent=11 // pred_region
          _
        $region24: #{decoder_forward.1} parent=11 // pred_fallthru
          _
        // Predicated region
        $region25: #{decoder_forward.1} parent=11 // pred_check
          %p245 = pneg %p151
        $region26: #{decoder_forward.1} parent=11 // pred_check_branch
          %247 = sbr.rel (%p245) target = $region28
        $region27: #{decoder_forward.1} parent=11 // pred_region
          %249 = vsyncadd [#allocation7], 0
          %s250 = sshll.u32 %s4, 4
          %s251 = int_to_ptr.hbm [resolvable:$true] %s250
          %s252 = sshll.u32 [#allocation6], 4
          %s253 = int_to_ptr.vmem [resolvable:$true] %s252
          %258 = dma.hbm_to_vmem [thread:$0]  %s251, 10240, %s253, [#allocation7], 64, 64, 4
        $region28: #{decoder_forward.1} parent=11 // pred_fallthru
          _
        // Predicated region
        $region29: #{decoder_forward.1} parent=11 // pred_check
          %p259 = pneg %p172
        $region30: #{decoder_forward.1} parent=11 // pred_check_branch
          %261 = sbr.rel (%p259) target = $region32
        $region31: #{decoder_forward.1} parent=11 // pred_region
          _
        $region32: #{decoder_forward.1} parent=11 // pred_fallthru
          _
        // Predicated region
        $region33: #{decoder_forward.1} parent=11 // pred_check
          %p262 = pneg %p193
        $region34: #{decoder_forward.1} parent=11 // pred_check_branch
          %264 = sbr.rel (%p262) target = $region36
        $region35: #{decoder_forward.1} parent=11 // pred_region
          %266 = vsyncadd [#allocation7], 0
          %s267 = sshll.u32 %s6, 4
          %s268 = int_to_ptr.hbm [resolvable:$true] %s267
          %s269 = sshll.u32 [#allocation8], 4
          %s270 = int_to_ptr.vmem [resolvable:$true] %s269
          %275 = dma.hbm_to_vmem [thread:$0]  %s268, 8192, %s270, [#allocation7], 64, 64, 4
        $region36: #{decoder_forward.1} parent=11 // pred_fallthru
          _
      $region12: #{decoder_forward.1} parent=5 // pred_fallthru
        _
      %p276 = scmp.lt.s32.totalorder %s20, 4
      // Predicated region
      $region37: #{decoder_forward.1} parent=5 // pred_check
        %p277 = pneg %p276
      $region38: #{decoder_forward.1} parent=5 // pred_check_branch
        %279 = sbr.rel (%p277) target = $region40
      $region39: #{decoder_forward.1} parent=5 // pred_region
        // Predicated region
        $region41: #{decoder_forward.1} parent=39 // pred_check
          %p280 = pneg %p61
        $region42: #{decoder_forward.1} parent=39 // pred_check_branch
          %282 = sbr.rel (%p280) target = $region44
        $region43: #{decoder_forward.1} parent=39 // pred_region
          %s283 = sand.u32 %s51, 1
          %s284 = scalar_lea.sflag [#allocation4], %s283
          %s285 = sand.u32 %s51, 1
          %s286 = smul.addr %s285, 128
          %s287 = scalar_lea.vmem [#allocation3], %s286
          %s288 = smul.u32 16, %s28
          %290 = vsyncadd %s284, 0
          %s291 = smul.addr %s27, 16
          %s292 = sadd.s32 %s288, %s291
          %s293 = smul.addr %s292, 8
          %s294 = scalar_lea.hbm %s0, %s293
          %s295 = sshll.u32 %s294, 4
          %s296 = int_to_ptr.hbm [resolvable:$true] %s295
          %s297 = sshll.u32 %s287, 4
          %s298 = int_to_ptr.vmem [resolvable:$true] %s297
          %303 = dma.hbm_to_vmem [thread:$0]  %s296, 2048, %s298, %s284, 128, 128, 8
        $region44: #{decoder_forward.1} parent=39 // pred_fallthru
          _
      $region40: #{decoder_forward.1} parent=5 // pred_fallthru
        _
      %p304 = scmp.le.s32.totalorder 1, %s20
      %p305 = scmp.lt.s32.totalorder %s20, 5
      %p306 = pnand %p304, %p305
      %p307 = pneg %p306
      // Predicated region
      $region45: #{decoder_forward.1} parent=5 // pred_check
        _
      $region46: #{decoder_forward.1} parent=5 // pred_check_branch
        %309 = sbr.rel (%p306) target = $region48
      $region47: #{decoder_forward.1} parent=5 // pred_region
        %s310 = ssub.s32 %s20, 1
        %s311 = sand.u32 %s54, 1
        %s312 = scalar_lea.sflag [#allocation4], %s311
        %s313 = sand.u32 %s54, 1
        %s314 = smul.addr %s313, 128
        %s315 = scalar_lea.vmem [#allocation3], %s314
        // Predicated region
        $region49: #{decoder_forward.1} parent=47 // pred_check
          %p316 = pneg %p67
        $region50: #{decoder_forward.1} parent=47 // pred_check_branch
          %318 = sbr.rel (%p316) target = $region52
        $region51: #{decoder_forward.1} parent=47 // pred_region
          %320 = dma.done %s312, 2048
        $region52: #{decoder_forward.1} parent=47 // pred_fallthru
          _
        // Predicated region
        $region53: #{decoder_forward.1} parent=47 // pred_check
          %p321 = pneg %p151
        $region54: #{decoder_forward.1} parent=47 // pred_check_branch
          %323 = sbr.rel (%p321) target = $region56
        $region55: #{decoder_forward.1} parent=47 // pred_region
          %325 = dma.done [#allocation7], 10240
        $region56: #{decoder_forward.1} parent=47 // pred_fallthru
          _
        // Predicated region
        $region57: #{decoder_forward.1} parent=47 // pred_check
          %p326 = pneg %p193
        $region58: #{decoder_forward.1} parent=47 // pred_check_branch
          %328 = sbr.rel (%p326) target = $region60
        $region59: #{decoder_forward.1} parent=47 // pred_region
          %330 = dma.done [#allocation7], 8192
        $region60: #{decoder_forward.1} parent=47 // pred_fallthru
          _
        %s331 = sand.u32 %s54, 1
        %s332 = scalar_lea.sflag [#allocation4], %s331
        %s333 = sand.u32 %s54, 1
        %s334 = smul.addr %s333, 128
        %s335 = scalar_lea.vmem [#allocation3], %s334
        %p336 = pneg %p67
        %p337 = pneg %p64
        %p338 = pneg %p88
        %p339 = pneg %p85
        %p340 = pneg %p109
        %p341 = pneg %p106
        %p342 = pneg %p130
        %p343 = pneg %p127
        %p344 = pneg %p151
        %p345 = pneg %p148
        %p346 = pneg %p172
        %p347 = pneg %p169
        %p348 = pneg %p193
        %p349 = pneg %p190
        %p350 = pneg %p221
        %p351 = pneg %p218
        %s352 = sand.u32 %s208, 1
        %s353 = scalar_lea.sflag [#allocation5], %s352
        %s354 = sand.u32 %s208, 1
        %s355 = smul.addr %s354, 128
        %s356 = scalar_lea.vmem [#allocation9], %s355
        %s357 = smul.u32 16, %s31
        %s358 = smul.u32 16, %s31
        %p360 = scmp.eq.s32.totalorder %s32, 0
        // Predicated region
        $region61: #{decoder_forward.1} parent=47 // pred_check
          %p361 = pneg %p360
        $region62: #{decoder_forward.1} parent=47 // pred_check_branch
          %363 = sbr.rel (%p361) target = $region64
        $region63: #{decoder_forward.1} parent=47 // pred_region
          %v364 = vld [vmem:[%s315] sm:$0xff]
          %v365 = vld [vmem:[%s315 + $0x8] sm:$0xff]
          %v366 = vld [vmem:[%s315 + $0x10] sm:$0xff]
          %v367 = vld [vmem:[%s315 + $0x18] sm:$0xff]
          %v368 = vld [vmem:[%s315 + $0x20] sm:$0xff]
          %v369 = vld [vmem:[%s315 + $0x28] sm:$0xff]
          %v370 = vld [vmem:[%s315 + $0x30] sm:$0xff]
          %v371 = vld [vmem:[%s315 + $0x38] sm:$0xff]
          %v372 = vld [vmem:[%s315 + $0x40] sm:$0xff]
          %v373 = vld [vmem:[%s315 + $0x48] sm:$0xff]
          %v374 = vld [vmem:[%s315 + $0x50] sm:$0xff]
          %v375 = vld [vmem:[%s315 + $0x58] sm:$0xff]
          %v376 = vld [vmem:[%s315 + $0x60] sm:$0xff]
          %v377 = vld [vmem:[%s315 + $0x68] sm:$0xff]
          %v378 = vld [vmem:[%s315 + $0x70] sm:$0xff]
          %v379 = vld [vmem:[%s315 + $0x78] sm:$0xff]
          %380 = vst [vmem:[%s356] sm:$0xff] %v364
          %381 = vst [vmem:[%s356 + $0x8] sm:$0xff] %v365
          %382 = vst [vmem:[%s356 + $0x10] sm:$0xff] %v366
          %383 = vst [vmem:[%s356 + $0x18] sm:$0xff] %v367
          %384 = vst [vmem:[%s356 + $0x20] sm:$0xff] %v368
          %385 = vst [vmem:[%s356 + $0x28] sm:$0xff] %v369
          %386 = vst [vmem:[%s356 + $0x30] sm:$0xff] %v370
          %387 = vst [vmem:[%s356 + $0x38] sm:$0xff] %v371
          %388 = vst [vmem:[%s356 + $0x40] sm:$0xff] %v372
          %389 = vst [vmem:[%s356 + $0x48] sm:$0xff] %v373
          %390 = vst [vmem:[%s356 + $0x50] sm:$0xff] %v374
          %391 = vst [vmem:[%s356 + $0x58] sm:$0xff] %v375
          %392 = vst [vmem:[%s356 + $0x60] sm:$0xff] %v376
          %393 = vst [vmem:[%s356 + $0x68] sm:$0xff] %v377
          %394 = vst [vmem:[%s356 + $0x70] sm:$0xff] %v378
          %395 = vst [vmem:[%s356 + $0x78] sm:$0xff] %v379
        $region64: #{decoder_forward.1} parent=47 // pred_fallthru
          _
        %v396 = vld [vmem:[%s356] sm:$0xff]
        %v397 = vld [vmem:[%s356 + $0x8] sm:$0xff]
        %v398 = vld [vmem:[%s356 + $0x10] sm:$0xff]
        %v399 = vld [vmem:[%s356 + $0x18] sm:$0xff]
        %v400 = vld [vmem:[%s356 + $0x20] sm:$0xff]
        %v401 = vld [vmem:[%s356 + $0x28] sm:$0xff]
        %v402 = vld [vmem:[%s356 + $0x30] sm:$0xff]
        %v403 = vld [vmem:[%s356 + $0x38] sm:$0xff]
        %v404 = vld [vmem:[%s356 + $0x40] sm:$0xff]
        %v405 = vld [vmem:[%s356 + $0x48] sm:$0xff]
        %v406 = vld [vmem:[%s356 + $0x50] sm:$0xff]
        %v407 = vld [vmem:[%s356 + $0x58] sm:$0xff]
        %v408 = vld [vmem:[%s356 + $0x60] sm:$0xff]
        %v409 = vld [vmem:[%s356 + $0x68] sm:$0xff]
        %v410 = vld [vmem:[%s356 + $0x70] sm:$0xff]
        %v411 = vld [vmem:[%s356 + $0x78] sm:$0xff]
        %s412 = smul.u32 %s32, 2
        %s413 = sadd.s32 %s412, %s30
        %s414 = smul.u32 %s413, 2
        %s415 = scalar_lea.vmem %s1, %s414
        %v416 = vld [vmem:[%s415] sm:$0x3]
        %s417 = smul.u32 %s32, 8
        %s418 = scalar_lea.vmem %s2, %s417
        %v419 = vld [vmem:[%s418] sm:$0xff]
        %s420 = smul.u32 %s32, 4
        %s421 = scalar_lea.vmem %s3, %s420
        %v422 = vld [vmem:[%s421] sm:$0xf]
        %s423 = smul.u32 %s32, 80
        %s424 = smul.addr %s423, 4
        %s425 = scalar_lea.vmem [#allocation6], %s424
        %v426 = vld [vmem:[%s425] sm:$0xf]
        %v427 = vld [vmem:[%s425 + $0x4] sm:$0xf]
        %v428 = vld [vmem:[%s425 + $0x8] sm:$0xf]
        %v429 = vld [vmem:[%s425 + $0xc] sm:$0xf]
        %v430 = vld [vmem:[%s425 + $0x10] sm:$0xf]
        %v431 = vld [vmem:[%s425 + $0x14] sm:$0xf]
        %v432 = vld [vmem:[%s425 + $0x18] sm:$0xf]
        %v433 = vld [vmem:[%s425 + $0x1c] sm:$0xf]
        %v434 = vld [vmem:[%s425 + $0x20] sm:$0xf]
        %v435 = vld [vmem:[%s425 + $0x24] sm:$0xf]
        %v436 = vld [vmem:[%s425 + $0x28] sm:$0xf]
        %v437 = vld [vmem:[%s425 + $0x2c] sm:$0xf]
        %v438 = vld [vmem:[%s425 + $0x30] sm:$0xf]
        %v439 = vld [vmem:[%s425 + $0x34] sm:$0xf]
        %v440 = vld [vmem:[%s425 + $0x38] sm:$0xf]
        %v441 = vld [vmem:[%s425 + $0x3c] sm:$0xf]
        %v442 = vld [vmem:[%s425 + $0x40] sm:$0xf]
        %v443 = vld [vmem:[%s425 + $0x44] sm:$0xf]
        %v444 = vld [vmem:[%s425 + $0x48] sm:$0xf]
        %v445 = vld [vmem:[%s425 + $0x4c] sm:$0xf]
        %v446 = vld [vmem:[%s425 + $0x50] sm:$0xf]
        %v447 = vld [vmem:[%s425 + $0x54] sm:$0xf]
        %v448 = vld [vmem:[%s425 + $0x58] sm:$0xf]
        %v449 = vld [vmem:[%s425 + $0x5c] sm:$0xf]
        %v450 = vld [vmem:[%s425 + $0x60] sm:$0xf]
        %v451 = vld [vmem:[%s425 + $0x64] sm:$0xf]
        %v452 = vld [vmem:[%s425 + $0x68] sm:$0xf]
        %v453 = vld [vmem:[%s425 + $0x6c] sm:$0xf]
        %v454 = vld [vmem:[%s425 + $0x70] sm:$0xf]
        %v455 = vld [vmem:[%s425 + $0x74] sm:$0xf]
        %v456 = vld [vmem:[%s425 + $0x78] sm:$0xf]
        %v457 = vld [vmem:[%s425 + $0x7c] sm:$0xf]
        %v458 = vld [vmem:[%s425 + $0x80] sm:$0xf]
        %v459 = vld [vmem:[%s425 + $0x84] sm:$0xf]
        %v460 = vld [vmem:[%s425 + $0x88] sm:$0xf]
        %v461 = vld [vmem:[%s425 + $0x8c] sm:$0xf]
        %v462 = vld [vmem:[%s425 + $0x90] sm:$0xf]
        %v463 = vld [vmem:[%s425 + $0x94] sm:$0xf]
        %v464 = vld [vmem:[%s425 + $0x98] sm:$0xf]
        %v465 = vld [vmem:[%s425 + $0x9c] sm:$0xf]
        %v466 = vld [vmem:[%s425 + $0xa0] sm:$0xf]
        %v467 = vld [vmem:[%s425 + $0xa4] sm:$0xf]
        %v468 = vld [vmem:[%s425 + $0xa8] sm:$0xf]
        %v469 = vld [vmem:[%s425 + $0xac] sm:$0xf]
        %v470 = vld [vmem:[%s425 + $0xb0] sm:$0xf]
        %v471 = vld [vmem:[%s425 + $0xb4] sm:$0xf]
        %v472 = vld [vmem:[%s425 + $0xb8] sm:$0xf]
        %v473 = vld [vmem:[%s425 + $0xbc] sm:$0xf]
        %v474 = vld [vmem:[%s425 + $0xc0] sm:$0xf]
        %v475 = vld [vmem:[%s425 + $0xc4] sm:$0xf]
        %v476 = vld [vmem:[%s425 + $0xc8] sm:$0xf]
        %v477 = vld [vmem:[%s425 + $0xcc] sm:$0xf]
        %v478 = vld [vmem:[%s425 + $0xd0] sm:$0xf]
        %v479 = vld [vmem:[%s425 + $0xd4] sm:$0xf]
        %v480 = vld [vmem:[%s425 + $0xd8] sm:$0xf]
        %v481 = vld [vmem:[%s425 + $0xdc] sm:$0xf]
        %v482 = vld [vmem:[%s425 + $0xe0] sm:$0xf]
        %v483 = vld [vmem:[%s425 + $0xe4] sm:$0xf]
        %v484 = vld [vmem:[%s425 + $0xe8] sm:$0xf]
        %v485 = vld [vmem:[%s425 + $0xec] sm:$0xf]
        %v486 = vld [vmem:[%s425 + $0xf0] sm:$0xf]
        %v487 = vld [vmem:[%s425 + $0xf4] sm:$0xf]
        %v488 = vld [vmem:[%s425 + $0xf8] sm:$0xf]
        %v489 = vld [vmem:[%s425 + $0xfc] sm:$0xf]
        %v490 = vld [vmem:[%s425 + $0x100] sm:$0xf]
        %v491 = vld [vmem:[%s425 + $0x104] sm:$0xf]
        %v492 = vld [vmem:[%s425 + $0x108] sm:$0xf]
        %v493 = vld [vmem:[%s425 + $0x10c] sm:$0xf]
        %v494 = vld [vmem:[%s425 + $0x110] sm:$0xf]
        %v495 = vld [vmem:[%s425 + $0x114] sm:$0xf]
        %v496 = vld [vmem:[%s425 + $0x118] sm:$0xf]
        %v497 = vld [vmem:[%s425 + $0x11c] sm:$0xf]
        %v498 = vld [vmem:[%s425 + $0x120] sm:$0xf]
        %v499 = vld [vmem:[%s425 + $0x124] sm:$0xf]
        %v500 = vld [vmem:[%s425 + $0x128] sm:$0xf]
        %v501 = vld [vmem:[%s425 + $0x12c] sm:$0xf]
        %v502 = vld [vmem:[%s425 + $0x130] sm:$0xf]
        %v503 = vld [vmem:[%s425 + $0x134] sm:$0xf]
        %v504 = vld [vmem:[%s425 + $0x138] sm:$0xf]
        %v505 = vld [vmem:[%s425 + $0x13c] sm:$0xf]
        %s506 = smul.u32 %s32, 64
        %s507 = smul.addr %s506, 4
        %s508 = scalar_lea.vmem %s5, %s507
        %v509 = vld [vmem:[%s508] sm:$0xff]
        %v510 = vld [vmem:[%s508 + $0x8] sm:$0xff]
        %v511 = vld [vmem:[%s508 + $0x10] sm:$0xff]
        %v512 = vld [vmem:[%s508 + $0x18] sm:$0xff]
        %v513 = vld [vmem:[%s508 + $0x20] sm:$0xff]
        %v514 = vld [vmem:[%s508 + $0x28] sm:$0xff]
        %v515 = vld [vmem:[%s508 + $0x30] sm:$0xff]
        %v516 = vld [vmem:[%s508 + $0x38] sm:$0xff]
        %v517 = vld [vmem:[%s508 + $0x40] sm:$0xff]
        %v518 = vld [vmem:[%s508 + $0x48] sm:$0xff]
        %v519 = vld [vmem:[%s508 + $0x50] sm:$0xff]
        %v520 = vld [vmem:[%s508 + $0x58] sm:$0xff]
        %v521 = vld [vmem:[%s508 + $0x60] sm:$0xff]
        %v522 = vld [vmem:[%s508 + $0x68] sm:$0xff]
        %v523 = vld [vmem:[%s508 + $0x70] sm:$0xff]
        %v524 = vld [vmem:[%s508 + $0x78] sm:$0xff]
        %v525 = vld [vmem:[%s508 + $0x80] sm:$0xff]
        %v526 = vld [vmem:[%s508 + $0x88] sm:$0xff]
        %v527 = vld [vmem:[%s508 + $0x90] sm:$0xff]
        %v528 = vld [vmem:[%s508 + $0x98] sm:$0xff]
        %v529 = vld [vmem:[%s508 + $0xa0] sm:$0xff]
        %v530 = vld [vmem:[%s508 + $0xa8] sm:$0xff]
        %v531 = vld [vmem:[%s508 + $0xb0] sm:$0xff]
        %v532 = vld [vmem:[%s508 + $0xb8] sm:$0xff]
        %v533 = vld [vmem:[%s508 + $0xc0] sm:$0xff]
        %v534 = vld [vmem:[%s508 + $0xc8] sm:$0xff]
        %v535 = vld [vmem:[%s508 + $0xd0] sm:$0xff]
        %v536 = vld [vmem:[%s508 + $0xd8] sm:$0xff]
        %v537 = vld [vmem:[%s508 + $0xe0] sm:$0xff]
        %v538 = vld [vmem:[%s508 + $0xe8] sm:$0xff]
        %v539 = vld [vmem:[%s508 + $0xf0] sm:$0xff]
        %v540 = vld [vmem:[%s508 + $0xf8] sm:$0xff]
        %s541 = smul.addr %s506, 4
        %s542 = scalar_lea.vmem [#allocation8], %s541
        %v543 = vld [vmem:[%s542] sm:$0xf]
        %v544 = vld [vmem:[%s542 + $0x4] sm:$0xf]
        %v545 = vld [vmem:[%s542 + $0x8] sm:$0xf]
        %v546 = vld [vmem:[%s542 + $0xc] sm:$0xf]
        %v547 = vld [vmem:[%s542 + $0x10] sm:$0xf]
        %v548 = vld [vmem:[%s542 + $0x14] sm:$0xf]
        %v549 = vld [vmem:[%s542 + $0x18] sm:$0xf]
        %v550 = vld [vmem:[%s542 + $0x1c] sm:$0xf]
        %v551 = vld [vmem:[%s542 + $0x20] sm:$0xf]
        %v552 = vld [vmem:[%s542 + $0x24] sm:$0xf]
        %v553 = vld [vmem:[%s542 + $0x28] sm:$0xf]
        %v554 = vld [vmem:[%s542 + $0x2c] sm:$0xf]
        %v555 = vld [vmem:[%s542 + $0x30] sm:$0xf]
        %v556 = vld [vmem:[%s542 + $0x34] sm:$0xf]
        %v557 = vld [vmem:[%s542 + $0x38] sm:$0xf]
        %v558 = vld [vmem:[%s542 + $0x3c] sm:$0xf]
        %v559 = vld [vmem:[%s542 + $0x40] sm:$0xf]
        %v560 = vld [vmem:[%s542 + $0x44] sm:$0xf]
        %v561 = vld [vmem:[%s542 + $0x48] sm:$0xf]
        %v562 = vld [vmem:[%s542 + $0x4c] sm:$0xf]
        %v563 = vld [vmem:[%s542 + $0x50] sm:$0xf]
        %v564 = vld [vmem:[%s542 + $0x54] sm:$0xf]
        %v565 = vld [vmem:[%s542 + $0x58] sm:$0xf]
        %v566 = vld [vmem:[%s542 + $0x5c] sm:$0xf]
        %v567 = vld [vmem:[%s542 + $0x60] sm:$0xf]
        %v568 = vld [vmem:[%s542 + $0x64] sm:$0xf]
        %v569 = vld [vmem:[%s542 + $0x68] sm:$0xf]
        %v570 = vld [vmem:[%s542 + $0x6c] sm:$0xf]
        %v571 = vld [vmem:[%s542 + $0x70] sm:$0xf]
        %v572 = vld [vmem:[%s542 + $0x74] sm:$0xf]
        %v573 = vld [vmem:[%s542 + $0x78] sm:$0xf]
        %v574 = vld [vmem:[%s542 + $0x7c] sm:$0xf]
        %v575 = vld [vmem:[%s542 + $0x80] sm:$0xf]
        %v576 = vld [vmem:[%s542 + $0x84] sm:$0xf]
        %v577 = vld [vmem:[%s542 + $0x88] sm:$0xf]
        %v578 = vld [vmem:[%s542 + $0x8c] sm:$0xf]
        %v579 = vld [vmem:[%s542 + $0x90] sm:$0xf]
        %v580 = vld [vmem:[%s542 + $0x94] sm:$0xf]
        %v581 = vld [vmem:[%s542 + $0x98] sm:$0xf]
        %v582 = vld [vmem:[%s542 + $0x9c] sm:$0xf]
        %v583 = vld [vmem:[%s542 + $0xa0] sm:$0xf]
        %v584 = vld [vmem:[%s542 + $0xa4] sm:$0xf]
        %v585 = vld [vmem:[%s542 + $0xa8] sm:$0xf]
        %v586 = vld [vmem:[%s542 + $0xac] sm:$0xf]
        %v587 = vld [vmem:[%s542 + $0xb0] sm:$0xf]
        %v588 = vld [vmem:[%s542 + $0xb4] sm:$0xf]
        %v589 = vld [vmem:[%s542 + $0xb8] sm:$0xf]
        %v590 = vld [vmem:[%s542 + $0xbc] sm:$0xf]
        %v591 = vld [vmem:[%s542 + $0xc0] sm:$0xf]
        %v592 = vld [vmem:[%s542 + $0xc4] sm:$0xf]
        %v593 = vld [vmem:[%s542 + $0xc8] sm:$0xf]
        %v594 = vld [vmem:[%s542 + $0xcc] sm:$0xf]
        %v595 = vld [vmem:[%s542 + $0xd0] sm:$0xf]
        %v596 = vld [vmem:[%s542 + $0xd4] sm:$0xf]
        %v597 = vld [vmem:[%s542 + $0xd8] sm:$0xf]
        %v598 = vld [vmem:[%s542 + $0xdc] sm:$0xf]
        %v599 = vld [vmem:[%s542 + $0xe0] sm:$0xf]
        %v600 = vld [vmem:[%s542 + $0xe4] sm:$0xf]
        %v601 = vld [vmem:[%s542 + $0xe8] sm:$0xf]
        %v602 = vld [vmem:[%s542 + $0xec] sm:$0xf]
        %v603 = vld [vmem:[%s542 + $0xf0] sm:$0xf]
        %v604 = vld [vmem:[%s542 + $0xf4] sm:$0xf]
        %v605 = vld [vmem:[%s542 + $0xf8] sm:$0xf]
        %v606 = vld [vmem:[%s542 + $0xfc] sm:$0xf]
        %607 = vadd.xlane.f32.xlu0 %v396
        %v608 = vpop.xlane.xlu0 %607
        %609 = vadd.xlane.f32.xlu0 %v397
        %v610 = vpop.xlane.xlu0 %609
        %611 = vadd.xlane.f32.xlu0 %v398
        %v612 = vpop.xlane.xlu0 %611
        %613 = vadd.xlane.f32.xlu0 %v399
        %v614 = vpop.xlane.xlu0 %613
        %615 = vadd.xlane.f32.xlu0 %v400
        %v616 = vpop.xlane.xlu0 %615
        %617 = vadd.xlane.f32.xlu0 %v401
        %v618 = vpop.xlane.xlu0 %617
        %619 = vadd.xlane.f32.xlu0 %v402
        %v620 = vpop.xlane.xlu0 %619
        %621 = vadd.xlane.f32.xlu0 %v403
        %v622 = vpop.xlane.xlu0 %621
        %623 = vadd.xlane.f32.xlu0 %v404
        %v624 = vpop.xlane.xlu0 %623
        %625 = vadd.xlane.f32.xlu0 %v405
        %v626 = vpop.xlane.xlu0 %625
        %627 = vadd.xlane.f32.xlu0 %v406
        %v628 = vpop.xlane.xlu0 %627
        %629 = vadd.xlane.f32.xlu0 %v407
        %v630 = vpop.xlane.xlu0 %629
        %631 = vadd.xlane.f32.xlu0 %v408
        %v632 = vpop.xlane.xlu0 %631
        %633 = vadd.xlane.f32.xlu0 %v409
        %v634 = vpop.xlane.xlu0 %633
        %635 = vadd.xlane.f32.xlu0 %v410
        %v636 = vpop.xlane.xlu0 %635
        %637 = vadd.xlane.f32.xlu0 %v411
        %v638 = vpop.xlane.xlu0 %637
        %v639 = vrcp.pop 128.0
        %v640 = vmul.f32 128.0, %v639
        %v641 = vsub.f32 1.0, %v640
        %v642 = vmul.f32 %v639, %v641
        %v643 = vadd.f32 %v639, %v642
        %vm644 = vweird.f32 %v639
        %v645 = vsel %vm644, %v639, %v643
        %v646 = vmul.f32 %v608, %v645
        %v647 = vmul.f32 %v610, %v645
        %v648 = vmul.f32 %v612, %v645
        %v649 = vmul.f32 %v614, %v645
        %v650 = vmul.f32 %v616, %v645
        %v651 = vmul.f32 %v618, %v645
        %v652 = vmul.f32 %v620, %v645
        %v653 = vmul.f32 %v622, %v645
        %v654 = vmul.f32 %v624, %v645
        %v655 = vmul.f32 %v626, %v645
        %v656 = vmul.f32 %v628, %v645
        %v657 = vmul.f32 %v630, %v645
        %v658 = vmul.f32 %v632, %v645
        %v659 = vmul.f32 %v634, %v645
        %v660 = vmul.f32 %v636, %v645
        %v661 = vmul.f32 %v638, %v645
        %v662 = vmul.f32 %v396, %v396
        %v663 = vmul.f32 %v397, %v397
        %v664 = vmul.f32 %v398, %v398
        %v665 = vmul.f32 %v399, %v399
        %v666 = vmul.f32 %v400, %v400
        %v667 = vmul.f32 %v401, %v401
        %v668 = vmul.f32 %v402, %v402
        %v669 = vmul.f32 %v403, %v403
        %v670 = vmul.f32 %v404, %v404
        %v671 = vmul.f32 %v405, %v405
        %v672 = vmul.f32 %v406, %v406
        %v673 = vmul.f32 %v407, %v407
        %v674 = vmul.f32 %v408, %v408
        %v675 = vmul.f32 %v409, %v409
        %v676 = vmul.f32 %v410, %v410
        %v677 = vmul.f32 %v411, %v411
        %678 = vadd.xlane.f32.xlu0 %v662
        %v679 = vpop.xlane.xlu0 %678
        %680 = vadd.xlane.f32.xlu0 %v663
        %v681 = vpop.xlane.xlu0 %680
        %682 = vadd.xlane.f32.xlu0 %v664
        %v683 = vpop.xlane.xlu0 %682
        %684 = vadd.xlane.f32.xlu0 %v665
        %v685 = vpop.xlane.xlu0 %684
        %686 = vadd.xlane.f32.xlu0 %v666
        %v687 = vpop.xlane.xlu0 %686
        %688 = vadd.xlane.f32.xlu0 %v667
        %v689 = vpop.xlane.xlu0 %688
        %690 = vadd.xlane.f32.xlu0 %v668
        %v691 = vpop.xlane.xlu0 %690
        %692 = vadd.xlane.f32.xlu0 %v669
        %v693 = vpop.xlane.xlu0 %692
        %694 = vadd.xlane.f32.xlu0 %v670
        %v695 = vpop.xlane.xlu0 %694
        %696 = vadd.xlane.f32.xlu0 %v671
        %v697 = vpop.xlane.xlu0 %696
        %698 = vadd.xlane.f32.xlu0 %v672
        %v699 = vpop.xlane.xlu0 %698
        %700 = vadd.xlane.f32.xlu0 %v673
        %v701 = vpop.xlane.xlu0 %700
        %702 = vadd.xlane.f32.xlu0 %v674
        %v703 = vpop.xlane.xlu0 %702
        %704 = vadd.xlane.f32.xlu0 %v675
        %v705 = vpop.xlane.xlu0 %704
        %706 = vadd.xlane.f32.xlu0 %v676
        %v707 = vpop.xlane.xlu0 %706
        %708 = vadd.xlane.f32.xlu0 %v677
        %v709 = vpop.xlane.xlu0 %708
        %v710 = vmul.f32 %v679, %v645
        %v711 = vmul.f32 %v681, %v645
        %v712 = vmul.f32 %v683, %v645
        %v713 = vmul.f32 %v685, %v645
        %v714 = vmul.f32 %v687, %v645
        %v715 = vmul.f32 %v689, %v645
        %v716 = vmul.f32 %v691, %v645
        %v717 = vmul.f32 %v693, %v645
        %v718 = vmul.f32 %v695, %v645
        %v719 = vmul.f32 %v697, %v645
        %v720 = vmul.f32 %v699, %v645
        %v721 = vmul.f32 %v701, %v645
        %v722 = vmul.f32 %v703, %v645
        %v723 = vmul.f32 %v705, %v645
        %v724 = vmul.f32 %v707, %v645
        %v725 = vmul.f32 %v709, %v645
        %v726 = vmul.f32 %v646, %v646
        %v727 = vmul.f32 %v647, %v647
        %v728 = vmul.f32 %v648, %v648
        %v729 = vmul.f32 %v649, %v649
        %v730 = vmul.f32 %v650, %v650
        %v731 = vmul.f32 %v651, %v651
        %v732 = vmul.f32 %v652, %v652
        %v733 = vmul.f32 %v653, %v653
        %v734 = vmul.f32 %v654, %v654
        %v735 = vmul.f32 %v655, %v655
        %v736 = vmul.f32 %v656, %v656
        %v737 = vmul.f32 %v657, %v657
        %v738 = vmul.f32 %v658, %v658
        %v739 = vmul.f32 %v659, %v659
        %v740 = vmul.f32 %v660, %v660
        %v741 = vmul.f32 %v661, %v661
        %v742 = vsub.f32 %v710, %v726
        %v743 = vsub.f32 %v711, %v727
        %v744 = vsub.f32 %v712, %v728
        %v745 = vsub.f32 %v713, %v729
        %v746 = vsub.f32 %v714, %v730
        %v747 = vsub.f32 %v715, %v731
        %v748 = vsub.f32 %v716, %v732
        %v749 = vsub.f32 %v717, %v733
        %v750 = vsub.f32 %v718, %v734
        %v751 = vsub.f32 %v719, %v735
        %v752 = vsub.f32 %v720, %v736
        %v753 = vsub.f32 %v721, %v737
        %v754 = vsub.f32 %v722, %v738
        %v755 = vsub.f32 %v723, %v739
        %v756 = vsub.f32 %v724, %v740
        %v757 = vsub.f32 %v725, %v741
        %v758 = vsub.f32 %v396, %v646
        %v759 = vsub.f32 %v397, %v647
        %v760 = vsub.f32 %v398, %v648
        %v761 = vsub.f32 %v399, %v649
        %v762 = vsub.f32 %v400, %v650
        %v763 = vsub.f32 %v401, %v651
        %v764 = vsub.f32 %v402, %v652
        %v765 = vsub.f32 %v403, %v653
        %v766 = vsub.f32 %v404, %v654
        %v767 = vsub.f32 %v405, %v655
        %v768 = vsub.f32 %v406, %v656
        %v769 = vsub.f32 %v407, %v657
        %v770 = vsub.f32 %v408, %v658
        %v771 = vsub.f32 %v409, %v659
        %v772 = vsub.f32 %v410, %v660
        %v773 = vsub.f32 %v411, %v661
        %v774 = vadd.f32 %v742, 1e-05
        %v775 = vadd.f32 %v743, 1e-05
        %v776 = vadd.f32 %v744, 1e-05
        %v777 = vadd.f32 %v745, 1e-05
        %v778 = vadd.f32 %v746, 1e-05
        %v779 = vadd.f32 %v747, 1e-05
        %v780 = vadd.f32 %v748, 1e-05
        %v781 = vadd.f32 %v749, 1e-05
        %v782 = vadd.f32 %v750, 1e-05
        %v783 = vadd.f32 %v751, 1e-05
        %v784 = vadd.f32 %v752, 1e-05
        %v785 = vadd.f32 %v753, 1e-05
        %v786 = vadd.f32 %v754, 1e-05
        %v787 = vadd.f32 %v755, 1e-05
        %v788 = vadd.f32 %v756, 1e-05
        %v789 = vadd.f32 %v757, 1e-05
        %v790 = vrsqrt.pop %v774
        %v791 = vmul.f32 %v790, %v774
        %v792 = vmul.f32 %v791, %v790
        %v793 = vmul.f32 0.5, %v792
        %v794 = vsub.f32 1.5, %v793
        %v795 = vmul.f32 %v790, %v794
        %vm796 = vweird.f32 %v774
        %vm797 = vweird.f32 %v790
        %vm798 = vmor %vm796, %vm797
        %v799 = vsel %vm798, %v790, %v795
        %v800 = vrsqrt.pop %v775
        %v801 = vmul.f32 %v800, %v775
        %v802 = vmul.f32 %v801, %v800
        %v803 = vmul.f32 0.5, %v802
        %v804 = vsub.f32 1.5, %v803
        %v805 = vmul.f32 %v800, %v804
        %vm806 = vweird.f32 %v775
        %vm807 = vweird.f32 %v800
        %vm808 = vmor %vm806, %vm807
        %v809 = vsel %vm808, %v800, %v805
        %v810 = vrsqrt.pop %v776
        %v811 = vmul.f32 %v810, %v776
        %v812 = vmul.f32 %v811, %v810
        %v813 = vmul.f32 0.5, %v812
        %v814 = vsub.f32 1.5, %v813
        %v815 = vmul.f32 %v810, %v814
        %vm816 = vweird.f32 %v776
        %vm817 = vweird.f32 %v810
        %vm818 = vmor %vm816, %vm817
        %v819 = vsel %vm818, %v810, %v815
        %v820 = vrsqrt.pop %v777
        %v821 = vmul.f32 %v820, %v777
        %v822 = vmul.f32 %v821, %v820
        %v823 = vmul.f32 0.5, %v822
        %v824 = vsub.f32 1.5, %v823
        %v825 = vmul.f32 %v820, %v824
        %vm826 = vweird.f32 %v777
        %vm827 = vweird.f32 %v820
        %vm828 = vmor %vm826, %vm827
        %v829 = vsel %vm828, %v820, %v825
        %v830 = vrsqrt.pop %v778
        %v831 = vmul.f32 %v830, %v778
        %v832 = vmul.f32 %v831, %v830
        %v833 = vmul.f32 0.5, %v832
        %v834 = vsub.f32 1.5, %v833
        %v835 = vmul.f32 %v830, %v834
        %vm836 = vweird.f32 %v778
        %vm837 = vweird.f32 %v830
        %vm838 = vmor %vm836, %vm837
        %v839 = vsel %vm838, %v830, %v835
        %v840 = vrsqrt.pop %v779
        %v841 = vmul.f32 %v840, %v779
        %v842 = vmul.f32 %v841, %v840
        %v843 = vmul.f32 0.5, %v842
        %v844 = vsub.f32 1.5, %v843
        %v845 = vmul.f32 %v840, %v844
        %vm846 = vweird.f32 %v779
        %vm847 = vweird.f32 %v840
        %vm848 = vmor %vm846, %vm847
        %v849 = vsel %vm848, %v840, %v845
        %v850 = vrsqrt.pop %v780
        %v851 = vmul.f32 %v850, %v780
        %v852 = vmul.f32 %v851, %v850
        %v853 = vmul.f32 0.5, %v852
        %v854 = vsub.f32 1.5, %v853
        %v855 = vmul.f32 %v850, %v854
        %vm856 = vweird.f32 %v780
        %vm857 = vweird.f32 %v850
        %vm858 = vmor %vm856, %vm857
        %v859 = vsel %vm858, %v850, %v855
        %v860 = vrsqrt.pop %v781
        %v861 = vmul.f32 %v860, %v781
        %v862 = vmul.f32 %v861, %v860
        %v863 = vmul.f32 0.5, %v862
        %v864 = vsub.f32 1.5, %v863
        %v865 = vmul.f32 %v860, %v864
        %vm866 = vweird.f32 %v781
        %vm867 = vweird.f32 %v860
        %vm868 = vmor %vm866, %vm867
        %v869 = vsel %vm868, %v860, %v865
        %v870 = vrsqrt.pop %v782
        %v871 = vmul.f32 %v870, %v782
        %v872 = vmul.f32 %v871, %v870
        %v873 = vmul.f32 0.5, %v872
        %v874 = vsub.f32 1.5, %v873
        %v875 = vmul.f32 %v870, %v874
        %vm876 = vweird.f32 %v782
        %vm877 = vweird.f32 %v870
        %vm878 = vmor %vm876, %vm877
        %v879 = vsel %vm878, %v870, %v875
        %v880 = vrsqrt.pop %v783
        %v881 = vmul.f32 %v880, %v783
        %v882 = vmul.f32 %v881, %v880
        %v883 = vmul.f32 0.5, %v882
        %v884 = vsub.f32 1.5, %v883
        %v885 = vmul.f32 %v880, %v884
        %vm886 = vweird.f32 %v783
        %vm887 = vweird.f32 %v880
        %vm888 = vmor %vm886, %vm887
        %v889 = vsel %vm888, %v880, %v885
        %v890 = vrsqrt.pop %v784
        %v891 = vmul.f32 %v890, %v784
        %v892 = vmul.f32 %v891, %v890
        %v893 = vmul.f32 0.5, %v892
        %v894 = vsub.f32 1.5, %v893
        %v895 = vmul.f32 %v890, %v894
        %vm896 = vweird.f32 %v784
        %vm897 = vweird.f32 %v890
        %vm898 = vmor %vm896, %vm897
        %v899 = vsel %vm898, %v890, %v895
        %v900 = vrsqrt.pop %v785
        %v901 = vmul.f32 %v900, %v785
        %v902 = vmul.f32 %v901, %v900
        %v903 = vmul.f32 0.5, %v902
        %v904 = vsub.f32 1.5, %v903
        %v905 = vmul.f32 %v900, %v904
        %vm906 = vweird.f32 %v785
        %vm907 = vweird.f32 %v900
        %vm908 = vmor %vm906, %vm907
        %v909 = vsel %vm908, %v900, %v905
        %v910 = vrsqrt.pop %v786
        %v911 = vmul.f32 %v910, %v786
        %v912 = vmul.f32 %v911, %v910
        %v913 = vmul.f32 0.5, %v912
        %v914 = vsub.f32 1.5, %v913
        %v915 = vmul.f32 %v910, %v914
        %vm916 = vweird.f32 %v786
        %vm917 = vweird.f32 %v910
        %vm918 = vmor %vm916, %vm917
        %v919 = vsel %vm918, %v910, %v915
        %v920 = vrsqrt.pop %v787
        %v921 = vmul.f32 %v920, %v787
        %v922 = vmul.f32 %v921, %v920
        %v923 = vmul.f32 0.5, %v922
        %v924 = vsub.f32 1.5, %v923
        %v925 = vmul.f32 %v920, %v924
        %vm926 = vweird.f32 %v787
        %vm927 = vweird.f32 %v920
        %vm928 = vmor %vm926, %vm927
        %v929 = vsel %vm928, %v920, %v925
        %v930 = vrsqrt.pop %v788
        %v931 = vmul.f32 %v930, %v788
        %v932 = vmul.f32 %v931, %v930
        %v933 = vmul.f32 0.5, %v932
        %v934 = vsub.f32 1.5, %v933
        %v935 = vmul.f32 %v930, %v934
        %vm936 = vweird.f32 %v788
        %vm937 = vweird.f32 %v930
        %vm938 = vmor %vm936, %vm937
        %v939 = vsel %vm938, %v930, %v935
        %v940 = vrsqrt.pop %v789
        %v941 = vmul.f32 %v940, %v789
        %v942 = vmul.f32 %v941, %v940
        %v943 = vmul.f32 0.5, %v942
        %v944 = vsub.f32 1.5, %v943
        %v945 = vmul.f32 %v940, %v944
        %vm946 = vweird.f32 %v789
        %vm947 = vweird.f32 %v940
        %vm948 = vmor %vm946, %vm947
        %v949 = vsel %vm948, %v940, %v945
        %v950 = vmul.f32 %v758, %v799
        %v951 = vmul.f32 %v759, %v809
        %v952 = vmul.f32 %v760, %v819
        %v953 = vmul.f32 %v761, %v829
        %v954 = vmul.f32 %v762, %v839
        %v955 = vmul.f32 %v763, %v849
        %v956 = vmul.f32 %v764, %v859
        %v957 = vmul.f32 %v765, %v869
        %v958 = vmul.f32 %v766, %v879
        %v959 = vmul.f32 %v767, %v889
        %v960 = vmul.f32 %v768, %v899
        %v961 = vmul.f32 %v769, %v909
        %v962 = vmul.f32 %v770, %v919
        %v963 = vmul.f32 %v771, %v929
        %v964 = vmul.f32 %v772, %v939
        %v965 = vmul.f32 %v773, %v949
        %v966 = vadd.f32 %v416, 1.0
        %v967 = vperm.slane %v966, 0
        %v968 = vmul.f32 %v950, %v967
        %v969 = vmul.f32 %v951, %v967
        %v970 = vmul.f32 %v952, %v967
        %v971 = vmul.f32 %v953, %v967
        %v972 = vmul.f32 %v954, %v967
        %v973 = vmul.f32 %v955, %v967
        %v974 = vmul.f32 %v956, %v967
        %v975 = vmul.f32 %v957, %v967
        %v976 = vmul.f32 %v958, %v967
        %v977 = vmul.f32 %v959, %v967
        %v978 = vmul.f32 %v960, %v967
        %v979 = vmul.f32 %v961, %v967
        %v980 = vmul.f32 %v962, %v967
        %v981 = vmul.f32 %v963, %v967
        %v982 = vmul.f32 %v964, %v967
        %v983 = vmul.f32 %v965, %v967
        %v984 = vperm.slane %v416, 1
        %v985 = vadd.f32 %v968, %v984
        %v986 = vadd.f32 %v969, %v984
        %v987 = vadd.f32 %v970, %v984
        %v988 = vadd.f32 %v971, %v984
        %v989 = vadd.f32 %v972, %v984
        %v990 = vadd.f32 %v973, %v984
        %v991 = vadd.f32 %v974, %v984
        %v992 = vadd.f32 %v975, %v984
        %v993 = vadd.f32 %v976, %v984
        %v994 = vadd.f32 %v977, %v984
        %v995 = vadd.f32 %v978, %v984
        %v996 = vadd.f32 %v979, %v984
        %v997 = vadd.f32 %v980, %v984
        %v998 = vadd.f32 %v981, %v984
        %v999 = vadd.f32 %v982, %v984
        %v1000 = vadd.f32 %v983, %v984
        %v1001 = vpack.c.bf16 %v985, %v985
        %v1002 = vpack.c.bf16 %v986, %v986
        %v1003 = vpack.c.bf16 %v987, %v987
        %v1004 = vpack.c.bf16 %v988, %v988
        %v1005 = vpack.c.bf16 %v989, %v989
        %v1006 = vpack.c.bf16 %v990, %v990
        %v1007 = vpack.c.bf16 %v991, %v991
        %v1008 = vpack.c.bf16 %v992, %v992
        %v1009 = vpack.c.bf16 %v993, %v993
        %v1010 = vpack.c.bf16 %v994, %v994
        %v1011 = vpack.c.bf16 %v995, %v995
        %v1012 = vpack.c.bf16 %v996, %v996
        %v1013 = vpack.c.bf16 %v997, %v997
        %v1014 = vpack.c.bf16 %v998, %v998
        %v1015 = vpack.c.bf16 %v999, %v999
        %v1016 = vpack.c.bf16 %v1000, %v1000
        %v1017 = vunpack.c.l.bf16 %v1001
        %v1018 = vunpack.c.l.bf16 %v1002
        %v1019 = vunpack.c.l.bf16 %v1003
        %v1020 = vunpack.c.l.bf16 %v1004
        %v1021 = vunpack.c.l.bf16 %v1005
        %v1022 = vunpack.c.l.bf16 %v1006
        %v1023 = vunpack.c.l.bf16 %v1007
        %v1024 = vunpack.c.l.bf16 %v1008
        %v1025 = vunpack.c.l.bf16 %v1009
        %v1026 = vunpack.c.l.bf16 %v1010
        %v1027 = vunpack.c.l.bf16 %v1011
        %v1028 = vunpack.c.l.bf16 %v1012
        %v1029 = vunpack.c.l.bf16 %v1013
        %v1030 = vunpack.c.l.bf16 %v1014
        %v1031 = vunpack.c.l.bf16 %v1015
        %v1032 = vunpack.c.l.bf16 %v1016
        %v1033 = vtanh.pop %v1017
        %v1034 = vtanh.pop %v1018
        %v1035 = vtanh.pop %v1019
        %v1036 = vtanh.pop %v1020
        %v1037 = vtanh.pop %v1021
        %v1038 = vtanh.pop %v1022
        %v1039 = vtanh.pop %v1023
        %v1040 = vtanh.pop %v1024
        %v1041 = vtanh.pop %v1025
        %v1042 = vtanh.pop %v1026
        %v1043 = vtanh.pop %v1027
        %v1044 = vtanh.pop %v1028
        %v1045 = vtanh.pop %v1029
        %v1046 = vtanh.pop %v1030
        %v1047 = vtanh.pop %v1031
        %v1048 = vtanh.pop %v1032
        %v1049 = vpack.c.bf16 %v1033, %v1033
        %v1050 = vpack.c.bf16 %v1034, %v1034
        %v1051 = vpack.c.bf16 %v1035, %v1035
        %v1052 = vpack.c.bf16 %v1036, %v1036
        %v1053 = vpack.c.bf16 %v1037, %v1037
        %v1054 = vpack.c.bf16 %v1038, %v1038
        %v1055 = vpack.c.bf16 %v1039, %v1039
        %v1056 = vpack.c.bf16 %v1040, %v1040
        %v1057 = vpack.c.bf16 %v1041, %v1041
        %v1058 = vpack.c.bf16 %v1042, %v1042
        %v1059 = vpack.c.bf16 %v1043, %v1043
        %v1060 = vpack.c.bf16 %v1044, %v1044
        %v1061 = vpack.c.bf16 %v1045, %v1045
        %v1062 = vpack.c.bf16 %v1046, %v1046
        %v1063 = vpack.c.bf16 %v1047, %v1047
        %v1064 = vpack.c.bf16 %v1048, %v1048
        %v1065 = vunpack.c.l.bf16 %v1049
        %v1066 = vunpack.c.l.bf16 %v1050
        %v1067 = vunpack.c.l.bf16 %v1051
        %v1068 = vunpack.c.l.bf16 %v1052
        %v1069 = vunpack.c.l.bf16 %v1053
        %v1070 = vunpack.c.l.bf16 %v1054
        %v1071 = vunpack.c.l.bf16 %v1055
        %v1072 = vunpack.c.l.bf16 %v1056
        %v1073 = vunpack.c.l.bf16 %v1057
        %v1074 = vunpack.c.l.bf16 %v1058
        %v1075 = vunpack.c.l.bf16 %v1059
        %v1076 = vunpack.c.l.bf16 %v1060
        %v1077 = vunpack.c.l.bf16 %v1061
        %v1078 = vunpack.c.l.bf16 %v1062
        %v1079 = vunpack.c.l.bf16 %v1063
        %v1080 = vunpack.c.l.bf16 %v1064
        %v1081 = vadd.f32 %v1065, %v1065
        %v1082 = vadd.f32 %v1066, %v1066
        %v1083 = vadd.f32 %v1067, %v1067
        %v1084 = vadd.f32 %v1068, %v1068
        %v1085 = vadd.f32 %v1069, %v1069
        %v1086 = vadd.f32 %v1070, %v1070
        %v1087 = vadd.f32 %v1071, %v1071
        %v1088 = vadd.f32 %v1072, %v1072
        %v1089 = vadd.f32 %v1073, %v1073
        %v1090 = vadd.f32 %v1074, %v1074
        %v1091 = vadd.f32 %v1075, %v1075
        %v1092 = vadd.f32 %v1076, %v1076
        %v1093 = vadd.f32 %v1077, %v1077
        %v1094 = vadd.f32 %v1078, %v1078
        %v1095 = vadd.f32 %v1079, %v1079
        %v1096 = vadd.f32 %v1080, %v1080
        %v1097 = vpack.c.bf16 %v1081, %v1081
        %v1098 = vpack.c.bf16 %v1082, %v1082
        %v1099 = vpack.c.bf16 %v1083, %v1083
        %v1100 = vpack.c.bf16 %v1084, %v1084
        %v1101 = vpack.c.bf16 %v1085, %v1085
        %v1102 = vpack.c.bf16 %v1086, %v1086
        %v1103 = vpack.c.bf16 %v1087, %v1087
        %v1104 = vpack.c.bf16 %v1088, %v1088
        %v1105 = vpack.c.bf16 %v1089, %v1089
        %v1106 = vpack.c.bf16 %v1090, %v1090
        %v1107 = vpack.c.bf16 %v1091, %v1091
        %v1108 = vpack.c.bf16 %v1092, %v1092
        %v1109 = vpack.c.bf16 %v1093, %v1093
        %v1110 = vpack.c.bf16 %v1094, %v1094
        %v1111 = vpack.c.bf16 %v1095, %v1095
        %v1112 = vpack.c.bf16 %v1096, %v1096
        %v1113 = vunpack.c.l.bf16 %v1097
        %v1114 = vunpack.c.l.bf16 %v1098
        %v1115 = vunpack.c.l.bf16 %v1099
        %v1116 = vunpack.c.l.bf16 %v1100
        %v1117 = vunpack.c.l.bf16 %v1101
        %v1118 = vunpack.c.l.bf16 %v1102
        %v1119 = vunpack.c.l.bf16 %v1103
        %v1120 = vunpack.c.l.bf16 %v1104
        %v1121 = vunpack.c.l.bf16 %v1105
        %v1122 = vunpack.c.l.bf16 %v1106
        %v1123 = vunpack.c.l.bf16 %v1107
        %v1124 = vunpack.c.l.bf16 %v1108
        %v1125 = vunpack.c.l.bf16 %v1109
        %v1126 = vunpack.c.l.bf16 %v1110
        %v1127 = vunpack.c.l.bf16 %v1111
        %v1128 = vunpack.c.l.bf16 %v1112
        %v1129 = vmul.f32 %v1113, %v1065
        %v1130 = vmul.f32 %v1114, %v1066
        %v1131 = vmul.f32 %v1115, %v1067
        %v1132 = vmul.f32 %v1116, %v1068
        %v1133 = vmul.f32 %v1117, %v1069
        %v1134 = vmul.f32 %v1118, %v1070
        %v1135 = vmul.f32 %v1119, %v1071
        %v1136 = vmul.f32 %v1120, %v1072
        %v1137 = vmul.f32 %v1121, %v1073
        %v1138 = vmul.f32 %v1122, %v1074
        %v1139 = vmul.f32 %v1123, %v1075
        %v1140 = vmul.f32 %v1124, %v1076
        %v1141 = vmul.f32 %v1125, %v1077
        %v1142 = vmul.f32 %v1126, %v1078
        %v1143 = vmul.f32 %v1127, %v1079
        %v1144 = vmul.f32 %v1128, %v1080
        %v1145 = vpack.c.bf16 %v1129, %v1129
        %v1146 = vpack.c.bf16 %v1130, %v1130
        %v1147 = vpack.c.bf16 %v1131, %v1131
        %v1148 = vpack.c.bf16 %v1132, %v1132
        %v1149 = vpack.c.bf16 %v1133, %v1133
        %v1150 = vpack.c.bf16 %v1134, %v1134
        %v1151 = vpack.c.bf16 %v1135, %v1135
        %v1152 = vpack.c.bf16 %v1136, %v1136
        %v1153 = vpack.c.bf16 %v1137, %v1137
        %v1154 = vpack.c.bf16 %v1138, %v1138
        %v1155 = vpack.c.bf16 %v1139, %v1139
        %v1156 = vpack.c.bf16 %v1140, %v1140
        %v1157 = vpack.c.bf16 %v1141, %v1141
        %v1158 = vpack.c.bf16 %v1142, %v1142
        %v1159 = vpack.c.bf16 %v1143, %v1143
        %v1160 = vpack.c.bf16 %v1144, %v1144
        %v1161 = vunpack.c.l.bf16 %v1145
        %v1162 = vunpack.c.l.bf16 %v1146
        %v1163 = vunpack.c.l.bf16 %v1147
        %v1164 = vunpack.c.l.bf16 %v1148
        %v1165 = vunpack.c.l.bf16 %v1149
        %v1166 = vunpack.c.l.bf16 %v1150
        %v1167 = vunpack.c.l.bf16 %v1151
        %v1168 = vunpack.c.l.bf16 %v1152
        %v1169 = vunpack.c.l.bf16 %v1153
        %v1170 = vunpack.c.l.bf16 %v1154
        %v1171 = vunpack.c.l.bf16 %v1155
        %v1172 = vunpack.c.l.bf16 %v1156
        %v1173 = vunpack.c.l.bf16 %v1157
        %v1174 = vunpack.c.l.bf16 %v1158
        %v1175 = vunpack.c.l.bf16 %v1159
        %v1176 = vunpack.c.l.bf16 %v1160
        %v1177 = vsub.f32 %v1161, 1.0
        %v1178 = vsub.f32 %v1162, 1.0
        %v1179 = vsub.f32 %v1163, 1.0
        %v1180 = vsub.f32 %v1164, 1.0
        %v1181 = vsub.f32 %v1165, 1.0
        %v1182 = vsub.f32 %v1166, 1.0
        %v1183 = vsub.f32 %v1167, 1.0
        %v1184 = vsub.f32 %v1168, 1.0
        %v1185 = vsub.f32 %v1169, 1.0
        %v1186 = vsub.f32 %v1170, 1.0
        %v1187 = vsub.f32 %v1171, 1.0
        %v1188 = vsub.f32 %v1172, 1.0
        %v1189 = vsub.f32 %v1173, 1.0
        %v1190 = vsub.f32 %v1174, 1.0
        %v1191 = vsub.f32 %v1175, 1.0
        %v1192 = vsub.f32 %v1176, 1.0
        %v1193 = vpack.c.bf16 %v1177, %v1177
        %v1194 = vpack.c.bf16 %v1178, %v1178
        %v1195 = vpack.c.bf16 %v1179, %v1179
        %v1196 = vpack.c.bf16 %v1180, %v1180
        %v1197 = vpack.c.bf16 %v1181, %v1181
        %v1198 = vpack.c.bf16 %v1182, %v1182
        %v1199 = vpack.c.bf16 %v1183, %v1183
        %v1200 = vpack.c.bf16 %v1184, %v1184
        %v1201 = vpack.c.bf16 %v1185, %v1185
        %v1202 = vpack.c.bf16 %v1186, %v1186
        %v1203 = vpack.c.bf16 %v1187, %v1187
        %v1204 = vpack.c.bf16 %v1188, %v1188
        %v1205 = vpack.c.bf16 %v1189, %v1189
        %v1206 = vpack.c.bf16 %v1190, %v1190
        %v1207 = vpack.c.bf16 %v1191, %v1191
        %v1208 = vpack.c.bf16 %v1192, %v1192
        %v1209 = vunpack.c.l.bf16 %v1193
        %v1210 = vunpack.c.l.bf16 %v1194
        %v1211 = vunpack.c.l.bf16 %v1195
        %v1212 = vunpack.c.l.bf16 %v1196
        %v1213 = vunpack.c.l.bf16 %v1197
        %v1214 = vunpack.c.l.bf16 %v1198
        %v1215 = vunpack.c.l.bf16 %v1199
        %v1216 = vunpack.c.l.bf16 %v1200
        %v1217 = vunpack.c.l.bf16 %v1201
        %v1218 = vunpack.c.l.bf16 %v1202
        %v1219 = vunpack.c.l.bf16 %v1203
        %v1220 = vunpack.c.l.bf16 %v1204
        %v1221 = vunpack.c.l.bf16 %v1205
        %v1222 = vunpack.c.l.bf16 %v1206
        %v1223 = vunpack.c.l.bf16 %v1207
        %v1224 = vunpack.c.l.bf16 %v1208
        %v1225 = vmul.f32 %v1113, %v1209
        %v1226 = vmul.f32 %v1114, %v1210
        %v1227 = vmul.f32 %v1115, %v1211
        %v1228 = vmul.f32 %v1116, %v1212
        %v1229 = vmul.f32 %v1117, %v1213
        %v1230 = vmul.f32 %v1118, %v1214
        %v1231 = vmul.f32 %v1119, %v1215
        %v1232 = vmul.f32 %v1120, %v1216
        %v1233 = vmul.f32 %v1121, %v1217
        %v1234 = vmul.f32 %v1122, %v1218
        %v1235 = vmul.f32 %v1123, %v1219
        %v1236 = vmul.f32 %v1124, %v1220
        %v1237 = vmul.f32 %v1125, %v1221
        %v1238 = vmul.f32 %v1126, %v1222
        %v1239 = vmul.f32 %v1127, %v1223
        %v1240 = vmul.f32 %v1128, %v1224
        %v1241 = vpack.c.bf16 %v1225, %v1225
        %v1242 = vpack.c.bf16 %v1226, %v1226
        %v1243 = vpack.c.bf16 %v1227, %v1227
        %v1244 = vpack.c.bf16 %v1228, %v1228
        %v1245 = vpack.c.bf16 %v1229, %v1229
        %v1246 = vpack.c.bf16 %v1230, %v1230
        %v1247 = vpack.c.bf16 %v1231, %v1231
        %v1248 = vpack.c.bf16 %v1232, %v1232
        %v1249 = vpack.c.bf16 %v1233, %v1233
        %v1250 = vpack.c.bf16 %v1234, %v1234
        %v1251 = vpack.c.bf16 %v1235, %v1235
        %v1252 = vpack.c.bf16 %v1236, %v1236
        %v1253 = vpack.c.bf16 %v1237, %v1237
        %v1254 = vpack.c.bf16 %v1238, %v1238
        %v1255 = vpack.c.bf16 %v1239, %v1239
        %v1256 = vpack.c.bf16 %v1240, %v1240
        %v1257 = vunpack.c.l.bf16 %v1241
        %v1258 = vunpack.c.l.bf16 %v1242
        %v1259 = vunpack.c.l.bf16 %v1243
        %v1260 = vunpack.c.l.bf16 %v1244
        %v1261 = vunpack.c.l.bf16 %v1245
        %v1262 = vunpack.c.l.bf16 %v1246
        %v1263 = vunpack.c.l.bf16 %v1247
        %v1264 = vunpack.c.l.bf16 %v1248
        %v1265 = vunpack.c.l.bf16 %v1249
        %v1266 = vunpack.c.l.bf16 %v1250
        %v1267 = vunpack.c.l.bf16 %v1251
        %v1268 = vunpack.c.l.bf16 %v1252
        %v1269 = vunpack.c.l.bf16 %v1253
        %v1270 = vunpack.c.l.bf16 %v1254
        %v1271 = vunpack.c.l.bf16 %v1255
        %v1272 = vunpack.c.l.bf16 %v1256
        %v1273 = vsub.f32 %v1257, %v1065
        %v1274 = vsub.f32 %v1258, %v1066
        %v1275 = vsub.f32 %v1259, %v1067
        %v1276 = vsub.f32 %v1260, %v1068
        %v1277 = vsub.f32 %v1261, %v1069
        %v1278 = vsub.f32 %v1262, %v1070
        %v1279 = vsub.f32 %v1263, %v1071
        %v1280 = vsub.f32 %v1264, %v1072
        %v1281 = vsub.f32 %v1265, %v1073
        %v1282 = vsub.f32 %v1266, %v1074
        %v1283 = vsub.f32 %v1267, %v1075
        %v1284 = vsub.f32 %v1268, %v1076
        %v1285 = vsub.f32 %v1269, %v1077
        %v1286 = vsub.f32 %v1270, %v1078
        %v1287 = vsub.f32 %v1271, %v1079
        %v1288 = vsub.f32 %v1272, %v1080
        %v1289 = vpack.c.bf16 %v1273, %v1273
        %v1290 = vpack.c.bf16 %v1274, %v1274
        %v1291 = vpack.c.bf16 %v1275, %v1275
        %v1292 = vpack.c.bf16 %v1276, %v1276
        %v1293 = vpack.c.bf16 %v1277, %v1277
        %v1294 = vpack.c.bf16 %v1278, %v1278
        %v1295 = vpack.c.bf16 %v1279, %v1279
        %v1296 = vpack.c.bf16 %v1280, %v1280
        %v1297 = vpack.c.bf16 %v1281, %v1281
        %v1298 = vpack.c.bf16 %v1282, %v1282
        %v1299 = vpack.c.bf16 %v1283, %v1283
        %v1300 = vpack.c.bf16 %v1284, %v1284
        %v1301 = vpack.c.bf16 %v1285, %v1285
        %v1302 = vpack.c.bf16 %v1286, %v1286
        %v1303 = vpack.c.bf16 %v1287, %v1287
        %v1304 = vpack.c.bf16 %v1288, %v1288
        %v1305 = vunpack.c.l.bf16 %v1289
        %v1306 = vunpack.c.l.bf16 %v1290
        %v1307 = vunpack.c.l.bf16 %v1291
        %v1308 = vunpack.c.l.bf16 %v1292
        %v1309 = vunpack.c.l.bf16 %v1293
        %v1310 = vunpack.c.l.bf16 %v1294
        %v1311 = vunpack.c.l.bf16 %v1295
        %v1312 = vunpack.c.l.bf16 %v1296
        %v1313 = vunpack.c.l.bf16 %v1297
        %v1314 = vunpack.c.l.bf16 %v1298
        %v1315 = vunpack.c.l.bf16 %v1299
        %v1316 = vunpack.c.l.bf16 %v1300
        %v1317 = vunpack.c.l.bf16 %v1301
        %v1318 = vunpack.c.l.bf16 %v1302
        %v1319 = vunpack.c.l.bf16 %v1303
        %v1320 = vunpack.c.l.bf16 %v1304
        %v1321 = vmul.f32 %v1113, %v1305
        %v1322 = vmul.f32 %v1114, %v1306
        %v1323 = vmul.f32 %v1115, %v1307
        %v1324 = vmul.f32 %v1116, %v1308
        %v1325 = vmul.f32 %v1117, %v1309
        %v1326 = vmul.f32 %v1118, %v1310
        %v1327 = vmul.f32 %v1119, %v1311
        %v1328 = vmul.f32 %v1120, %v1312
        %v1329 = vmul.f32 %v1121, %v1313
        %v1330 = vmul.f32 %v1122, %v1314
        %v1331 = vmul.f32 %v1123, %v1315
        %v1332 = vmul.f32 %v1124, %v1316
        %v1333 = vmul.f32 %v1125, %v1317
        %v1334 = vmul.f32 %v1126, %v1318
        %v1335 = vmul.f32 %v1127, %v1319
        %v1336 = vmul.f32 %v1128, %v1320
        %v1337 = vpack.c.bf16 %v1321, %v1321
        %v1338 = vpack.c.bf16 %v1322, %v1322
        %v1339 = vpack.c.bf16 %v1323, %v1323
        %v1340 = vpack.c.bf16 %v1324, %v1324
        %v1341 = vpack.c.bf16 %v1325, %v1325
        %v1342 = vpack.c.bf16 %v1326, %v1326
        %v1343 = vpack.c.bf16 %v1327, %v1327
        %v1344 = vpack.c.bf16 %v1328, %v1328
        %v1345 = vpack.c.bf16 %v1329, %v1329
        %v1346 = vpack.c.bf16 %v1330, %v1330
        %v1347 = vpack.c.bf16 %v1331, %v1331
        %v1348 = vpack.c.bf16 %v1332, %v1332
        %v1349 = vpack.c.bf16 %v1333, %v1333
        %v1350 = vpack.c.bf16 %v1334, %v1334
        %v1351 = vpack.c.bf16 %v1335, %v1335
        %v1352 = vpack.c.bf16 %v1336, %v1336
        %v1353 = vunpack.c.l.bf16 %v1337
        %v1354 = vunpack.c.l.bf16 %v1338
        %v1355 = vunpack.c.l.bf16 %v1339
        %v1356 = vunpack.c.l.bf16 %v1340
        %v1357 = vunpack.c.l.bf16 %v1341
        %v1358 = vunpack.c.l.bf16 %v1342
        %v1359 = vunpack.c.l.bf16 %v1343
        %v1360 = vunpack.c.l.bf16 %v1344
        %v1361 = vunpack.c.l.bf16 %v1345
        %v1362 = vunpack.c.l.bf16 %v1346
        %v1363 = vunpack.c.l.bf16 %v1347
        %v1364 = vunpack.c.l.bf16 %v1348
        %v1365 = vunpack.c.l.bf16 %v1349
        %v1366 = vunpack.c.l.bf16 %v1350
        %v1367 = vunpack.c.l.bf16 %v1351
        %v1368 = vunpack.c.l.bf16 %v1352
        %v1369 = vsub.f32 %v1353, %v1209
        %v1370 = vsub.f32 %v1354, %v1210
        %v1371 = vsub.f32 %v1355, %v1211
        %v1372 = vsub.f32 %v1356, %v1212
        %v1373 = vsub.f32 %v1357, %v1213
        %v1374 = vsub.f32 %v1358, %v1214
        %v1375 = vsub.f32 %v1359, %v1215
        %v1376 = vsub.f32 %v1360, %v1216
        %v1377 = vsub.f32 %v1361, %v1217
        %v1378 = vsub.f32 %v1362, %v1218
        %v1379 = vsub.f32 %v1363, %v1219
        %v1380 = vsub.f32 %v1364, %v1220
        %v1381 = vsub.f32 %v1365, %v1221
        %v1382 = vsub.f32 %v1366, %v1222
        %v1383 = vsub.f32 %v1367, %v1223
        %v1384 = vsub.f32 %v1368, %v1224
        %v1385 = vpack.c.bf16 %v1369, %v1369
        %v1386 = vpack.c.bf16 %v1370, %v1370
        %v1387 = vpack.c.bf16 %v1371, %v1371
        %v1388 = vpack.c.bf16 %v1372, %v1372
        %v1389 = vpack.c.bf16 %v1373, %v1373
        %v1390 = vpack.c.bf16 %v1374, %v1374
        %v1391 = vpack.c.bf16 %v1375, %v1375
        %v1392 = vpack.c.bf16 %v1376, %v1376
        %v1393 = vpack.c.bf16 %v1377, %v1377
        %v1394 = vpack.c.bf16 %v1378, %v1378
        %v1395 = vpack.c.bf16 %v1379, %v1379
        %v1396 = vpack.c.bf16 %v1380, %v1380
        %v1397 = vpack.c.bf16 %v1381, %v1381
        %v1398 = vpack.c.bf16 %v1382, %v1382
        %v1399 = vpack.c.bf16 %v1383, %v1383
        %v1400 = vpack.c.bf16 %v1384, %v1384
        %1401 = vst [vmem:[#allocation2] sm:$0xf] 1065369472
        %1402 = vst [vmem:[#allocation2 + $0x14] sm:$0xf] 1065369472
        %1403 = vst [vmem:[#allocation2 + $0x28] sm:$0xf] 1065369472
        %1404 = vst [vmem:[#allocation2 + $0x3c] sm:$0xf] 1065369472
        %1405 = vst [vmem:[#allocation2 + $0x50] sm:$0xf] 1065369472
        %1406 = vst [vmem:[#allocation2 + $0x64] sm:$0xf] 1065369472
        %1407 = vst [vmem:[#allocation2 + $0x78] sm:$0xf] 1065369472
        %1408 = vst [vmem:[#allocation2 + $0x8c] sm:$0xf] 1065369472
        %1409 = vst [vmem:[#allocation2 + $0xa0] sm:$0xf] 1065369472
        %1410 = vst [vmem:[#allocation2 + $0xb4] sm:$0xf] 1065369472
        %1411 = vst [vmem:[#allocation2 + $0xc8] sm:$0xf] 1065369472
        %1412 = vst [vmem:[#allocation2 + $0xdc] sm:$0xf] 1065369472
        %1413 = vst [vmem:[#allocation2 + $0xf0] sm:$0xf] 1065369472
        %1414 = vst [vmem:[#allocation2 + $0x104] sm:$0xf] 1065369472
        %1415 = vst [vmem:[#allocation2 + $0x118] sm:$0xf] 1065369472
        %1416 = vst [vmem:[#allocation2 + $0x12c] sm:$0xf] 1065369472
        %1417 = vst [vmem:[#allocation2 + $0x4] sm:$0xf] %v1049
        %1418 = vst [vmem:[#allocation2 + $0x18] sm:$0xf] %v1050
        %1419 = vst [vmem:[#allocation2 + $0x2c] sm:$0xf] %v1051
        %1420 = vst [vmem:[#allocation2 + $0x40] sm:$0xf] %v1052
        %1421 = vst [vmem:[#allocation2 + $0x54] sm:$0xf] %v1053
        %1422 = vst [vmem:[#allocation2 + $0x68] sm:$0xf] %v1054
        %1423 = vst [vmem:[#allocation2 + $0x7c] sm:$0xf] %v1055
        %1424 = vst [vmem:[#allocation2 + $0x90] sm:$0xf] %v1056
        %1425 = vst [vmem:[#allocation2 + $0xa4] sm:$0xf] %v1057
        %1426 = vst [vmem:[#allocation2 + $0xb8] sm:$0xf] %v1058
        %1427 = vst [vmem:[#allocation2 + $0xcc] sm:$0xf] %v1059
        %1428 = vst [vmem:[#allocation2 + $0xe0] sm:$0xf] %v1060
        %1429 = vst [vmem:[#allocation2 + $0xf4] sm:$0xf] %v1061
        %1430 = vst [vmem:[#allocation2 + $0x108] sm:$0xf] %v1062
        %1431 = vst [vmem:[#allocation2 + $0x11c] sm:$0xf] %v1063
        %1432 = vst [vmem:[#allocation2 + $0x130] sm:$0xf] %v1064
        %1433 = vst [vmem:[#allocation2 + $0x8] sm:$0xf] %v1193
        %1434 = vst [vmem:[#allocation2 + $0x1c] sm:$0xf] %v1194
        %1435 = vst [vmem:[#allocation2 + $0x30] sm:$0xf] %v1195
        %1436 = vst [vmem:[#allocation2 + $0x44] sm:$0xf] %v1196
        %1437 = vst [vmem:[#allocation2 + $0x58] sm:$0xf] %v1197
        %1438 = vst [vmem:[#allocation2 + $0x6c] sm:$0xf] %v1198
        %1439 = vst [vmem:[#allocation2 + $0x80] sm:$0xf] %v1199
        %1440 = vst [vmem:[#allocation2 + $0x94] sm:$0xf] %v1200
        %1441 = vst [vmem:[#allocation2 + $0xa8] sm:$0xf] %v1201
        %1442 = vst [vmem:[#allocation2 + $0xbc] sm:$0xf] %v1202
        %1443 = vst [vmem:[#allocation2 + $0xd0] sm:$0xf] %v1203
        %1444 = vst [vmem:[#allocation2 + $0xe4] sm:$0xf] %v1204
        %1445 = vst [vmem:[#allocation2 + $0xf8] sm:$0xf] %v1205
        %1446 = vst [vmem:[#allocation2 + $0x10c] sm:$0xf] %v1206
        %1447 = vst [vmem:[#allocation2 + $0x120] sm:$0xf] %v1207
        %1448 = vst [vmem:[#allocation2 + $0x134] sm:$0xf] %v1208
        %1449 = vst [vmem:[#allocation2 + $0xc] sm:$0xf] %v1289
        %1450 = vst [vmem:[#allocation2 + $0x20] sm:$0xf] %v1290
        %1451 = vst [vmem:[#allocation2 + $0x34] sm:$0xf] %v1291
        %1452 = vst [vmem:[#allocation2 + $0x48] sm:$0xf] %v1292
        %1453 = vst [vmem:[#allocation2 + $0x5c] sm:$0xf] %v1293
        %1454 = vst [vmem:[#allocation2 + $0x70] sm:$0xf] %v1294
        %1455 = vst [vmem:[#allocation2 + $0x84] sm:$0xf] %v1295
        %1456 = vst [vmem:[#allocation2 + $0x98] sm:$0xf] %v1296
        %1457 = vst [vmem:[#allocation2 + $0xac] sm:$0xf] %v1297
        %1458 = vst [vmem:[#allocation2 + $0xc0] sm:$0xf] %v1298
        %1459 = vst [vmem:[#allocation2 + $0xd4] sm:$0xf] %v1299
        %1460 = vst [vmem:[#allocation2 + $0xe8] sm:$0xf] %v1300
        %1461 = vst [vmem:[#allocation2 + $0xfc] sm:$0xf] %v1301
        %1462 = vst [vmem:[#allocation2 + $0x110] sm:$0xf] %v1302
        %1463 = vst [vmem:[#allocation2 + $0x124] sm:$0xf] %v1303
        %1464 = vst [vmem:[#allocation2 + $0x138] sm:$0xf] %v1304
        %1465 = vst [vmem:[#allocation2 + $0x10] sm:$0xf] %v1385
        %1466 = vst [vmem:[#allocation2 + $0x24] sm:$0xf] %v1386
        %1467 = vst [vmem:[#allocation2 + $0x38] sm:$0xf] %v1387
        %1468 = vst [vmem:[#allocation2 + $0x4c] sm:$0xf] %v1388
        %1469 = vst [vmem:[#allocation2 + $0x60] sm:$0xf] %v1389
        %1470 = vst [vmem:[#allocation2 + $0x74] sm:$0xf] %v1390
        %1471 = vst [vmem:[#allocation2 + $0x88] sm:$0xf] %v1391
        %1472 = vst [vmem:[#allocation2 + $0x9c] sm:$0xf] %v1392
        %1473 = vst [vmem:[#allocation2 + $0xb0] sm:$0xf] %v1393
        %1474 = vst [vmem:[#allocation2 + $0xc4] sm:$0xf] %v1394
        %1475 = vst [vmem:[#allocation2 + $0xd8] sm:$0xf] %v1395
        %1476 = vst [vmem:[#allocation2 + $0xec] sm:$0xf] %v1396
        %1477 = vst [vmem:[#allocation2 + $0x100] sm:$0xf] %v1397
        %1478 = vst [vmem:[#allocation2 + $0x114] sm:$0xf] %v1398
        %1479 = vst [vmem:[#allocation2 + $0x128] sm:$0xf] %v1399
        %1480 = vst [vmem:[#allocation2 + $0x13c] sm:$0xf] %v1400
        %v1481 = vld [vmem:[#allocation2] sm:$0xff]
        %v1482 = vld [vmem:[#allocation2 + $0x8] sm:$0xff]
        %v1483 = vld [vmem:[#allocation2 + $0x10] sm:$0xf]
        %v1484 = vld [vmem:[#allocation2 + $0x14] sm:$0xff]
        %v1485 = vld [vmem:[#allocation2 + $0x1c] sm:$0xff]
        %v1486 = vld [vmem:[#allocation2 + $0x24] sm:$0xf]
        %v1487 = vld [vmem:[#allocation2 + $0x28] sm:$0xff]
        %v1488 = vld [vmem:[#allocation2 + $0x30] sm:$0xff]
        %v1489 = vld [vmem:[#allocation2 + $0x38] sm:$0xf]
        %v1490 = vld [vmem:[#allocation2 + $0x3c] sm:$0xff]
        %v1491 = vld [vmem:[#allocation2 + $0x44] sm:$0xff]
        %v1492 = vld [vmem:[#allocation2 + $0x4c] sm:$0xf]
        %v1493 = vld [vmem:[#allocation2 + $0x50] sm:$0xff]
        %v1494 = vld [vmem:[#allocation2 + $0x58] sm:$0xff]
        %v1495 = vld [vmem:[#allocation2 + $0x60] sm:$0xf]
        %v1496 = vld [vmem:[#allocation2 + $0x64] sm:$0xff]
        %v1497 = vld [vmem:[#allocation2 + $0x6c] sm:$0xff]
        %v1498 = vld [vmem:[#allocation2 + $0x74] sm:$0xf]
        %v1499 = vld [vmem:[#allocation2 + $0x78] sm:$0xff]
        %v1500 = vld [vmem:[#allocation2 + $0x80] sm:$0xff]
        %v1501 = vld [vmem:[#allocation2 + $0x88] sm:$0xf]
        %v1502 = vld [vmem:[#allocation2 + $0x8c] sm:$0xff]
        %v1503 = vld [vmem:[#allocation2 + $0x94] sm:$0xff]
        %v1504 = vld [vmem:[#allocation2 + $0x9c] sm:$0xf]
        %v1505 = vld [vmem:[#allocation2 + $0xa0] sm:$0xff]
        %v1506 = vld [vmem:[#allocation2 + $0xa8] sm:$0xff]
        %v1507 = vld [vmem:[#allocation2 + $0xb0] sm:$0xf]
        %v1508 = vld [vmem:[#allocation2 + $0xb4] sm:$0xff]
        %v1509 = vld [vmem:[#allocation2 + $0xbc] sm:$0xff]
        %v1510 = vld [vmem:[#allocation2 + $0xc4] sm:$0xf]
        %v1511 = vld [vmem:[#allocation2 + $0xc8] sm:$0xff]
        %v1512 = vld [vmem:[#allocation2 + $0xd0] sm:$0xff]
        %v1513 = vld [vmem:[#allocation2 + $0xd8] sm:$0xf]
        %v1514 = vld [vmem:[#allocation2 + $0xdc] sm:$0xff]
        %v1515 = vld [vmem:[#allocation2 + $0xe4] sm:$0xff]
        %v1516 = vld [vmem:[#allocation2 + $0xec] sm:$0xf]
        %v1517 = vld [vmem:[#allocation2 + $0xf0] sm:$0xff]
        %v1518 = vld [vmem:[#allocation2 + $0xf8] sm:$0xff]
        %v1519 = vld [vmem:[#allocation2 + $0x100] sm:$0xf]
        %v1520 = vld [vmem:[#allocation2 + $0x104] sm:$0xff]
        %v1521 = vld [vmem:[#allocation2 + $0x10c] sm:$0xff]
        %v1522 = vld [vmem:[#allocation2 + $0x114] sm:$0xf]
        %v1523 = vld [vmem:[#allocation2 + $0x118] sm:$0xff]
        %v1524 = vld [vmem:[#allocation2 + $0x120] sm:$0xff]
        %v1525 = vld [vmem:[#allocation2 + $0x128] sm:$0xf]
        %v1526 = vld [vmem:[#allocation2 + $0x12c] sm:$0xff]
        %v1527 = vld [vmem:[#allocation2 + $0x134] sm:$0xff]
        %v1528 = vld [vmem:[#allocation2 + $0x13c] sm:$0xf]
        %v1577 = vunpack.c.l.b16 %v1481
        %v1578 = vunpack.c.h.b16 %v1481
        %v1579 = vunpack.c.l.b16 %v1482
        %v1580 = vunpack.c.h.b16 %v1482
        %v1581 = vunpack.c.l.b16 %v1483
        %v1582 = vunpack.c.l.b16 %v1484
        %v1583 = vunpack.c.h.b16 %v1484
        %v1584 = vunpack.c.l.b16 %v1485
        %v1585 = vunpack.c.h.b16 %v1485
        %v1586 = vunpack.c.l.b16 %v1486
        %v1587 = vunpack.c.l.b16 %v1487
        %v1588 = vunpack.c.h.b16 %v1487
        %v1589 = vunpack.c.l.b16 %v1488
        %v1590 = vunpack.c.h.b16 %v1488
        %v1591 = vunpack.c.l.b16 %v1489
        %v1592 = vunpack.c.l.b16 %v1490
        %v1593 = vunpack.c.h.b16 %v1490
        %v1594 = vunpack.c.l.b16 %v1491
        %v1595 = vunpack.c.h.b16 %v1491
        %v1596 = vunpack.c.l.b16 %v1492
        %v1597 = vunpack.c.l.b16 %v1493
        %v1598 = vunpack.c.h.b16 %v1493
        %v1599 = vunpack.c.l.b16 %v1494
        %v1600 = vunpack.c.h.b16 %v1494
        %v1601 = vunpack.c.l.b16 %v1495
        %v1602 = vunpack.c.l.b16 %v1496
        %v1603 = vunpack.c.h.b16 %v1496
        %v1604 = vunpack.c.l.b16 %v1497
        %v1605 = vunpack.c.h.b16 %v1497
        %v1606 = vunpack.c.l.b16 %v1498
        %v1607 = vunpack.c.l.b16 %v1499
        %v1608 = vunpack.c.h.b16 %v1499
        %v1609 = vunpack.c.l.b16 %v1500
        %v1610 = vunpack.c.h.b16 %v1500
        %v1611 = vunpack.c.l.b16 %v1501
        %v1612 = vunpack.c.l.b16 %v1502
        %v1613 = vunpack.c.h.b16 %v1502
        %v1614 = vunpack.c.l.b16 %v1503
        %v1615 = vunpack.c.h.b16 %v1503
        %v1616 = vunpack.c.l.b16 %v1504
        %v1617 = vunpack.c.l.b16 %v1505
        %v1618 = vunpack.c.h.b16 %v1505
        %v1619 = vunpack.c.l.b16 %v1506
        %v1620 = vunpack.c.h.b16 %v1506
        %v1621 = vunpack.c.l.b16 %v1507
        %v1622 = vunpack.c.l.b16 %v1508
        %v1623 = vunpack.c.h.b16 %v1508
        %v1624 = vunpack.c.l.b16 %v1509
        %v1625 = vunpack.c.h.b16 %v1509
        %v1626 = vunpack.c.l.b16 %v1510
        %v1627 = vunpack.c.l.b16 %v1511
        %v1628 = vunpack.c.h.b16 %v1511
        %v1629 = vunpack.c.l.b16 %v1512
        %v1630 = vunpack.c.h.b16 %v1512
        %v1631 = vunpack.c.l.b16 %v1513
        %v1632 = vunpack.c.l.b16 %v1514
        %v1633 = vunpack.c.h.b16 %v1514
        %v1634 = vunpack.c.l.b16 %v1515
        %v1635 = vunpack.c.h.b16 %v1515
        %v1636 = vunpack.c.l.b16 %v1516
        %v1637 = vunpack.c.l.b16 %v1517
        %v1638 = vunpack.c.h.b16 %v1517
        %v1639 = vunpack.c.l.b16 %v1518
        %v1640 = vunpack.c.h.b16 %v1518
        %v1641 = vunpack.c.l.b16 %v1519
        %v1642 = vunpack.c.l.b16 %v1520
        %v1643 = vunpack.c.h.b16 %v1520
        %v1644 = vunpack.c.l.b16 %v1521
        %v1645 = vunpack.c.h.b16 %v1521
        %v1646 = vunpack.c.l.b16 %v1522
        %v1647 = vunpack.c.l.b16 %v1523
        %v1648 = vunpack.c.h.b16 %v1523
        %v1649 = vunpack.c.l.b16 %v1524
        %v1650 = vunpack.c.h.b16 %v1524
        %v1651 = vunpack.c.l.b16 %v1525
        %v1652 = vunpack.c.l.b16 %v1526
        %v1653 = vunpack.c.h.b16 %v1526
        %v1654 = vunpack.c.l.b16 %v1527
        %v1655 = vunpack.c.h.b16 %v1527
        %v1656 = vunpack.c.l.b16 %v1528
        %v1657 = vpack.c.b16 %v1582, %v1577
        %v1658 = vpack.c.b16 %v1583, %v1578
        %v1659 = vpack.c.b16 %v1584, %v1579
        %v1660 = vpack.c.b16 %v1585, %v1580
        %v1661 = vpack.c.b16 %v1586, %v1581
        %v1662 = vpack.c.b16 %v1592, %v1587
        %v1663 = vpack.c.b16 %v1593, %v1588
        %v1664 = vpack.c.b16 %v1594, %v1589
        %v1665 = vpack.c.b16 %v1595, %v1590
        %v1666 = vpack.c.b16 %v1596, %v1591
        %v1667 = vpack.c.b16 %v1602, %v1597
        %v1668 = vpack.c.b16 %v1603, %v1598
        %v1669 = vpack.c.b16 %v1604, %v1599
        %v1670 = vpack.c.b16 %v1605, %v1600
        %v1671 = vpack.c.b16 %v1606, %v1601
        %v1672 = vpack.c.b16 %v1612, %v1607
        %v1673 = vpack.c.b16 %v1613, %v1608
        %v1674 = vpack.c.b16 %v1614, %v1609
        %v1675 = vpack.c.b16 %v1615, %v1610
        %v1676 = vpack.c.b16 %v1616, %v1611
        %v1677 = vpack.c.b16 %v1622, %v1617
        %v1678 = vpack.c.b16 %v1623, %v1618
        %v1679 = vpack.c.b16 %v1624, %v1619
        %v1680 = vpack.c.b16 %v1625, %v1620
        %v1681 = vpack.c.b16 %v1626, %v1621
        %v1682 = vpack.c.b16 %v1632, %v1627
        %v1683 = vpack.c.b16 %v1633, %v1628
        %v1684 = vpack.c.b16 %v1634, %v1629
        %v1685 = vpack.c.b16 %v1635, %v1630
        %v1686 = vpack.c.b16 %v1636, %v1631
        %v1687 = vpack.c.b16 %v1642, %v1637
        %v1688 = vpack.c.b16 %v1643, %v1638
        %v1689 = vpack.c.b16 %v1644, %v1639
        %v1690 = vpack.c.b16 %v1645, %v1640
        %v1691 = vpack.c.b16 %v1646, %v1641
        %v1692 = vpack.c.b16 %v1652, %v1647
        %v1693 = vpack.c.b16 %v1653, %v1648
        %v1694 = vpack.c.b16 %v1654, %v1649
        %v1695 = vpack.c.b16 %v1655, %v1650
        %v1696 = vpack.c.b16 %v1656, %v1651
        %v1817 = vunpack.c.l.b16 %v426
        %v1818 = vunpack.c.l.b16 %v427
        %v1819 = vunpack.c.l.b16 %v428
        %v1820 = vunpack.c.l.b16 %v429
        %v1821 = vunpack.c.l.b16 %v430
        %v1822 = vunpack.c.l.b16 %v431
        %v1823 = vunpack.c.l.b16 %v432
        %v1824 = vunpack.c.l.b16 %v433
        %v1825 = vunpack.c.l.b16 %v434
        %v1826 = vunpack.c.l.b16 %v435
        %v1827 = vunpack.c.l.b16 %v436
        %v1828 = vunpack.c.l.b16 %v437
        %v1829 = vunpack.c.l.b16 %v438
        %v1830 = vunpack.c.l.b16 %v439
        %v1831 = vunpack.c.l.b16 %v440
        %v1832 = vunpack.c.l.b16 %v441
        %v1833 = vunpack.c.l.b16 %v442
        %v1834 = vunpack.c.l.b16 %v443
        %v1835 = vunpack.c.l.b16 %v444
        %v1836 = vunpack.c.l.b16 %v445
        %v1837 = vunpack.c.l.b16 %v446
        %v1838 = vunpack.c.l.b16 %v447
        %v1839 = vunpack.c.l.b16 %v448
        %v1840 = vunpack.c.l.b16 %v449
        %v1841 = vunpack.c.l.b16 %v450
        %v1842 = vunpack.c.l.b16 %v451
        %v1843 = vunpack.c.l.b16 %v452
        %v1844 = vunpack.c.l.b16 %v453
        %v1845 = vunpack.c.l.b16 %v454
        %v1846 = vunpack.c.l.b16 %v455
        %v1847 = vunpack.c.l.b16 %v456
        %v1848 = vunpack.c.l.b16 %v457
        %v1849 = vunpack.c.l.b16 %v458
        %v1850 = vunpack.c.l.b16 %v459
        %v1851 = vunpack.c.l.b16 %v460
        %v1852 = vunpack.c.l.b16 %v461
        %v1853 = vunpack.c.l.b16 %v462
        %v1854 = vunpack.c.l.b16 %v463
        %v1855 = vunpack.c.l.b16 %v464
        %v1856 = vunpack.c.l.b16 %v465
        %v1857 = vunpack.c.l.b16 %v466
        %v1858 = vunpack.c.l.b16 %v467
        %v1859 = vunpack.c.l.b16 %v468
        %v1860 = vunpack.c.l.b16 %v469
        %v1861 = vunpack.c.l.b16 %v470
        %v1862 = vunpack.c.l.b16 %v471
        %v1863 = vunpack.c.l.b16 %v472
        %v1864 = vunpack.c.l.b16 %v473
        %v1865 = vunpack.c.l.b16 %v474
        %v1866 = vunpack.c.l.b16 %v475
        %v1867 = vunpack.c.l.b16 %v476
        %v1868 = vunpack.c.l.b16 %v477
        %v1869 = vunpack.c.l.b16 %v478
        %v1870 = vunpack.c.l.b16 %v479
        %v1871 = vunpack.c.l.b16 %v480
        %v1872 = vunpack.c.l.b16 %v481
        %v1873 = vunpack.c.l.b16 %v482
        %v1874 = vunpack.c.l.b16 %v483
        %v1875 = vunpack.c.l.b16 %v484
        %v1876 = vunpack.c.l.b16 %v485
        %v1877 = vunpack.c.l.b16 %v486
        %v1878 = vunpack.c.l.b16 %v487
        %v1879 = vunpack.c.l.b16 %v488
        %v1880 = vunpack.c.l.b16 %v489
        %v1881 = vunpack.c.l.b16 %v490
        %v1882 = vunpack.c.l.b16 %v491
        %v1883 = vunpack.c.l.b16 %v492
        %v1884 = vunpack.c.l.b16 %v493
        %v1885 = vunpack.c.l.b16 %v494
        %v1886 = vunpack.c.l.b16 %v495
        %v1887 = vunpack.c.l.b16 %v496
        %v1888 = vunpack.c.l.b16 %v497
        %v1889 = vunpack.c.l.b16 %v498
        %v1890 = vunpack.c.l.b16 %v499
        %v1891 = vunpack.c.l.b16 %v500
        %v1892 = vunpack.c.l.b16 %v501
        %v1893 = vunpack.c.l.b16 %v502
        %v1894 = vunpack.c.l.b16 %v503
        %v1895 = vunpack.c.l.b16 %v504
        %v1896 = vunpack.c.l.b16 %v505
        %v1897 = vpack.c.b16 %v1818, %v1817
        %v1898 = vpack.c.b16 %v1820, %v1819
        %v1899 = vpack.c.b16 %v1822, %v1821
        %v1900 = vpack.c.b16 %v1824, %v1823
        %v1901 = vpack.c.b16 %v1826, %v1825
        %v1902 = vpack.c.b16 %v1828, %v1827
        %v1903 = vpack.c.b16 %v1830, %v1829
        %v1904 = vpack.c.b16 %v1832, %v1831
        %v1905 = vpack.c.b16 %v1834, %v1833
        %v1906 = vpack.c.b16 %v1836, %v1835
        %v1907 = vpack.c.b16 %v1838, %v1837
        %v1908 = vpack.c.b16 %v1840, %v1839
        %v1909 = vpack.c.b16 %v1842, %v1841
        %v1910 = vpack.c.b16 %v1844, %v1843
        %v1911 = vpack.c.b16 %v1846, %v1845
        %v1912 = vpack.c.b16 %v1848, %v1847
        %v1913 = vpack.c.b16 %v1850, %v1849
        %v1914 = vpack.c.b16 %v1852, %v1851
        %v1915 = vpack.c.b16 %v1854, %v1853
        %v1916 = vpack.c.b16 %v1856, %v1855
        %v1917 = vpack.c.b16 %v1858, %v1857
        %v1918 = vpack.c.b16 %v1860, %v1859
        %v1919 = vpack.c.b16 %v1862, %v1861
        %v1920 = vpack.c.b16 %v1864, %v1863
        %v1921 = vpack.c.b16 %v1866, %v1865
        %v1922 = vpack.c.b16 %v1868, %v1867
        %v1923 = vpack.c.b16 %v1870, %v1869
        %v1924 = vpack.c.b16 %v1872, %v1871
        %v1925 = vpack.c.b16 %v1874, %v1873
        %v1926 = vpack.c.b16 %v1876, %v1875
        %v1927 = vpack.c.b16 %v1878, %v1877
        %v1928 = vpack.c.b16 %v1880, %v1879
        %v1929 = vpack.c.b16 %v1882, %v1881
        %v1930 = vpack.c.b16 %v1884, %v1883
        %v1931 = vpack.c.b16 %v1886, %v1885
        %v1932 = vpack.c.b16 %v1888, %v1887
        %v1933 = vpack.c.b16 %v1890, %v1889
        %v1934 = vpack.c.b16 %v1892, %v1891
        %v1935 = vpack.c.b16 %v1894, %v1893
        %v1936 = vpack.c.b16 %v1896, %v1895
        %1977 = vmatpush.bf16.msra.mxu0 %v1904
        %1978 = vmatpush.bf16.msra.mxu0 %v1903
        %1979 = vmatpush.bf16.msra.mxu0 %v1902
        %1980 = vmatpush.bf16.msra.mxu0 %v1901
        %1981 = vmatpush.bf16.msra.mxu0 %v1900
        %1982 = vmatpush.bf16.msra.mxu0 %v1899
        %1983 = vmatpush.bf16.msra.mxu0 %v1898
        %1984 = vmatpush.bf16.msra.mxu0 %v1897
        %1985 = vmatmul.bf16.gmra.mxu0 %v1657
        %v1986 = vpop.f32.mrf.mxu0
        %v1987 = vadd.f32 %v985, %v1986
        %v1988 = vpop.f32.mrf.mxu0
        %v1989 = vadd.f32 %v986, %v1988
        %1990 = vmatmul.bf16.gmra.mxu0 %v1662
        %v1991 = vpop.f32.mrf.mxu0
        %v1992 = vadd.f32 %v987, %v1991
        %v1993 = vpop.f32.mrf.mxu0
        %v1994 = vadd.f32 %v988, %v1993
        %1995 = vmatmul.bf16.gmra.mxu0 %v1667
        %v1996 = vpop.f32.mrf.mxu0
        %v1997 = vadd.f32 %v989, %v1996
        %v1998 = vpop.f32.mrf.mxu0
        %v1999 = vadd.f32 %v990, %v1998
        %2000 = vmatmul.bf16.gmra.mxu0 %v1672
        %v2001 = vpop.f32.mrf.mxu0
        %v2002 = vadd.f32 %v991, %v2001
        %v2003 = vpop.f32.mrf.mxu0
        %v2004 = vadd.f32 %v992, %v2003
        %2005 = vmatmul.bf16.gmra.mxu0 %v1677
        %v2006 = vpop.f32.mrf.mxu0
        %v2007 = vadd.f32 %v993, %v2006
        %v2008 = vpop.f32.mrf.mxu0
        %v2009 = vadd.f32 %v994, %v2008
        %2010 = vmatmul.bf16.gmra.mxu0 %v1682
        %v2011 = vpop.f32.mrf.mxu0
        %v2012 = vadd.f32 %v995, %v2011
        %v2013 = vpop.f32.mrf.mxu0
        %v2014 = vadd.f32 %v996, %v2013
        %2015 = vmatmul.bf16.gmra.mxu0 %v1687
        %v2016 = vpop.f32.mrf.mxu0
        %v2017 = vadd.f32 %v997, %v2016
        %v2018 = vpop.f32.mrf.mxu0
        %v2019 = vadd.f32 %v998, %v2018
        %2020 = vmatmul.bf16.gmra.mxu0 %v1692
        %v2021 = vpop.f32.mrf.mxu0
        %v2022 = vadd.f32 %v999, %v2021
        %v2023 = vpop.f32.mrf.mxu0
        %v2024 = vadd.f32 %v1000, %v2023
        %2025 = vdwg.mxu0
        %2026 = vmatpush.bf16.msra.mxu0 %v1912
        %2027 = vmatpush.bf16.msra.mxu0 %v1911
        %2028 = vmatpush.bf16.msra.mxu0 %v1910
        %2029 = vmatpush.bf16.msra.mxu0 %v1909
        %2030 = vmatpush.bf16.msra.mxu0 %v1908
        %2031 = vmatpush.bf16.msra.mxu0 %v1907
        %2032 = vmatpush.bf16.msra.mxu0 %v1906
        %2033 = vmatpush.bf16.msra.mxu0 %v1905
        %2034 = vmatmul.bf16.gmra.mxu0 %v1658
        %v2035 = vpop.f32.mrf.mxu0
        %v2036 = vadd.f32 %v1987, %v2035
        %v2037 = vpop.f32.mrf.mxu0
        %v2038 = vadd.f32 %v1989, %v2037
        %2039 = vmatmul.bf16.gmra.mxu0 %v1663
        %v2040 = vpop.f32.mrf.mxu0
        %v2041 = vadd.f32 %v1992, %v2040
        %v2042 = vpop.f32.mrf.mxu0
        %v2043 = vadd.f32 %v1994, %v2042
        %2044 = vmatmul.bf16.gmra.mxu0 %v1668
        %v2045 = vpop.f32.mrf.mxu0
        %v2046 = vadd.f32 %v1997, %v2045
        %v2047 = vpop.f32.mrf.mxu0
        %v2048 = vadd.f32 %v1999, %v2047
        %2049 = vmatmul.bf16.gmra.mxu0 %v1673
        %v2050 = vpop.f32.mrf.mxu0
        %v2051 = vadd.f32 %v2002, %v2050
        %v2052 = vpop.f32.mrf.mxu0
        %v2053 = vadd.f32 %v2004, %v2052
        %2054 = vmatmul.bf16.gmra.mxu0 %v1678
        %v2055 = vpop.f32.mrf.mxu0
        %v2056 = vadd.f32 %v2007, %v2055
        %v2057 = vpop.f32.mrf.mxu0
        %v2058 = vadd.f32 %v2009, %v2057
        %2059 = vmatmul.bf16.gmra.mxu0 %v1683
        %v2060 = vpop.f32.mrf.mxu0
        %v2061 = vadd.f32 %v2012, %v2060
        %v2062 = vpop.f32.mrf.mxu0
        %v2063 = vadd.f32 %v2014, %v2062
        %2064 = vmatmul.bf16.gmra.mxu0 %v1688
        %v2065 = vpop.f32.mrf.mxu0
        %v2066 = vadd.f32 %v2017, %v2065
        %v2067 = vpop.f32.mrf.mxu0
        %v2068 = vadd.f32 %v2019, %v2067
        %2069 = vmatmul.bf16.gmra.mxu0 %v1693
        %v2070 = vpop.f32.mrf.mxu0
        %v2071 = vadd.f32 %v2022, %v2070
        %v2072 = vpop.f32.mrf.mxu0
        %v2073 = vadd.f32 %v2024, %v2072
        %2074 = vdwg.mxu0
        %2075 = vmatpush.bf16.msra.mxu0 %v1920
        %2076 = vmatpush.bf16.msra.mxu0 %v1919
        %2077 = vmatpush.bf16.msra.mxu0 %v1918
        %2078 = vmatpush.bf16.msra.mxu0 %v1917
        %2079 = vmatpush.bf16.msra.mxu0 %v1916
        %2080 = vmatpush.bf16.msra.mxu0 %v1915
        %2081 = vmatpush.bf16.msra.mxu0 %v1914
        %2082 = vmatpush.bf16.msra.mxu0 %v1913
        %2083 = vmatmul.bf16.gmra.mxu0 %v1659
        %v2084 = vpop.f32.mrf.mxu0
        %v2085 = vadd.f32 %v2036, %v2084
        %v2086 = vpop.f32.mrf.mxu0
        %v2087 = vadd.f32 %v2038, %v2086
        %2088 = vmatmul.bf16.gmra.mxu0 %v1664
        %v2089 = vpop.f32.mrf.mxu0
        %v2090 = vadd.f32 %v2041, %v2089
        %v2091 = vpop.f32.mrf.mxu0
        %v2092 = vadd.f32 %v2043, %v2091
        %2093 = vmatmul.bf16.gmra.mxu0 %v1669
        %v2094 = vpop.f32.mrf.mxu0
        %v2095 = vadd.f32 %v2046, %v2094
        %v2096 = vpop.f32.mrf.mxu0
        %v2097 = vadd.f32 %v2048, %v2096
        %2098 = vmatmul.bf16.gmra.mxu0 %v1674
        %v2099 = vpop.f32.mrf.mxu0
        %v2100 = vadd.f32 %v2051, %v2099
        %v2101 = vpop.f32.mrf.mxu0
        %v2102 = vadd.f32 %v2053, %v2101
        %2103 = vmatmul.bf16.gmra.mxu0 %v1679
        %v2104 = vpop.f32.mrf.mxu0
        %v2105 = vadd.f32 %v2056, %v2104
        %v2106 = vpop.f32.mrf.mxu0
        %v2107 = vadd.f32 %v2058, %v2106
        %2108 = vmatmul.bf16.gmra.mxu0 %v1684
        %v2109 = vpop.f32.mrf.mxu0
        %v2110 = vadd.f32 %v2061, %v2109
        %v2111 = vpop.f32.mrf.mxu0
        %v2112 = vadd.f32 %v2063, %v2111
        %2113 = vmatmul.bf16.gmra.mxu0 %v1689
        %v2114 = vpop.f32.mrf.mxu0
        %v2115 = vadd.f32 %v2066, %v2114
        %v2116 = vpop.f32.mrf.mxu0
        %v2117 = vadd.f32 %v2068, %v2116
        %2118 = vmatmul.bf16.gmra.mxu0 %v1694
        %v2119 = vpop.f32.mrf.mxu0
        %v2120 = vadd.f32 %v2071, %v2119
        %v2121 = vpop.f32.mrf.mxu0
        %v2122 = vadd.f32 %v2073, %v2121
        %2123 = vdwg.mxu0
        %2124 = vmatpush.bf16.msra.mxu0 %v1928
        %2125 = vmatpush.bf16.msra.mxu0 %v1927
        %2126 = vmatpush.bf16.msra.mxu0 %v1926
        %2127 = vmatpush.bf16.msra.mxu0 %v1925
        %2128 = vmatpush.bf16.msra.mxu0 %v1924
        %2129 = vmatpush.bf16.msra.mxu0 %v1923
        %2130 = vmatpush.bf16.msra.mxu0 %v1922
        %2131 = vmatpush.bf16.msra.mxu0 %v1921
        %2132 = vmatmul.bf16.gmra.mxu0 %v1660
        %v2133 = vpop.f32.mrf.mxu0
        %v2134 = vadd.f32 %v2085, %v2133
        %v2135 = vpop.f32.mrf.mxu0
        %v2136 = vadd.f32 %v2087, %v2135
        %2137 = vmatmul.bf16.gmra.mxu0 %v1665
        %v2138 = vpop.f32.mrf.mxu0
        %v2139 = vadd.f32 %v2090, %v2138
        %v2140 = vpop.f32.mrf.mxu0
        %v2141 = vadd.f32 %v2092, %v2140
        %2142 = vmatmul.bf16.gmra.mxu0 %v1670
        %v2143 = vpop.f32.mrf.mxu0
        %v2144 = vadd.f32 %v2095, %v2143
        %v2145 = vpop.f32.mrf.mxu0
        %v2146 = vadd.f32 %v2097, %v2145
        %2147 = vmatmul.bf16.gmra.mxu0 %v1675
        %v2148 = vpop.f32.mrf.mxu0
        %v2149 = vadd.f32 %v2100, %v2148
        %v2150 = vpop.f32.mrf.mxu0
        %v2151 = vadd.f32 %v2102, %v2150
        %2152 = vmatmul.bf16.gmra.mxu0 %v1680
        %v2153 = vpop.f32.mrf.mxu0
        %v2154 = vadd.f32 %v2105, %v2153
        %v2155 = vpop.f32.mrf.mxu0
        %v2156 = vadd.f32 %v2107, %v2155
        %2157 = vmatmul.bf16.gmra.mxu0 %v1685
        %v2158 = vpop.f32.mrf.mxu0
        %v2159 = vadd.f32 %v2110, %v2158
        %v2160 = vpop.f32.mrf.mxu0
        %v2161 = vadd.f32 %v2112, %v2160
        %2162 = vmatmul.bf16.gmra.mxu0 %v1690
        %v2163 = vpop.f32.mrf.mxu0
        %v2164 = vadd.f32 %v2115, %v2163
        %v2165 = vpop.f32.mrf.mxu0
        %v2166 = vadd.f32 %v2117, %v2165
        %2167 = vmatmul.bf16.gmra.mxu0 %v1695
        %v2168 = vpop.f32.mrf.mxu0
        %v2169 = vadd.f32 %v2120, %v2168
        %v2170 = vpop.f32.mrf.mxu0
        %v2171 = vadd.f32 %v2122, %v2170
        %2172 = vdwg.mxu0
        %2173 = vmatpush.bf16.msra.mxu0 %v1936
        %2174 = vmatpush.bf16.msra.mxu0 %v1935
        %2175 = vmatpush.bf16.msra.mxu0 %v1934
        %2176 = vmatpush.bf16.msra.mxu0 %v1933
        %2177 = vmatpush.bf16.msra.mxu0 %v1932
        %2178 = vmatpush.bf16.msra.mxu0 %v1931
        %2179 = vmatpush.bf16.msra.mxu0 %v1930
        %2180 = vmatpush.bf16.msra.mxu0 %v1929
        %2181 = vmatmul.bf16.gmra.mxu0 %v1661
        %v2182 = vpop.f32.mrf.mxu0
        %v2183 = vadd.f32 %v2134, %v2182
        %v2184 = vpop.f32.mrf.mxu0
        %v2185 = vadd.f32 %v2136, %v2184
        %2186 = vmatmul.bf16.gmra.mxu0 %v1666
        %v2187 = vpop.f32.mrf.mxu0
        %v2188 = vadd.f32 %v2139, %v2187
        %v2189 = vpop.f32.mrf.mxu0
        %v2190 = vadd.f32 %v2141, %v2189
        %2191 = vmatmul.bf16.gmra.mxu0 %v1671
        %v2192 = vpop.f32.mrf.mxu0
        %v2193 = vadd.f32 %v2144, %v2192
        %v2194 = vpop.f32.mrf.mxu0
        %v2195 = vadd.f32 %v2146, %v2194
        %2196 = vmatmul.bf16.gmra.mxu0 %v1676
        %v2197 = vpop.f32.mrf.mxu0
        %v2198 = vadd.f32 %v2149, %v2197
        %v2199 = vpop.f32.mrf.mxu0
        %v2200 = vadd.f32 %v2151, %v2199
        %2201 = vmatmul.bf16.gmra.mxu0 %v1681
        %v2202 = vpop.f32.mrf.mxu0
        %v2203 = vadd.f32 %v2154, %v2202
        %v2204 = vpop.f32.mrf.mxu0
        %v2205 = vadd.f32 %v2156, %v2204
        %2206 = vmatmul.bf16.gmra.mxu0 %v1686
        %v2207 = vpop.f32.mrf.mxu0
        %v2208 = vadd.f32 %v2159, %v2207
        %v2209 = vpop.f32.mrf.mxu0
        %v2210 = vadd.f32 %v2161, %v2209
        %2211 = vmatmul.bf16.gmra.mxu0 %v1691
        %v2212 = vpop.f32.mrf.mxu0
        %v2213 = vadd.f32 %v2164, %v2212
        %v2214 = vpop.f32.mrf.mxu0
        %v2215 = vadd.f32 %v2166, %v2214
        %2216 = vmatmul.bf16.gmra.mxu0 %v1696
        %v2217 = vpop.f32.mrf.mxu0
        %v2218 = vadd.f32 %v2169, %v2217
        %v2219 = vpop.f32.mrf.mxu0
        %v2220 = vadd.f32 %v2171, %v2219
        %2221 = vdwg.mxu0
        %v2222 = vpack.c.bf16 %v2185, %v2183
        %v2223 = vpack.c.bf16 %v2190, %v2188
        %v2224 = vpack.c.bf16 %v2195, %v2193
        %v2225 = vpack.c.bf16 %v2200, %v2198
        %v2226 = vpack.c.bf16 %v2205, %v2203
        %v2227 = vpack.c.bf16 %v2210, %v2208
        %v2228 = vpack.c.bf16 %v2215, %v2213
        %v2229 = vpack.c.bf16 %v2220, %v2218
        %v2231 = vperm.slane %v422, 0
        %v2232 = vperm.slane %v422, 1
        %v2233 = vperm.slane %v422, 2
        %v2234 = vperm.slane %v422, 3
        %v2271 = vunpack.c.l.b16 %v509
        %v2272 = vunpack.c.h.b16 %v509
        %v2273 = vunpack.c.l.b16 %v510
        %v2274 = vunpack.c.h.b16 %v510
        %v2275 = vunpack.c.l.b16 %v511
        %v2276 = vunpack.c.h.b16 %v511
        %v2277 = vunpack.c.l.b16 %v512
        %v2278 = vunpack.c.h.b16 %v512
        %v2279 = vunpack.c.l.b16 %v513
        %v2280 = vunpack.c.h.b16 %v513
        %v2281 = vunpack.c.l.b16 %v514
        %v2282 = vunpack.c.h.b16 %v514
        %v2283 = vunpack.c.l.b16 %v515
        %v2284 = vunpack.c.h.b16 %v515
        %v2285 = vunpack.c.l.b16 %v516
        %v2286 = vunpack.c.h.b16 %v516
        %v2287 = vunpack.c.l.b16 %v517
        %v2288 = vunpack.c.h.b16 %v517
        %v2289 = vunpack.c.l.b16 %v518
        %v2290 = vunpack.c.h.b16 %v518
        %v2291 = vunpack.c.l.b16 %v519
        %v2292 = vunpack.c.h.b16 %v519
        %v2293 = vunpack.c.l.b16 %v520
        %v2294 = vunpack.c.h.b16 %v520
        %v2295 = vunpack.c.l.b16 %v521
        %v2296 = vunpack.c.h.b16 %v521
        %v2297 = vunpack.c.l.b16 %v522
        %v2298 = vunpack.c.h.b16 %v522
        %v2299 = vunpack.c.l.b16 %v523
        %v2300 = vunpack.c.h.b16 %v523
        %v2301 = vunpack.c.l.b16 %v524
        %v2302 = vunpack.c.h.b16 %v524
        %v2303 = vunpack.c.l.b16 %v525
        %v2304 = vunpack.c.h.b16 %v525
        %v2305 = vunpack.c.l.b16 %v526
        %v2306 = vunpack.c.h.b16 %v526
        %v2307 = vunpack.c.l.b16 %v527
        %v2308 = vunpack.c.h.b16 %v527
        %v2309 = vunpack.c.l.b16 %v528
        %v2310 = vunpack.c.h.b16 %v528
        %v2311 = vunpack.c.l.b16 %v529
        %v2312 = vunpack.c.h.b16 %v529
        %v2313 = vunpack.c.l.b16 %v530
        %v2314 = vunpack.c.h.b16 %v530
        %v2315 = vunpack.c.l.b16 %v531
        %v2316 = vunpack.c.h.b16 %v531
        %v2317 = vunpack.c.l.b16 %v532
        %v2318 = vunpack.c.h.b16 %v532
        %v2319 = vunpack.c.l.b16 %v533
        %v2320 = vunpack.c.h.b16 %v533
        %v2321 = vunpack.c.l.b16 %v534
        %v2322 = vunpack.c.h.b16 %v534
        %v2323 = vunpack.c.l.b16 %v535
        %v2324 = vunpack.c.h.b16 %v535
        %v2325 = vunpack.c.l.b16 %v536
        %v2326 = vunpack.c.h.b16 %v536
        %v2327 = vunpack.c.l.b16 %v537
        %v2328 = vunpack.c.h.b16 %v537
        %v2329 = vunpack.c.l.b16 %v538
        %v2330 = vunpack.c.h.b16 %v538
        %v2331 = vunpack.c.l.b16 %v539
        %v2332 = vunpack.c.h.b16 %v539
        %v2333 = vunpack.c.l.b16 %v540
        %v2334 = vunpack.c.h.b16 %v540
        %v2335 = vpack.c.b16 %v2275, %v2271
        %v2336 = vpack.c.b16 %v2276, %v2272
        %v2337 = vpack.c.b16 %v2277, %v2273
        %v2338 = vpack.c.b16 %v2278, %v2274
        %v2339 = vpack.c.b16 %v2283, %v2279
        %v2340 = vpack.c.b16 %v2284, %v2280
        %v2341 = vpack.c.b16 %v2285, %v2281
        %v2342 = vpack.c.b16 %v2286, %v2282
        %v2343 = vpack.c.b16 %v2291, %v2287
        %v2344 = vpack.c.b16 %v2292, %v2288
        %v2345 = vpack.c.b16 %v2293, %v2289
        %v2346 = vpack.c.b16 %v2294, %v2290
        %v2347 = vpack.c.b16 %v2299, %v2295
        %v2348 = vpack.c.b16 %v2300, %v2296
        %v2349 = vpack.c.b16 %v2301, %v2297
        %v2350 = vpack.c.b16 %v2302, %v2298
        %v2351 = vpack.c.b16 %v2307, %v2303
        %v2352 = vpack.c.b16 %v2308, %v2304
        %v2353 = vpack.c.b16 %v2309, %v2305
        %v2354 = vpack.c.b16 %v2310, %v2306
        %v2355 = vpack.c.b16 %v2315, %v2311
        %v2356 = vpack.c.b16 %v2316, %v2312
        %v2357 = vpack.c.b16 %v2317, %v2313
        %v2358 = vpack.c.b16 %v2318, %v2314
        %v2359 = vpack.c.b16 %v2323, %v2319
        %v2360 = vpack.c.b16 %v2324, %v2320
        %v2361 = vpack.c.b16 %v2325, %v2321
        %v2362 = vpack.c.b16 %v2326, %v2322
        %v2363 = vpack.c.b16 %v2331, %v2327
        %v2364 = vpack.c.b16 %v2332, %v2328
        %v2365 = vpack.c.b16 %v2333, %v2329
        %v2366 = vpack.c.b16 %v2334, %v2330
        %2399 = vmatpush.bf16.msra.mxu0 %v2363
        %2400 = vmatpush.bf16.msra.mxu0 %v2359
        %2401 = vmatpush.bf16.msra.mxu0 %v2355
        %2402 = vmatpush.bf16.msra.mxu0 %v2351
        %2403 = vmatpush.bf16.msra.mxu0 %v2347
        %2404 = vmatpush.bf16.msra.mxu0 %v2343
        %2405 = vmatpush.bf16.msra.mxu0 %v2339
        %2406 = vmatpush.bf16.msra.mxu0 %v2335
        %2407 = vmatmul.bf16.gmra.mxu0 %v2222
        %v2408 = vpop.f32.mrf.mxu0
        %v2409 = vadd.f32 %v2231, %v2408
        %v2410 = vpop.f32.mrf.mxu0
        %v2411 = vadd.f32 %v2231, %v2410
        %2412 = vmatmul.bf16.gmra.mxu0 %v2223
        %v2413 = vpop.f32.mrf.mxu0
        %v2414 = vadd.f32 %v2231, %v2413
        %v2415 = vpop.f32.mrf.mxu0
        %v2416 = vadd.f32 %v2231, %v2415
        %2417 = vmatmul.bf16.gmra.mxu0 %v2224
        %v2418 = vpop.f32.mrf.mxu0
        %v2419 = vadd.f32 %v2231, %v2418
        %v2420 = vpop.f32.mrf.mxu0
        %v2421 = vadd.f32 %v2231, %v2420
        %2422 = vmatmul.bf16.gmra.mxu0 %v2225
        %v2423 = vpop.f32.mrf.mxu0
        %v2424 = vadd.f32 %v2231, %v2423
        %v2425 = vpop.f32.mrf.mxu0
        %v2426 = vadd.f32 %v2231, %v2425
        %2427 = vmatmul.bf16.gmra.mxu0 %v2226
        %v2428 = vpop.f32.mrf.mxu0
        %v2429 = vadd.f32 %v2231, %v2428
        %v2430 = vpop.f32.mrf.mxu0
        %v2431 = vadd.f32 %v2231, %v2430
        %2432 = vmatmul.bf16.gmra.mxu0 %v2227
        %v2433 = vpop.f32.mrf.mxu0
        %v2434 = vadd.f32 %v2231, %v2433
        %v2435 = vpop.f32.mrf.mxu0
        %v2436 = vadd.f32 %v2231, %v2435
        %2437 = vmatmul.bf16.gmra.mxu0 %v2228
        %v2438 = vpop.f32.mrf.mxu0
        %v2439 = vadd.f32 %v2231, %v2438
        %v2440 = vpop.f32.mrf.mxu0
        %v2441 = vadd.f32 %v2231, %v2440
        %2442 = vmatmul.bf16.gmra.mxu0 %v2229
        %v2443 = vpop.f32.mrf.mxu0
        %v2444 = vadd.f32 %v2231, %v2443
        %v2445 = vpop.f32.mrf.mxu0
        %v2446 = vadd.f32 %v2231, %v2445
        %2447 = vdwg.mxu0
        %2448 = vmatpush.bf16.msra.mxu0 %v2364
        %2449 = vmatpush.bf16.msra.mxu0 %v2360
        %2450 = vmatpush.bf16.msra.mxu0 %v2356
        %2451 = vmatpush.bf16.msra.mxu0 %v2352
        %2452 = vmatpush.bf16.msra.mxu0 %v2348
        %2453 = vmatpush.bf16.msra.mxu0 %v2344
        %2454 = vmatpush.bf16.msra.mxu0 %v2340
        %2455 = vmatpush.bf16.msra.mxu0 %v2336
        %2456 = vmatmul.bf16.gmra.mxu0 %v2222
        %v2457 = vpop.f32.mrf.mxu0
        %v2458 = vadd.f32 %v2232, %v2457
        %v2459 = vpop.f32.mrf.mxu0
        %v2460 = vadd.f32 %v2232, %v2459
        %2461 = vmatmul.bf16.gmra.mxu0 %v2223
        %v2462 = vpop.f32.mrf.mxu0
        %v2463 = vadd.f32 %v2232, %v2462
        %v2464 = vpop.f32.mrf.mxu0
        %v2465 = vadd.f32 %v2232, %v2464
        %2466 = vmatmul.bf16.gmra.mxu0 %v2224
        %v2467 = vpop.f32.mrf.mxu0
        %v2468 = vadd.f32 %v2232, %v2467
        %v2469 = vpop.f32.mrf.mxu0
        %v2470 = vadd.f32 %v2232, %v2469
        %2471 = vmatmul.bf16.gmra.mxu0 %v2225
        %v2472 = vpop.f32.mrf.mxu0
        %v2473 = vadd.f32 %v2232, %v2472
        %v2474 = vpop.f32.mrf.mxu0
        %v2475 = vadd.f32 %v2232, %v2474
        %2476 = vmatmul.bf16.gmra.mxu0 %v2226
        %v2477 = vpop.f32.mrf.mxu0
        %v2478 = vadd.f32 %v2232, %v2477
        %v2479 = vpop.f32.mrf.mxu0
        %v2480 = vadd.f32 %v2232, %v2479
        %2481 = vmatmul.bf16.gmra.mxu0 %v2227
        %v2482 = vpop.f32.mrf.mxu0
        %v2483 = vadd.f32 %v2232, %v2482
        %v2484 = vpop.f32.mrf.mxu0
        %v2485 = vadd.f32 %v2232, %v2484
        %2486 = vmatmul.bf16.gmra.mxu0 %v2228
        %v2487 = vpop.f32.mrf.mxu0
        %v2488 = vadd.f32 %v2232, %v2487
        %v2489 = vpop.f32.mrf.mxu0
        %v2490 = vadd.f32 %v2232, %v2489
        %2491 = vmatmul.bf16.gmra.mxu0 %v2229
        %v2492 = vpop.f32.mrf.mxu0
        %v2493 = vadd.f32 %v2232, %v2492
        %v2494 = vpop.f32.mrf.mxu0
        %v2495 = vadd.f32 %v2232, %v2494
        %2496 = vdwg.mxu0
        %2497 = vmatpush.bf16.msra.mxu0 %v2365
        %2498 = vmatpush.bf16.msra.mxu0 %v2361
        %2499 = vmatpush.bf16.msra.mxu0 %v2357
        %2500 = vmatpush.bf16.msra.mxu0 %v2353
        %2501 = vmatpush.bf16.msra.mxu0 %v2349
        %2502 = vmatpush.bf16.msra.mxu0 %v2345
        %2503 = vmatpush.bf16.msra.mxu0 %v2341
        %2504 = vmatpush.bf16.msra.mxu0 %v2337
        %2505 = vmatmul.bf16.gmra.mxu0 %v2222
        %v2506 = vpop.f32.mrf.mxu0
        %v2507 = vadd.f32 %v2233, %v2506
        %v2508 = vpop.f32.mrf.mxu0
        %v2509 = vadd.f32 %v2233, %v2508
        %2510 = vmatmul.bf16.gmra.mxu0 %v2223
        %v2511 = vpop.f32.mrf.mxu0
        %v2512 = vadd.f32 %v2233, %v2511
        %v2513 = vpop.f32.mrf.mxu0
        %v2514 = vadd.f32 %v2233, %v2513
        %2515 = vmatmul.bf16.gmra.mxu0 %v2224
        %v2516 = vpop.f32.mrf.mxu0
        %v2517 = vadd.f32 %v2233, %v2516
        %v2518 = vpop.f32.mrf.mxu0
        %v2519 = vadd.f32 %v2233, %v2518
        %2520 = vmatmul.bf16.gmra.mxu0 %v2225
        %v2521 = vpop.f32.mrf.mxu0
        %v2522 = vadd.f32 %v2233, %v2521
        %v2523 = vpop.f32.mrf.mxu0
        %v2524 = vadd.f32 %v2233, %v2523
        %2525 = vmatmul.bf16.gmra.mxu0 %v2226
        %v2526 = vpop.f32.mrf.mxu0
        %v2527 = vadd.f32 %v2233, %v2526
        %v2528 = vpop.f32.mrf.mxu0
        %v2529 = vadd.f32 %v2233, %v2528
        %2530 = vmatmul.bf16.gmra.mxu0 %v2227
        %v2531 = vpop.f32.mrf.mxu0
        %v2532 = vadd.f32 %v2233, %v2531
        %v2533 = vpop.f32.mrf.mxu0
        %v2534 = vadd.f32 %v2233, %v2533
        %2535 = vmatmul.bf16.gmra.mxu0 %v2228
        %v2536 = vpop.f32.mrf.mxu0
        %v2537 = vadd.f32 %v2233, %v2536
        %v2538 = vpop.f32.mrf.mxu0
        %v2539 = vadd.f32 %v2233, %v2538
        %2540 = vmatmul.bf16.gmra.mxu0 %v2229
        %v2541 = vpop.f32.mrf.mxu0
        %v2542 = vadd.f32 %v2233, %v2541
        %v2543 = vpop.f32.mrf.mxu0
        %v2544 = vadd.f32 %v2233, %v2543
        %2545 = vdwg.mxu0
        %2546 = vmatpush.bf16.msra.mxu0 %v2366
        %2547 = vmatpush.bf16.msra.mxu0 %v2362
        %2548 = vmatpush.bf16.msra.mxu0 %v2358
        %2549 = vmatpush.bf16.msra.mxu0 %v2354
        %2550 = vmatpush.bf16.msra.mxu0 %v2350
        %2551 = vmatpush.bf16.msra.mxu0 %v2346
        %2552 = vmatpush.bf16.msra.mxu0 %v2342
        %2553 = vmatpush.bf16.msra.mxu0 %v2338
        %2554 = vmatmul.bf16.gmra.mxu0 %v2222
        %v2555 = vpop.f32.mrf.mxu0
        %v2556 = vadd.f32 %v2234, %v2555
        %v2557 = vpop.f32.mrf.mxu0
        %v2558 = vadd.f32 %v2234, %v2557
        %2559 = vmatmul.bf16.gmra.mxu0 %v2223
        %v2560 = vpop.f32.mrf.mxu0
        %v2561 = vadd.f32 %v2234, %v2560
        %v2562 = vpop.f32.mrf.mxu0
        %v2563 = vadd.f32 %v2234, %v2562
        %2564 = vmatmul.bf16.gmra.mxu0 %v2224
        %v2565 = vpop.f32.mrf.mxu0
        %v2566 = vadd.f32 %v2234, %v2565
        %v2567 = vpop.f32.mrf.mxu0
        %v2568 = vadd.f32 %v2234, %v2567
        %2569 = vmatmul.bf16.gmra.mxu0 %v2225
        %v2570 = vpop.f32.mrf.mxu0
        %v2571 = vadd.f32 %v2234, %v2570
        %v2572 = vpop.f32.mrf.mxu0
        %v2573 = vadd.f32 %v2234, %v2572
        %2574 = vmatmul.bf16.gmra.mxu0 %v2226
        %v2575 = vpop.f32.mrf.mxu0
        %v2576 = vadd.f32 %v2234, %v2575
        %v2577 = vpop.f32.mrf.mxu0
        %v2578 = vadd.f32 %v2234, %v2577
        %2579 = vmatmul.bf16.gmra.mxu0 %v2227
        %v2580 = vpop.f32.mrf.mxu0
        %v2581 = vadd.f32 %v2234, %v2580
        %v2582 = vpop.f32.mrf.mxu0
        %v2583 = vadd.f32 %v2234, %v2582
        %2584 = vmatmul.bf16.gmra.mxu0 %v2228
        %v2585 = vpop.f32.mrf.mxu0
        %v2586 = vadd.f32 %v2234, %v2585
        %v2587 = vpop.f32.mrf.mxu0
        %v2588 = vadd.f32 %v2234, %v2587
        %2589 = vmatmul.bf16.gmra.mxu0 %v2229
        %v2590 = vpop.f32.mrf.mxu0
        %v2591 = vadd.f32 %v2234, %v2590
        %v2592 = vpop.f32.mrf.mxu0
        %v2593 = vadd.f32 %v2234, %v2592
        %2594 = vdwg.mxu0
        %v2595 = vpack.c.bf16 %v2458, %v2409
        %v2596 = vpack.c.bf16 %v2556, %v2507
        %v2597 = vpack.c.bf16 %v2460, %v2411
        %v2598 = vpack.c.bf16 %v2558, %v2509
        %v2599 = vpack.c.bf16 %v2463, %v2414
        %v2600 = vpack.c.bf16 %v2561, %v2512
        %v2601 = vpack.c.bf16 %v2465, %v2416
        %v2602 = vpack.c.bf16 %v2563, %v2514
        %v2603 = vpack.c.bf16 %v2468, %v2419
        %v2604 = vpack.c.bf16 %v2566, %v2517
        %v2605 = vpack.c.bf16 %v2470, %v2421
        %v2606 = vpack.c.bf16 %v2568, %v2519
        %v2607 = vpack.c.bf16 %v2473, %v2424
        %v2608 = vpack.c.bf16 %v2571, %v2522
        %v2609 = vpack.c.bf16 %v2475, %v2426
        %v2610 = vpack.c.bf16 %v2573, %v2524
        %v2611 = vpack.c.bf16 %v2478, %v2429
        %v2612 = vpack.c.bf16 %v2576, %v2527
        %v2613 = vpack.c.bf16 %v2480, %v2431
        %v2614 = vpack.c.bf16 %v2578, %v2529
        %v2615 = vpack.c.bf16 %v2483, %v2434
        %v2616 = vpack.c.bf16 %v2581, %v2532
        %v2617 = vpack.c.bf16 %v2485, %v2436
        %v2618 = vpack.c.bf16 %v2583, %v2534
        %v2619 = vpack.c.bf16 %v2488, %v2439
        %v2620 = vpack.c.bf16 %v2586, %v2537
        %v2621 = vpack.c.bf16 %v2490, %v2441
        %v2622 = vpack.c.bf16 %v2588, %v2539
        %v2623 = vpack.c.bf16 %v2493, %v2444
        %v2624 = vpack.c.bf16 %v2591, %v2542
        %v2625 = vpack.c.bf16 %v2495, %v2446
        %v2626 = vpack.c.bf16 %v2593, %v2544
        %v2627 = vxor.u32 %v2595, 2147516416
        %v2628 = vxor.u32 %v2596, 2147516416
        %v2629 = vxor.u32 %v2597, 2147516416
        %v2630 = vxor.u32 %v2598, 2147516416
        %v2631 = vxor.u32 %v2599, 2147516416
        %v2632 = vxor.u32 %v2600, 2147516416
        %v2633 = vxor.u32 %v2601, 2147516416
        %v2634 = vxor.u32 %v2602, 2147516416
        %v2635 = vxor.u32 %v2603, 2147516416
        %v2636 = vxor.u32 %v2604, 2147516416
        %v2637 = vxor.u32 %v2605, 2147516416
        %v2638 = vxor.u32 %v2606, 2147516416
        %v2639 = vxor.u32 %v2607, 2147516416
        %v2640 = vxor.u32 %v2608, 2147516416
        %v2641 = vxor.u32 %v2609, 2147516416
        %v2642 = vxor.u32 %v2610, 2147516416
        %v2643 = vxor.u32 %v2611, 2147516416
        %v2644 = vxor.u32 %v2612, 2147516416
        %v2645 = vxor.u32 %v2613, 2147516416
        %v2646 = vxor.u32 %v2614, 2147516416
        %v2647 = vxor.u32 %v2615, 2147516416
        %v2648 = vxor.u32 %v2616, 2147516416
        %v2649 = vxor.u32 %v2617, 2147516416
        %v2650 = vxor.u32 %v2618, 2147516416
        %v2651 = vxor.u32 %v2619, 2147516416
        %v2652 = vxor.u32 %v2620, 2147516416
        %v2653 = vxor.u32 %v2621, 2147516416
        %v2654 = vxor.u32 %v2622, 2147516416
        %v2655 = vxor.u32 %v2623, 2147516416
        %v2656 = vxor.u32 %v2624, 2147516416
        %v2657 = vxor.u32 %v2625, 2147516416
        %v2658 = vxor.u32 %v2626, 2147516416
        %v2659 = vunpack.c.l.bf16 %v2627
        %v2660 = vunpack.c.h.bf16 %v2627
        %v2661 = vunpack.c.l.bf16 %v2628
        %v2662 = vunpack.c.h.bf16 %v2628
        %v2663 = vunpack.c.l.bf16 %v2629
        %v2664 = vunpack.c.h.bf16 %v2629
        %v2665 = vunpack.c.l.bf16 %v2630
        %v2666 = vunpack.c.h.bf16 %v2630
        %v2667 = vunpack.c.l.bf16 %v2631
        %v2668 = vunpack.c.h.bf16 %v2631
        %v2669 = vunpack.c.l.bf16 %v2632
        %v2670 = vunpack.c.h.bf16 %v2632
        %v2671 = vunpack.c.l.bf16 %v2633
        %v2672 = vunpack.c.h.bf16 %v2633
        %v2673 = vunpack.c.l.bf16 %v2634
        %v2674 = vunpack.c.h.bf16 %v2634
        %v2675 = vunpack.c.l.bf16 %v2635
        %v2676 = vunpack.c.h.bf16 %v2635
        %v2677 = vunpack.c.l.bf16 %v2636
        %v2678 = vunpack.c.h.bf16 %v2636
        %v2679 = vunpack.c.l.bf16 %v2637
        %v2680 = vunpack.c.h.bf16 %v2637
        %v2681 = vunpack.c.l.bf16 %v2638
        %v2682 = vunpack.c.h.bf16 %v2638
        %v2683 = vunpack.c.l.bf16 %v2639
        %v2684 = vunpack.c.h.bf16 %v2639
        %v2685 = vunpack.c.l.bf16 %v2640
        %v2686 = vunpack.c.h.bf16 %v2640
        %v2687 = vunpack.c.l.bf16 %v2641
        %v2688 = vunpack.c.h.bf16 %v2641
        %v2689 = vunpack.c.l.bf16 %v2642
        %v2690 = vunpack.c.h.bf16 %v2642
        %v2691 = vunpack.c.l.bf16 %v2643
        %v2692 = vunpack.c.h.bf16 %v2643
        %v2693 = vunpack.c.l.bf16 %v2644
        %v2694 = vunpack.c.h.bf16 %v2644
        %v2695 = vunpack.c.l.bf16 %v2645
        %v2696 = vunpack.c.h.bf16 %v2645
        %v2697 = vunpack.c.l.bf16 %v2646
        %v2698 = vunpack.c.h.bf16 %v2646
        %v2699 = vunpack.c.l.bf16 %v2647
        %v2700 = vunpack.c.h.bf16 %v2647
        %v2701 = vunpack.c.l.bf16 %v2648
        %v2702 = vunpack.c.h.bf16 %v2648
        %v2703 = vunpack.c.l.bf16 %v2649
        %v2704 = vunpack.c.h.bf16 %v2649
        %v2705 = vunpack.c.l.bf16 %v2650
        %v2706 = vunpack.c.h.bf16 %v2650
        %v2707 = vunpack.c.l.bf16 %v2651
        %v2708 = vunpack.c.h.bf16 %v2651
        %v2709 = vunpack.c.l.bf16 %v2652
        %v2710 = vunpack.c.h.bf16 %v2652
        %v2711 = vunpack.c.l.bf16 %v2653
        %v2712 = vunpack.c.h.bf16 %v2653
        %v2713 = vunpack.c.l.bf16 %v2654
        %v2714 = vunpack.c.h.bf16 %v2654
        %v2715 = vunpack.c.l.bf16 %v2655
        %v2716 = vunpack.c.h.bf16 %v2655
        %v2717 = vunpack.c.l.bf16 %v2656
        %v2718 = vunpack.c.h.bf16 %v2656
        %v2719 = vunpack.c.l.bf16 %v2657
        %v2720 = vunpack.c.h.bf16 %v2657
        %v2721 = vunpack.c.l.bf16 %v2658
        %v2722 = vunpack.c.h.bf16 %v2658
        %v2723 = vmul.f32 %v2659, 1.442695
        %v2724 = vpow.pop %v2723
        %v2725 = vmul.f32 %v2660, 1.442695
        %v2726 = vpow.pop %v2725
        %v2727 = vmul.f32 %v2661, 1.442695
        %v2728 = vpow.pop %v2727
        %v2729 = vmul.f32 %v2662, 1.442695
        %v2730 = vpow.pop %v2729
        %v2731 = vmul.f32 %v2663, 1.442695
        %v2732 = vpow.pop %v2731
        %v2733 = vmul.f32 %v2664, 1.442695
        %v2734 = vpow.pop %v2733
        %v2735 = vmul.f32 %v2665, 1.442695
        %v2736 = vpow.pop %v2735
        %v2737 = vmul.f32 %v2666, 1.442695
        %v2738 = vpow.pop %v2737
        %v2739 = vmul.f32 %v2667, 1.442695
        %v2740 = vpow.pop %v2739
        %v2741 = vmul.f32 %v2668, 1.442695
        %v2742 = vpow.pop %v2741
        %v2743 = vmul.f32 %v2669, 1.442695
        %v2744 = vpow.pop %v2743
        %v2745 = vmul.f32 %v2670, 1.442695
        %v2746 = vpow.pop %v2745
        %v2747 = vmul.f32 %v2671, 1.442695
        %v2748 = vpow.pop %v2747
        %v2749 = vmul.f32 %v2672, 1.442695
        %v2750 = vpow.pop %v2749
        %v2751 = vmul.f32 %v2673, 1.442695
        %v2752 = vpow.pop %v2751
        %v2753 = vmul.f32 %v2674, 1.442695
        %v2754 = vpow.pop %v2753
        %v2755 = vmul.f32 %v2675, 1.442695
        %v2756 = vpow.pop %v2755
        %v2757 = vmul.f32 %v2676, 1.442695
        %v2758 = vpow.pop %v2757
        %v2759 = vmul.f32 %v2677, 1.442695
        %v2760 = vpow.pop %v2759
        %v2761 = vmul.f32 %v2678, 1.442695
        %v2762 = vpow.pop %v2761
        %v2763 = vmul.f32 %v2679, 1.442695
        %v2764 = vpow.pop %v2763
        %v2765 = vmul.f32 %v2680, 1.442695
        %v2766 = vpow.pop %v2765
        %v2767 = vmul.f32 %v2681, 1.442695
        %v2768 = vpow.pop %v2767
        %v2769 = vmul.f32 %v2682, 1.442695
        %v2770 = vpow.pop %v2769
        %v2771 = vmul.f32 %v2683, 1.442695
        %v2772 = vpow.pop %v2771
        %v2773 = vmul.f32 %v2684, 1.442695
        %v2774 = vpow.pop %v2773
        %v2775 = vmul.f32 %v2685, 1.442695
        %v2776 = vpow.pop %v2775
        %v2777 = vmul.f32 %v2686, 1.442695
        %v2778 = vpow.pop %v2777
        %v2779 = vmul.f32 %v2687, 1.442695
        %v2780 = vpow.pop %v2779
        %v2781 = vmul.f32 %v2688, 1.442695
        %v2782 = vpow.pop %v2781
        %v2783 = vmul.f32 %v2689, 1.442695
        %v2784 = vpow.pop %v2783
        %v2785 = vmul.f32 %v2690, 1.442695
        %v2786 = vpow.pop %v2785
        %v2787 = vmul.f32 %v2691, 1.442695
        %v2788 = vpow.pop %v2787
        %v2789 = vmul.f32 %v2692, 1.442695
        %v2790 = vpow.pop %v2789
        %v2791 = vmul.f32 %v2693, 1.442695
        %v2792 = vpow.pop %v2791
        %v2793 = vmul.f32 %v2694, 1.442695
        %v2794 = vpow.pop %v2793
        %v2795 = vmul.f32 %v2695, 1.442695
        %v2796 = vpow.pop %v2795
        %v2797 = vmul.f32 %v2696, 1.442695
        %v2798 = vpow.pop %v2797
        %v2799 = vmul.f32 %v2697, 1.442695
        %v2800 = vpow.pop %v2799
        %v2801 = vmul.f32 %v2698, 1.442695
        %v2802 = vpow.pop %v2801
        %v2803 = vmul.f32 %v2699, 1.442695
        %v2804 = vpow.pop %v2803
        %v2805 = vmul.f32 %v2700, 1.442695
        %v2806 = vpow.pop %v2805
        %v2807 = vmul.f32 %v2701, 1.442695
        %v2808 = vpow.pop %v2807
        %v2809 = vmul.f32 %v2702, 1.442695
        %v2810 = vpow.pop %v2809
        %v2811 = vmul.f32 %v2703, 1.442695
        %v2812 = vpow.pop %v2811
        %v2813 = vmul.f32 %v2704, 1.442695
        %v2814 = vpow.pop %v2813
        %v2815 = vmul.f32 %v2705, 1.442695
        %v2816 = vpow.pop %v2815
        %v2817 = vmul.f32 %v2706, 1.442695
        %v2818 = vpow.pop %v2817
        %v2819 = vmul.f32 %v2707, 1.442695
        %v2820 = vpow.pop %v2819
        %v2821 = vmul.f32 %v2708, 1.442695
        %v2822 = vpow.pop %v2821
        %v2823 = vmul.f32 %v2709, 1.442695
        %v2824 = vpow.pop %v2823
        %v2825 = vmul.f32 %v2710, 1.442695
        %v2826 = vpow.pop %v2825
        %v2827 = vmul.f32 %v2711, 1.442695
        %v2828 = vpow.pop %v2827
        %v2829 = vmul.f32 %v2712, 1.442695
        %v2830 = vpow.pop %v2829
        %v2831 = vmul.f32 %v2713, 1.442695
        %v2832 = vpow.pop %v2831
        %v2833 = vmul.f32 %v2714, 1.442695
        %v2834 = vpow.pop %v2833
        %v2835 = vmul.f32 %v2715, 1.442695
        %v2836 = vpow.pop %v2835
        %v2837 = vmul.f32 %v2716, 1.442695
        %v2838 = vpow.pop %v2837
        %v2839 = vmul.f32 %v2717, 1.442695
        %v2840 = vpow.pop %v2839
        %v2841 = vmul.f32 %v2718, 1.442695
        %v2842 = vpow.pop %v2841
        %v2843 = vmul.f32 %v2719, 1.442695
        %v2844 = vpow.pop %v2843
        %v2845 = vmul.f32 %v2720, 1.442695
        %v2846 = vpow.pop %v2845
        %v2847 = vmul.f32 %v2721, 1.442695
        %v2848 = vpow.pop %v2847
        %v2849 = vmul.f32 %v2722, 1.442695
        %v2850 = vpow.pop %v2849
        %v2851 = vpack.c.bf16 %v2726, %v2724
        %v2852 = vpack.c.bf16 %v2730, %v2728
        %v2853 = vpack.c.bf16 %v2734, %v2732
        %v2854 = vpack.c.bf16 %v2738, %v2736
        %v2855 = vpack.c.bf16 %v2742, %v2740
        %v2856 = vpack.c.bf16 %v2746, %v2744
        %v2857 = vpack.c.bf16 %v2750, %v2748
        %v2858 = vpack.c.bf16 %v2754, %v2752
        %v2859 = vpack.c.bf16 %v2758, %v2756
        %v2860 = vpack.c.bf16 %v2762, %v2760
        %v2861 = vpack.c.bf16 %v2766, %v2764
        %v2862 = vpack.c.bf16 %v2770, %v2768
        %v2863 = vpack.c.bf16 %v2774, %v2772
        %v2864 = vpack.c.bf16 %v2778, %v2776
        %v2865 = vpack.c.bf16 %v2782, %v2780
        %v2866 = vpack.c.bf16 %v2786, %v2784
        %v2867 = vpack.c.bf16 %v2790, %v2788
        %v2868 = vpack.c.bf16 %v2794, %v2792
        %v2869 = vpack.c.bf16 %v2798, %v2796
        %v2870 = vpack.c.bf16 %v2802, %v2800
        %v2871 = vpack.c.bf16 %v2806, %v2804
        %v2872 = vpack.c.bf16 %v2810, %v2808
        %v2873 = vpack.c.bf16 %v2814, %v2812
        %v2874 = vpack.c.bf16 %v2818, %v2816
        %v2875 = vpack.c.bf16 %v2822, %v2820
        %v2876 = vpack.c.bf16 %v2826, %v2824
        %v2877 = vpack.c.bf16 %v2830, %v2828
        %v2878 = vpack.c.bf16 %v2834, %v2832
        %v2879 = vpack.c.bf16 %v2838, %v2836
        %v2880 = vpack.c.bf16 %v2842, %v2840
        %v2881 = vpack.c.bf16 %v2846, %v2844
        %v2882 = vpack.c.bf16 %v2850, %v2848
        %v2883 = vunpack.c.l.bf16 %v2851
        %v2884 = vunpack.c.h.bf16 %v2851
        %v2885 = vunpack.c.l.bf16 %v2852
        %v2886 = vunpack.c.h.bf16 %v2852
        %v2887 = vunpack.c.l.bf16 %v2853
        %v2888 = vunpack.c.h.bf16 %v2853
        %v2889 = vunpack.c.l.bf16 %v2854
        %v2890 = vunpack.c.h.bf16 %v2854
        %v2891 = vunpack.c.l.bf16 %v2855
        %v2892 = vunpack.c.h.bf16 %v2855
        %v2893 = vunpack.c.l.bf16 %v2856
        %v2894 = vunpack.c.h.bf16 %v2856
        %v2895 = vunpack.c.l.bf16 %v2857
        %v2896 = vunpack.c.h.bf16 %v2857
        %v2897 = vunpack.c.l.bf16 %v2858
        %v2898 = vunpack.c.h.bf16 %v2858
        %v2899 = vunpack.c.l.bf16 %v2859
        %v2900 = vunpack.c.h.bf16 %v2859
        %v2901 = vunpack.c.l.bf16 %v2860
        %v2902 = vunpack.c.h.bf16 %v2860
        %v2903 = vunpack.c.l.bf16 %v2861
        %v2904 = vunpack.c.h.bf16 %v2861
        %v2905 = vunpack.c.l.bf16 %v2862
        %v2906 = vunpack.c.h.bf16 %v2862
        %v2907 = vunpack.c.l.bf16 %v2863
        %v2908 = vunpack.c.h.bf16 %v2863
        %v2909 = vunpack.c.l.bf16 %v2864
        %v2910 = vunpack.c.h.bf16 %v2864
        %v2911 = vunpack.c.l.bf16 %v2865
        %v2912 = vunpack.c.h.bf16 %v2865
        %v2913 = vunpack.c.l.bf16 %v2866
        %v2914 = vunpack.c.h.bf16 %v2866
        %v2915 = vunpack.c.l.bf16 %v2867
        %v2916 = vunpack.c.h.bf16 %v2867
        %v2917 = vunpack.c.l.bf16 %v2868
        %v2918 = vunpack.c.h.bf16 %v2868
        %v2919 = vunpack.c.l.bf16 %v2869
        %v2920 = vunpack.c.h.bf16 %v2869
        %v2921 = vunpack.c.l.bf16 %v2870
        %v2922 = vunpack.c.h.bf16 %v2870
        %v2923 = vunpack.c.l.bf16 %v2871
        %v2924 = vunpack.c.h.bf16 %v2871
        %v2925 = vunpack.c.l.bf16 %v2872
        %v2926 = vunpack.c.h.bf16 %v2872
        %v2927 = vunpack.c.l.bf16 %v2873
        %v2928 = vunpack.c.h.bf16 %v2873
        %v2929 = vunpack.c.l.bf16 %v2874
        %v2930 = vunpack.c.h.bf16 %v2874
        %v2931 = vunpack.c.l.bf16 %v2875
        %v2932 = vunpack.c.h.bf16 %v2875
        %v2933 = vunpack.c.l.bf16 %v2876
        %v2934 = vunpack.c.h.bf16 %v2876
        %v2935 = vunpack.c.l.bf16 %v2877
        %v2936 = vunpack.c.h.bf16 %v2877
        %v2937 = vunpack.c.l.bf16 %v2878
        %v2938 = vunpack.c.h.bf16 %v2878
        %v2939 = vunpack.c.l.bf16 %v2879
        %v2940 = vunpack.c.h.bf16 %v2879
        %v2941 = vunpack.c.l.bf16 %v2880
        %v2942 = vunpack.c.h.bf16 %v2880
        %v2943 = vunpack.c.l.bf16 %v2881
        %v2944 = vunpack.c.h.bf16 %v2881
        %v2945 = vunpack.c.l.bf16 %v2882
        %v2946 = vunpack.c.h.bf16 %v2882
        %v2947 = vadd.f32 %v2883, 1.0
        %v2948 = vadd.f32 %v2884, 1.0
        %v2949 = vadd.f32 %v2885, 1.0
        %v2950 = vadd.f32 %v2886, 1.0
        %v2951 = vadd.f32 %v2887, 1.0
        %v2952 = vadd.f32 %v2888, 1.0
        %v2953 = vadd.f32 %v2889, 1.0
        %v2954 = vadd.f32 %v2890, 1.0
        %v2955 = vadd.f32 %v2891, 1.0
        %v2956 = vadd.f32 %v2892, 1.0
        %v2957 = vadd.f32 %v2893, 1.0
        %v2958 = vadd.f32 %v2894, 1.0
        %v2959 = vadd.f32 %v2895, 1.0
        %v2960 = vadd.f32 %v2896, 1.0
        %v2961 = vadd.f32 %v2897, 1.0
        %v2962 = vadd.f32 %v2898, 1.0
        %v2963 = vadd.f32 %v2899, 1.0
        %v2964 = vadd.f32 %v2900, 1.0
        %v2965 = vadd.f32 %v2901, 1.0
        %v2966 = vadd.f32 %v2902, 1.0
        %v2967 = vadd.f32 %v2903, 1.0
        %v2968 = vadd.f32 %v2904, 1.0
        %v2969 = vadd.f32 %v2905, 1.0
        %v2970 = vadd.f32 %v2906, 1.0
        %v2971 = vadd.f32 %v2907, 1.0
        %v2972 = vadd.f32 %v2908, 1.0
        %v2973 = vadd.f32 %v2909, 1.0
        %v2974 = vadd.f32 %v2910, 1.0
        %v2975 = vadd.f32 %v2911, 1.0
        %v2976 = vadd.f32 %v2912, 1.0
        %v2977 = vadd.f32 %v2913, 1.0
        %v2978 = vadd.f32 %v2914, 1.0
        %v2979 = vadd.f32 %v2915, 1.0
        %v2980 = vadd.f32 %v2916, 1.0
        %v2981 = vadd.f32 %v2917, 1.0
        %v2982 = vadd.f32 %v2918, 1.0
        %v2983 = vadd.f32 %v2919, 1.0
        %v2984 = vadd.f32 %v2920, 1.0
        %v2985 = vadd.f32 %v2921, 1.0
        %v2986 = vadd.f32 %v2922, 1.0
        %v2987 = vadd.f32 %v2923, 1.0
        %v2988 = vadd.f32 %v2924, 1.0
        %v2989 = vadd.f32 %v2925, 1.0
        %v2990 = vadd.f32 %v2926, 1.0
        %v2991 = vadd.f32 %v2927, 1.0
        %v2992 = vadd.f32 %v2928, 1.0
        %v2993 = vadd.f32 %v2929, 1.0
        %v2994 = vadd.f32 %v2930, 1.0
        %v2995 = vadd.f32 %v2931, 1.0
        %v2996 = vadd.f32 %v2932, 1.0
        %v2997 = vadd.f32 %v2933, 1.0
        %v2998 = vadd.f32 %v2934, 1.0
        %v2999 = vadd.f32 %v2935, 1.0
        %v3000 = vadd.f32 %v2936, 1.0
        %v3001 = vadd.f32 %v2937, 1.0
        %v3002 = vadd.f32 %v2938, 1.0
        %v3003 = vadd.f32 %v2939, 1.0
        %v3004 = vadd.f32 %v2940, 1.0
        %v3005 = vadd.f32 %v2941, 1.0
        %v3006 = vadd.f32 %v2942, 1.0
        %v3007 = vadd.f32 %v2943, 1.0
        %v3008 = vadd.f32 %v2944, 1.0
        %v3009 = vadd.f32 %v2945, 1.0
        %v3010 = vadd.f32 %v2946, 1.0
        %v3011 = vpack.c.bf16 %v2948, %v2947
        %v3012 = vpack.c.bf16 %v2950, %v2949
        %v3013 = vpack.c.bf16 %v2952, %v2951
        %v3014 = vpack.c.bf16 %v2954, %v2953
        %v3015 = vpack.c.bf16 %v2956, %v2955
        %v3016 = vpack.c.bf16 %v2958, %v2957
        %v3017 = vpack.c.bf16 %v2960, %v2959
        %v3018 = vpack.c.bf16 %v2962, %v2961
        %v3019 = vpack.c.bf16 %v2964, %v2963
        %v3020 = vpack.c.bf16 %v2966, %v2965
        %v3021 = vpack.c.bf16 %v2968, %v2967
        %v3022 = vpack.c.bf16 %v2970, %v2969
        %v3023 = vpack.c.bf16 %v2972, %v2971
        %v3024 = vpack.c.bf16 %v2974, %v2973
        %v3025 = vpack.c.bf16 %v2976, %v2975
        %v3026 = vpack.c.bf16 %v2978, %v2977
        %v3027 = vpack.c.bf16 %v2980, %v2979
        %v3028 = vpack.c.bf16 %v2982, %v2981
        %v3029 = vpack.c.bf16 %v2984, %v2983
        %v3030 = vpack.c.bf16 %v2986, %v2985
        %v3031 = vpack.c.bf16 %v2988, %v2987
        %v3032 = vpack.c.bf16 %v2990, %v2989
        %v3033 = vpack.c.bf16 %v2992, %v2991
        %v3034 = vpack.c.bf16 %v2994, %v2993
        %v3035 = vpack.c.bf16 %v2996, %v2995
        %v3036 = vpack.c.bf16 %v2998, %v2997
        %v3037 = vpack.c.bf16 %v3000, %v2999
        %v3038 = vpack.c.bf16 %v3002, %v3001
        %v3039 = vpack.c.bf16 %v3004, %v3003
        %v3040 = vpack.c.bf16 %v3006, %v3005
        %v3041 = vpack.c.bf16 %v3008, %v3007
        %v3042 = vpack.c.bf16 %v3010, %v3009
        %v3043 = vunpack.c.h.bf16 1065369472
        %v3044 = vunpack.c.l.bf16 1065369472
        %v3045 = vunpack.c.h.bf16 %v3011
        %v3046 = vunpack.c.l.bf16 %v3011
        %v3047 = vrcp.pop %v3045
        %v3048 = vmul.f32 %v3043, %v3047
        %v3049 = vrcp.pop %v3046
        %v3050 = vmul.f32 %v3044, %v3049
        %v3051 = vpack.c.bf16 %v3048, %v3050
        %v3052 = vunpack.c.h.bf16 %v3012
        %v3053 = vunpack.c.l.bf16 %v3012
        %v3054 = vrcp.pop %v3052
        %v3055 = vmul.f32 %v3043, %v3054
        %v3056 = vrcp.pop %v3053
        %v3057 = vmul.f32 %v3044, %v3056
        %v3058 = vpack.c.bf16 %v3055, %v3057
        %v3059 = vunpack.c.h.bf16 %v3013
        %v3060 = vunpack.c.l.bf16 %v3013
        %v3061 = vrcp.pop %v3059
        %v3062 = vmul.f32 %v3043, %v3061
        %v3063 = vrcp.pop %v3060
        %v3064 = vmul.f32 %v3044, %v3063
        %v3065 = vpack.c.bf16 %v3062, %v3064
        %v3066 = vunpack.c.h.bf16 %v3014
        %v3067 = vunpack.c.l.bf16 %v3014
        %v3068 = vrcp.pop %v3066
        %v3069 = vmul.f32 %v3043, %v3068
        %v3070 = vrcp.pop %v3067
        %v3071 = vmul.f32 %v3044, %v3070
        %v3072 = vpack.c.bf16 %v3069, %v3071
        %v3073 = vunpack.c.h.bf16 %v3015
        %v3074 = vunpack.c.l.bf16 %v3015
        %v3075 = vrcp.pop %v3073
        %v3076 = vmul.f32 %v3043, %v3075
        %v3077 = vrcp.pop %v3074
        %v3078 = vmul.f32 %v3044, %v3077
        %v3079 = vpack.c.bf16 %v3076, %v3078
        %v3080 = vunpack.c.h.bf16 %v3016
        %v3081 = vunpack.c.l.bf16 %v3016
        %v3082 = vrcp.pop %v3080
        %v3083 = vmul.f32 %v3043, %v3082
        %v3084 = vrcp.pop %v3081
        %v3085 = vmul.f32 %v3044, %v3084
        %v3086 = vpack.c.bf16 %v3083, %v3085
        %v3087 = vunpack.c.h.bf16 %v3017
        %v3088 = vunpack.c.l.bf16 %v3017
        %v3089 = vrcp.pop %v3087
        %v3090 = vmul.f32 %v3043, %v3089
        %v3091 = vrcp.pop %v3088
        %v3092 = vmul.f32 %v3044, %v3091
        %v3093 = vpack.c.bf16 %v3090, %v3092
        %v3094 = vunpack.c.h.bf16 %v3018
        %v3095 = vunpack.c.l.bf16 %v3018
        %v3096 = vrcp.pop %v3094
        %v3097 = vmul.f32 %v3043, %v3096
        %v3098 = vrcp.pop %v3095
        %v3099 = vmul.f32 %v3044, %v3098
        %v3100 = vpack.c.bf16 %v3097, %v3099
        %v3101 = vunpack.c.h.bf16 %v3019
        %v3102 = vunpack.c.l.bf16 %v3019
        %v3103 = vrcp.pop %v3101
        %v3104 = vmul.f32 %v3043, %v3103
        %v3105 = vrcp.pop %v3102
        %v3106 = vmul.f32 %v3044, %v3105
        %v3107 = vpack.c.bf16 %v3104, %v3106
        %v3108 = vunpack.c.h.bf16 %v3020
        %v3109 = vunpack.c.l.bf16 %v3020
        %v3110 = vrcp.pop %v3108
        %v3111 = vmul.f32 %v3043, %v3110
        %v3112 = vrcp.pop %v3109
        %v3113 = vmul.f32 %v3044, %v3112
        %v3114 = vpack.c.bf16 %v3111, %v3113
        %v3115 = vunpack.c.h.bf16 %v3021
        %v3116 = vunpack.c.l.bf16 %v3021
        %v3117 = vrcp.pop %v3115
        %v3118 = vmul.f32 %v3043, %v3117
        %v3119 = vrcp.pop %v3116
        %v3120 = vmul.f32 %v3044, %v3119
        %v3121 = vpack.c.bf16 %v3118, %v3120
        %v3122 = vunpack.c.h.bf16 %v3022
        %v3123 = vunpack.c.l.bf16 %v3022
        %v3124 = vrcp.pop %v3122
        %v3125 = vmul.f32 %v3043, %v3124
        %v3126 = vrcp.pop %v3123
        %v3127 = vmul.f32 %v3044, %v3126
        %v3128 = vpack.c.bf16 %v3125, %v3127
        %v3129 = vunpack.c.h.bf16 %v3023
        %v3130 = vunpack.c.l.bf16 %v3023
        %v3131 = vrcp.pop %v3129
        %v3132 = vmul.f32 %v3043, %v3131
        %v3133 = vrcp.pop %v3130
        %v3134 = vmul.f32 %v3044, %v3133
        %v3135 = vpack.c.bf16 %v3132, %v3134
        %v3136 = vunpack.c.h.bf16 %v3024
        %v3137 = vunpack.c.l.bf16 %v3024
        %v3138 = vrcp.pop %v3136
        %v3139 = vmul.f32 %v3043, %v3138
        %v3140 = vrcp.pop %v3137
        %v3141 = vmul.f32 %v3044, %v3140
        %v3142 = vpack.c.bf16 %v3139, %v3141
        %v3143 = vunpack.c.h.bf16 %v3025
        %v3144 = vunpack.c.l.bf16 %v3025
        %v3145 = vrcp.pop %v3143
        %v3146 = vmul.f32 %v3043, %v3145
        %v3147 = vrcp.pop %v3144
        %v3148 = vmul.f32 %v3044, %v3147
        %v3149 = vpack.c.bf16 %v3146, %v3148
        %v3150 = vunpack.c.h.bf16 %v3026
        %v3151 = vunpack.c.l.bf16 %v3026
        %v3152 = vrcp.pop %v3150
        %v3153 = vmul.f32 %v3043, %v3152
        %v3154 = vrcp.pop %v3151
        %v3155 = vmul.f32 %v3044, %v3154
        %v3156 = vpack.c.bf16 %v3153, %v3155
        %v3157 = vunpack.c.h.bf16 %v3027
        %v3158 = vunpack.c.l.bf16 %v3027
        %v3159 = vrcp.pop %v3157
        %v3160 = vmul.f32 %v3043, %v3159
        %v3161 = vrcp.pop %v3158
        %v3162 = vmul.f32 %v3044, %v3161
        %v3163 = vpack.c.bf16 %v3160, %v3162
        %v3164 = vunpack.c.h.bf16 %v3028
        %v3165 = vunpack.c.l.bf16 %v3028
        %v3166 = vrcp.pop %v3164
        %v3167 = vmul.f32 %v3043, %v3166
        %v3168 = vrcp.pop %v3165
        %v3169 = vmul.f32 %v3044, %v3168
        %v3170 = vpack.c.bf16 %v3167, %v3169
        %v3171 = vunpack.c.h.bf16 %v3029
        %v3172 = vunpack.c.l.bf16 %v3029
        %v3173 = vrcp.pop %v3171
        %v3174 = vmul.f32 %v3043, %v3173
        %v3175 = vrcp.pop %v3172
        %v3176 = vmul.f32 %v3044, %v3175
        %v3177 = vpack.c.bf16 %v3174, %v3176
        %v3178 = vunpack.c.h.bf16 %v3030
        %v3179 = vunpack.c.l.bf16 %v3030
        %v3180 = vrcp.pop %v3178
        %v3181 = vmul.f32 %v3043, %v3180
        %v3182 = vrcp.pop %v3179
        %v3183 = vmul.f32 %v3044, %v3182
        %v3184 = vpack.c.bf16 %v3181, %v3183
        %v3185 = vunpack.c.h.bf16 %v3031
        %v3186 = vunpack.c.l.bf16 %v3031
        %v3187 = vrcp.pop %v3185
        %v3188 = vmul.f32 %v3043, %v3187
        %v3189 = vrcp.pop %v3186
        %v3190 = vmul.f32 %v3044, %v3189
        %v3191 = vpack.c.bf16 %v3188, %v3190
        %v3192 = vunpack.c.h.bf16 %v3032
        %v3193 = vunpack.c.l.bf16 %v3032
        %v3194 = vrcp.pop %v3192
        %v3195 = vmul.f32 %v3043, %v3194
        %v3196 = vrcp.pop %v3193
        %v3197 = vmul.f32 %v3044, %v3196
        %v3198 = vpack.c.bf16 %v3195, %v3197
        %v3199 = vunpack.c.h.bf16 %v3033
        %v3200 = vunpack.c.l.bf16 %v3033
        %v3201 = vrcp.pop %v3199
        %v3202 = vmul.f32 %v3043, %v3201
        %v3203 = vrcp.pop %v3200
        %v3204 = vmul.f32 %v3044, %v3203
        %v3205 = vpack.c.bf16 %v3202, %v3204
        %v3206 = vunpack.c.h.bf16 %v3034
        %v3207 = vunpack.c.l.bf16 %v3034
        %v3208 = vrcp.pop %v3206
        %v3209 = vmul.f32 %v3043, %v3208
        %v3210 = vrcp.pop %v3207
        %v3211 = vmul.f32 %v3044, %v3210
        %v3212 = vpack.c.bf16 %v3209, %v3211
        %v3213 = vunpack.c.h.bf16 %v3035
        %v3214 = vunpack.c.l.bf16 %v3035
        %v3215 = vrcp.pop %v3213
        %v3216 = vmul.f32 %v3043, %v3215
        %v3217 = vrcp.pop %v3214
        %v3218 = vmul.f32 %v3044, %v3217
        %v3219 = vpack.c.bf16 %v3216, %v3218
        %v3220 = vunpack.c.h.bf16 %v3036
        %v3221 = vunpack.c.l.bf16 %v3036
        %v3222 = vrcp.pop %v3220
        %v3223 = vmul.f32 %v3043, %v3222
        %v3224 = vrcp.pop %v3221
        %v3225 = vmul.f32 %v3044, %v3224
        %v3226 = vpack.c.bf16 %v3223, %v3225
        %v3227 = vunpack.c.h.bf16 %v3037
        %v3228 = vunpack.c.l.bf16 %v3037
        %v3229 = vrcp.pop %v3227
        %v3230 = vmul.f32 %v3043, %v3229
        %v3231 = vrcp.pop %v3228
        %v3232 = vmul.f32 %v3044, %v3231
        %v3233 = vpack.c.bf16 %v3230, %v3232
        %v3234 = vunpack.c.h.bf16 %v3038
        %v3235 = vunpack.c.l.bf16 %v3038
        %v3236 = vrcp.pop %v3234
        %v3237 = vmul.f32 %v3043, %v3236
        %v3238 = vrcp.pop %v3235
        %v3239 = vmul.f32 %v3044, %v3238
        %v3240 = vpack.c.bf16 %v3237, %v3239
        %v3241 = vunpack.c.h.bf16 %v3039
        %v3242 = vunpack.c.l.bf16 %v3039
        %v3243 = vrcp.pop %v3241
        %v3244 = vmul.f32 %v3043, %v3243
        %v3245 = vrcp.pop %v3242
        %v3246 = vmul.f32 %v3044, %v3245
        %v3247 = vpack.c.bf16 %v3244, %v3246
        %v3248 = vunpack.c.h.bf16 %v3040
        %v3249 = vunpack.c.l.bf16 %v3040
        %v3250 = vrcp.pop %v3248
        %v3251 = vmul.f32 %v3043, %v3250
        %v3252 = vrcp.pop %v3249
        %v3253 = vmul.f32 %v3044, %v3252
        %v3254 = vpack.c.bf16 %v3251, %v3253
        %v3255 = vunpack.c.h.bf16 %v3041
        %v3256 = vunpack.c.l.bf16 %v3041
        %v3257 = vrcp.pop %v3255
        %v3258 = vmul.f32 %v3043, %v3257
        %v3259 = vrcp.pop %v3256
        %v3260 = vmul.f32 %v3044, %v3259
        %v3261 = vpack.c.bf16 %v3258, %v3260
        %v3262 = vunpack.c.h.bf16 %v3042
        %v3263 = vunpack.c.l.bf16 %v3042
        %v3264 = vrcp.pop %v3262
        %v3265 = vmul.f32 %v3043, %v3264
        %v3266 = vrcp.pop %v3263
        %v3267 = vmul.f32 %v3044, %v3266
        %v3268 = vpack.c.bf16 %v3265, %v3267
        %v3269 = vunpack.c.l.bf16 %v2595
        %v3270 = vunpack.c.h.bf16 %v2595
        %v3271 = vunpack.c.l.bf16 %v2596
        %v3272 = vunpack.c.h.bf16 %v2596
        %v3273 = vunpack.c.l.bf16 %v2597
        %v3274 = vunpack.c.h.bf16 %v2597
        %v3275 = vunpack.c.l.bf16 %v2598
        %v3276 = vunpack.c.h.bf16 %v2598
        %v3277 = vunpack.c.l.bf16 %v2599
        %v3278 = vunpack.c.h.bf16 %v2599
        %v3279 = vunpack.c.l.bf16 %v2600
        %v3280 = vunpack.c.h.bf16 %v2600
        %v3281 = vunpack.c.l.bf16 %v2601
        %v3282 = vunpack.c.h.bf16 %v2601
        %v3283 = vunpack.c.l.bf16 %v2602
        %v3284 = vunpack.c.h.bf16 %v2602
        %v3285 = vunpack.c.l.bf16 %v2603
        %v3286 = vunpack.c.h.bf16 %v2603
        %v3287 = vunpack.c.l.bf16 %v2604
        %v3288 = vunpack.c.h.bf16 %v2604
        %v3289 = vunpack.c.l.bf16 %v2605
        %v3290 = vunpack.c.h.bf16 %v2605
        %v3291 = vunpack.c.l.bf16 %v2606
        %v3292 = vunpack.c.h.bf16 %v2606
        %v3293 = vunpack.c.l.bf16 %v2607
        %v3294 = vunpack.c.h.bf16 %v2607
        %v3295 = vunpack.c.l.bf16 %v2608
        %v3296 = vunpack.c.h.bf16 %v2608
        %v3297 = vunpack.c.l.bf16 %v2609
        %v3298 = vunpack.c.h.bf16 %v2609
        %v3299 = vunpack.c.l.bf16 %v2610
        %v3300 = vunpack.c.h.bf16 %v2610
        %v3301 = vunpack.c.l.bf16 %v2611
        %v3302 = vunpack.c.h.bf16 %v2611
        %v3303 = vunpack.c.l.bf16 %v2612
        %v3304 = vunpack.c.h.bf16 %v2612
        %v3305 = vunpack.c.l.bf16 %v2613
        %v3306 = vunpack.c.h.bf16 %v2613
        %v3307 = vunpack.c.l.bf16 %v2614
        %v3308 = vunpack.c.h.bf16 %v2614
        %v3309 = vunpack.c.l.bf16 %v2615
        %v3310 = vunpack.c.h.bf16 %v2615
        %v3311 = vunpack.c.l.bf16 %v2616
        %v3312 = vunpack.c.h.bf16 %v2616
        %v3313 = vunpack.c.l.bf16 %v2617
        %v3314 = vunpack.c.h.bf16 %v2617
        %v3315 = vunpack.c.l.bf16 %v2618
        %v3316 = vunpack.c.h.bf16 %v2618
        %v3317 = vunpack.c.l.bf16 %v2619
        %v3318 = vunpack.c.h.bf16 %v2619
        %v3319 = vunpack.c.l.bf16 %v2620
        %v3320 = vunpack.c.h.bf16 %v2620
        %v3321 = vunpack.c.l.bf16 %v2621
        %v3322 = vunpack.c.h.bf16 %v2621
        %v3323 = vunpack.c.l.bf16 %v2622
        %v3324 = vunpack.c.h.bf16 %v2622
        %v3325 = vunpack.c.l.bf16 %v2623
        %v3326 = vunpack.c.h.bf16 %v2623
        %v3327 = vunpack.c.l.bf16 %v2624
        %v3328 = vunpack.c.h.bf16 %v2624
        %v3329 = vunpack.c.l.bf16 %v2625
        %v3330 = vunpack.c.h.bf16 %v2625
        %v3331 = vunpack.c.l.bf16 %v2626
        %v3332 = vunpack.c.h.bf16 %v2626
        %v3333 = vunpack.c.l.bf16 %v3051
        %v3334 = vunpack.c.h.bf16 %v3051
        %v3335 = vunpack.c.l.bf16 %v3058
        %v3336 = vunpack.c.h.bf16 %v3058
        %v3337 = vunpack.c.l.bf16 %v3065
        %v3338 = vunpack.c.h.bf16 %v3065
        %v3339 = vunpack.c.l.bf16 %v3072
        %v3340 = vunpack.c.h.bf16 %v3072
        %v3341 = vunpack.c.l.bf16 %v3079
        %v3342 = vunpack.c.h.bf16 %v3079
        %v3343 = vunpack.c.l.bf16 %v3086
        %v3344 = vunpack.c.h.bf16 %v3086
        %v3345 = vunpack.c.l.bf16 %v3093
        %v3346 = vunpack.c.h.bf16 %v3093
        %v3347 = vunpack.c.l.bf16 %v3100
        %v3348 = vunpack.c.h.bf16 %v3100
        %v3349 = vunpack.c.l.bf16 %v3107
        %v3350 = vunpack.c.h.bf16 %v3107
        %v3351 = vunpack.c.l.bf16 %v3114
        %v3352 = vunpack.c.h.bf16 %v3114
        %v3353 = vunpack.c.l.bf16 %v3121
        %v3354 = vunpack.c.h.bf16 %v3121
        %v3355 = vunpack.c.l.bf16 %v3128
        %v3356 = vunpack.c.h.bf16 %v3128
        %v3357 = vunpack.c.l.bf16 %v3135
        %v3358 = vunpack.c.h.bf16 %v3135
        %v3359 = vunpack.c.l.bf16 %v3142
        %v3360 = vunpack.c.h.bf16 %v3142
        %v3361 = vunpack.c.l.bf16 %v3149
        %v3362 = vunpack.c.h.bf16 %v3149
        %v3363 = vunpack.c.l.bf16 %v3156
        %v3364 = vunpack.c.h.bf16 %v3156
        %v3365 = vunpack.c.l.bf16 %v3163
        %v3366 = vunpack.c.h.bf16 %v3163
        %v3367 = vunpack.c.l.bf16 %v3170
        %v3368 = vunpack.c.h.bf16 %v3170
        %v3369 = vunpack.c.l.bf16 %v3177
        %v3370 = vunpack.c.h.bf16 %v3177
        %v3371 = vunpack.c.l.bf16 %v3184
        %v3372 = vunpack.c.h.bf16 %v3184
        %v3373 = vunpack.c.l.bf16 %v3191
        %v3374 = vunpack.c.h.bf16 %v3191
        %v3375 = vunpack.c.l.bf16 %v3198
        %v3376 = vunpack.c.h.bf16 %v3198
        %v3377 = vunpack.c.l.bf16 %v3205
        %v3378 = vunpack.c.h.bf16 %v3205
        %v3379 = vunpack.c.l.bf16 %v3212
        %v3380 = vunpack.c.h.bf16 %v3212
        %v3381 = vunpack.c.l.bf16 %v3219
        %v3382 = vunpack.c.h.bf16 %v3219
        %v3383 = vunpack.c.l.bf16 %v3226
        %v3384 = vunpack.c.h.bf16 %v3226
        %v3385 = vunpack.c.l.bf16 %v3233
        %v3386 = vunpack.c.h.bf16 %v3233
        %v3387 = vunpack.c.l.bf16 %v3240
        %v3388 = vunpack.c.h.bf16 %v3240
        %v3389 = vunpack.c.l.bf16 %v3247
        %v3390 = vunpack.c.h.bf16 %v3247
        %v3391 = vunpack.c.l.bf16 %v3254
        %v3392 = vunpack.c.h.bf16 %v3254
        %v3393 = vunpack.c.l.bf16 %v3261
        %v3394 = vunpack.c.h.bf16 %v3261
        %v3395 = vunpack.c.l.bf16 %v3268
        %v3396 = vunpack.c.h.bf16 %v3268
        %v3397 = vmul.f32 %v3269, %v3333
        %v3398 = vmul.f32 %v3270, %v3334
        %v3399 = vmul.f32 %v3271, %v3335
        %v3400 = vmul.f32 %v3272, %v3336
        %v3401 = vmul.f32 %v3273, %v3337
        %v3402 = vmul.f32 %v3274, %v3338
        %v3403 = vmul.f32 %v3275, %v3339
        %v3404 = vmul.f32 %v3276, %v3340
        %v3405 = vmul.f32 %v3277, %v3341
        %v3406 = vmul.f32 %v3278, %v3342
        %v3407 = vmul.f32 %v3279, %v3343
        %v3408 = vmul.f32 %v3280, %v3344
        %v3409 = vmul.f32 %v3281, %v3345
        %v3410 = vmul.f32 %v3282, %v3346
        %v3411 = vmul.f32 %v3283, %v3347
        %v3412 = vmul.f32 %v3284, %v3348
        %v3413 = vmul.f32 %v3285, %v3349
        %v3414 = vmul.f32 %v3286, %v3350
        %v3415 = vmul.f32 %v3287, %v3351
        %v3416 = vmul.f32 %v3288, %v3352
        %v3417 = vmul.f32 %v3289, %v3353
        %v3418 = vmul.f32 %v3290, %v3354
        %v3419 = vmul.f32 %v3291, %v3355
        %v3420 = vmul.f32 %v3292, %v3356
        %v3421 = vmul.f32 %v3293, %v3357
        %v3422 = vmul.f32 %v3294, %v3358
        %v3423 = vmul.f32 %v3295, %v3359
        %v3424 = vmul.f32 %v3296, %v3360
        %v3425 = vmul.f32 %v3297, %v3361
        %v3426 = vmul.f32 %v3298, %v3362
        %v3427 = vmul.f32 %v3299, %v3363
        %v3428 = vmul.f32 %v3300, %v3364
        %v3429 = vmul.f32 %v3301, %v3365
        %v3430 = vmul.f32 %v3302, %v3366
        %v3431 = vmul.f32 %v3303, %v3367
        %v3432 = vmul.f32 %v3304, %v3368
        %v3433 = vmul.f32 %v3305, %v3369
        %v3434 = vmul.f32 %v3306, %v3370
        %v3435 = vmul.f32 %v3307, %v3371
        %v3436 = vmul.f32 %v3308, %v3372
        %v3437 = vmul.f32 %v3309, %v3373
        %v3438 = vmul.f32 %v3310, %v3374
        %v3439 = vmul.f32 %v3311, %v3375
        %v3440 = vmul.f32 %v3312, %v3376
        %v3441 = vmul.f32 %v3313, %v3377
        %v3442 = vmul.f32 %v3314, %v3378
        %v3443 = vmul.f32 %v3315, %v3379
        %v3444 = vmul.f32 %v3316, %v3380
        %v3445 = vmul.f32 %v3317, %v3381
        %v3446 = vmul.f32 %v3318, %v3382
        %v3447 = vmul.f32 %v3319, %v3383
        %v3448 = vmul.f32 %v3320, %v3384
        %v3449 = vmul.f32 %v3321, %v3385
        %v3450 = vmul.f32 %v3322, %v3386
        %v3451 = vmul.f32 %v3323, %v3387
        %v3452 = vmul.f32 %v3324, %v3388
        %v3453 = vmul.f32 %v3325, %v3389
        %v3454 = vmul.f32 %v3326, %v3390
        %v3455 = vmul.f32 %v3327, %v3391
        %v3456 = vmul.f32 %v3328, %v3392
        %v3457 = vmul.f32 %v3329, %v3393
        %v3458 = vmul.f32 %v3330, %v3394
        %v3459 = vmul.f32 %v3331, %v3395
        %v3460 = vmul.f32 %v3332, %v3396
        %v3461 = vpack.c.bf16 %v3401, %v3397
        %v3462 = vpack.c.bf16 %v3402, %v3398
        %v3463 = vpack.c.bf16 %v3403, %v3399
        %v3464 = vpack.c.bf16 %v3404, %v3400
        %v3465 = vpack.c.bf16 %v3409, %v3405
        %v3466 = vpack.c.bf16 %v3410, %v3406
        %v3467 = vpack.c.bf16 %v3411, %v3407
        %v3468 = vpack.c.bf16 %v3412, %v3408
        %v3469 = vpack.c.bf16 %v3417, %v3413
        %v3470 = vpack.c.bf16 %v3418, %v3414
        %v3471 = vpack.c.bf16 %v3419, %v3415
        %v3472 = vpack.c.bf16 %v3420, %v3416
        %v3473 = vpack.c.bf16 %v3425, %v3421
        %v3474 = vpack.c.bf16 %v3426, %v3422
        %v3475 = vpack.c.bf16 %v3427, %v3423
        %v3476 = vpack.c.bf16 %v3428, %v3424
        %v3477 = vpack.c.bf16 %v3433, %v3429
        %v3478 = vpack.c.bf16 %v3434, %v3430
        %v3479 = vpack.c.bf16 %v3435, %v3431
        %v3480 = vpack.c.bf16 %v3436, %v3432
        %v3481 = vpack.c.bf16 %v3441, %v3437
        %v3482 = vpack.c.bf16 %v3442, %v3438
        %v3483 = vpack.c.bf16 %v3443, %v3439
        %v3484 = vpack.c.bf16 %v3444, %v3440
        %v3485 = vpack.c.bf16 %v3449, %v3445
        %v3486 = vpack.c.bf16 %v3450, %v3446
        %v3487 = vpack.c.bf16 %v3451, %v3447
        %v3488 = vpack.c.bf16 %v3452, %v3448
        %v3489 = vpack.c.bf16 %v3457, %v3453
        %v3490 = vpack.c.bf16 %v3458, %v3454
        %v3491 = vpack.c.bf16 %v3459, %v3455
        %v3492 = vpack.c.bf16 %v3460, %v3456
        %v3493 = vperm.slane %v419, 0
        %v3558 = vunpack.c.l.b16 %v543
        %v3559 = vunpack.c.l.b16 %v544
        %v3560 = vunpack.c.l.b16 %v545
        %v3561 = vunpack.c.l.b16 %v546
        %v3562 = vunpack.c.l.b16 %v547
        %v3563 = vunpack.c.l.b16 %v548
        %v3564 = vunpack.c.l.b16 %v549
        %v3565 = vunpack.c.l.b16 %v550
        %v3566 = vunpack.c.l.b16 %v551
        %v3567 = vunpack.c.l.b16 %v552
        %v3568 = vunpack.c.l.b16 %v553
        %v3569 = vunpack.c.l.b16 %v554
        %v3570 = vunpack.c.l.b16 %v555
        %v3571 = vunpack.c.l.b16 %v556
        %v3572 = vunpack.c.l.b16 %v557
        %v3573 = vunpack.c.l.b16 %v558
        %v3574 = vunpack.c.l.b16 %v559
        %v3575 = vunpack.c.l.b16 %v560
        %v3576 = vunpack.c.l.b16 %v561
        %v3577 = vunpack.c.l.b16 %v562
        %v3578 = vunpack.c.l.b16 %v563
        %v3579 = vunpack.c.l.b16 %v564
        %v3580 = vunpack.c.l.b16 %v565
        %v3581 = vunpack.c.l.b16 %v566
        %v3582 = vunpack.c.l.b16 %v567
        %v3583 = vunpack.c.l.b16 %v568
        %v3584 = vunpack.c.l.b16 %v569
        %v3585 = vunpack.c.l.b16 %v570
        %v3586 = vunpack.c.l.b16 %v571
        %v3587 = vunpack.c.l.b16 %v572
        %v3588 = vunpack.c.l.b16 %v573
        %v3589 = vunpack.c.l.b16 %v574
        %v3590 = vunpack.c.l.b16 %v575
        %v3591 = vunpack.c.l.b16 %v576
        %v3592 = vunpack.c.l.b16 %v577
        %v3593 = vunpack.c.l.b16 %v578
        %v3594 = vunpack.c.l.b16 %v579
        %v3595 = vunpack.c.l.b16 %v580
        %v3596 = vunpack.c.l.b16 %v581
        %v3597 = vunpack.c.l.b16 %v582
        %v3598 = vunpack.c.l.b16 %v583
        %v3599 = vunpack.c.l.b16 %v584
        %v3600 = vunpack.c.l.b16 %v585
        %v3601 = vunpack.c.l.b16 %v586
        %v3602 = vunpack.c.l.b16 %v587
        %v3603 = vunpack.c.l.b16 %v588
        %v3604 = vunpack.c.l.b16 %v589
        %v3605 = vunpack.c.l.b16 %v590
        %v3606 = vunpack.c.l.b16 %v591
        %v3607 = vunpack.c.l.b16 %v592
        %v3608 = vunpack.c.l.b16 %v593
        %v3609 = vunpack.c.l.b16 %v594
        %v3610 = vunpack.c.l.b16 %v595
        %v3611 = vunpack.c.l.b16 %v596
        %v3612 = vunpack.c.l.b16 %v597
        %v3613 = vunpack.c.l.b16 %v598
        %v3614 = vunpack.c.l.b16 %v599
        %v3615 = vunpack.c.l.b16 %v600
        %v3616 = vunpack.c.l.b16 %v601
        %v3617 = vunpack.c.l.b16 %v602
        %v3618 = vunpack.c.l.b16 %v603
        %v3619 = vunpack.c.l.b16 %v604
        %v3620 = vunpack.c.l.b16 %v605
        %v3621 = vunpack.c.l.b16 %v606
        %v3622 = vpack.c.b16 %v3559, %v3558
        %v3623 = vpack.c.b16 %v3561, %v3560
        %v3624 = vpack.c.b16 %v3563, %v3562
        %v3625 = vpack.c.b16 %v3565, %v3564
        %v3626 = vpack.c.b16 %v3567, %v3566
        %v3627 = vpack.c.b16 %v3569, %v3568
        %v3628 = vpack.c.b16 %v3571, %v3570
        %v3629 = vpack.c.b16 %v3573, %v3572
        %v3630 = vpack.c.b16 %v3575, %v3574
        %v3631 = vpack.c.b16 %v3577, %v3576
        %v3632 = vpack.c.b16 %v3579, %v3578
        %v3633 = vpack.c.b16 %v3581, %v3580
        %v3634 = vpack.c.b16 %v3583, %v3582
        %v3635 = vpack.c.b16 %v3585, %v3584
        %v3636 = vpack.c.b16 %v3587, %v3586
        %v3637 = vpack.c.b16 %v3589, %v3588
        %v3638 = vpack.c.b16 %v3591, %v3590
        %v3639 = vpack.c.b16 %v3593, %v3592
        %v3640 = vpack.c.b16 %v3595, %v3594
        %v3641 = vpack.c.b16 %v3597, %v3596
        %v3642 = vpack.c.b16 %v3599, %v3598
        %v3643 = vpack.c.b16 %v3601, %v3600
        %v3644 = vpack.c.b16 %v3603, %v3602
        %v3645 = vpack.c.b16 %v3605, %v3604
        %v3646 = vpack.c.b16 %v3607, %v3606
        %v3647 = vpack.c.b16 %v3609, %v3608
        %v3648 = vpack.c.b16 %v3611, %v3610
        %v3649 = vpack.c.b16 %v3613, %v3612
        %v3650 = vpack.c.b16 %v3615, %v3614
        %v3651 = vpack.c.b16 %v3617, %v3616
        %v3652 = vpack.c.b16 %v3619, %v3618
        %v3653 = vpack.c.b16 %v3621, %v3620
        %3686 = vmatpush.bf16.msra.mxu0 %v3629
        %3687 = vmatpush.bf16.msra.mxu0 %v3628
        %3688 = vmatpush.bf16.msra.mxu0 %v3627
        %3689 = vmatpush.bf16.msra.mxu0 %v3626
        %3690 = vmatpush.bf16.msra.mxu0 %v3625
        %3691 = vmatpush.bf16.msra.mxu0 %v3624
        %3692 = vmatpush.bf16.msra.mxu0 %v3623
        %3693 = vmatpush.bf16.msra.mxu0 %v3622
        %3694 = vmatmul.bf16.gmra.mxu0 %v3461
        %v3695 = vpop.f32.mrf.mxu0
        %v3696 = vadd.f32 %v3493, %v3695
        %v3697 = vpop.f32.mrf.mxu0
        %v3698 = vadd.f32 %v3493, %v3697
        %3699 = vmatmul.bf16.gmra.mxu0 %v3465
        %v3700 = vpop.f32.mrf.mxu0
        %v3701 = vadd.f32 %v3493, %v3700
        %v3702 = vpop.f32.mrf.mxu0
        %v3703 = vadd.f32 %v3493, %v3702
        %3704 = vmatmul.bf16.gmra.mxu0 %v3469
        %v3705 = vpop.f32.mrf.mxu0
        %v3706 = vadd.f32 %v3493, %v3705
        %v3707 = vpop.f32.mrf.mxu0
        %v3708 = vadd.f32 %v3493, %v3707
        %3709 = vmatmul.bf16.gmra.mxu0 %v3473
        %v3710 = vpop.f32.mrf.mxu0
        %v3711 = vadd.f32 %v3493, %v3710
        %v3712 = vpop.f32.mrf.mxu0
        %v3713 = vadd.f32 %v3493, %v3712
        %3714 = vmatmul.bf16.gmra.mxu0 %v3477
        %v3715 = vpop.f32.mrf.mxu0
        %v3716 = vadd.f32 %v3493, %v3715
        %v3717 = vpop.f32.mrf.mxu0
        %v3718 = vadd.f32 %v3493, %v3717
        %3719 = vmatmul.bf16.gmra.mxu0 %v3481
        %v3720 = vpop.f32.mrf.mxu0
        %v3721 = vadd.f32 %v3493, %v3720
        %v3722 = vpop.f32.mrf.mxu0
        %v3723 = vadd.f32 %v3493, %v3722
        %3724 = vmatmul.bf16.gmra.mxu0 %v3485
        %v3725 = vpop.f32.mrf.mxu0
        %v3726 = vadd.f32 %v3493, %v3725
        %v3727 = vpop.f32.mrf.mxu0
        %v3728 = vadd.f32 %v3493, %v3727
        %3729 = vmatmul.bf16.gmra.mxu0 %v3489
        %v3730 = vpop.f32.mrf.mxu0
        %v3731 = vadd.f32 %v3493, %v3730
        %v3732 = vpop.f32.mrf.mxu0
        %v3733 = vadd.f32 %v3493, %v3732
        %3734 = vdwg.mxu0
        %3735 = vmatpush.bf16.msra.mxu0 %v3637
        %3736 = vmatpush.bf16.msra.mxu0 %v3636
        %3737 = vmatpush.bf16.msra.mxu0 %v3635
        %3738 = vmatpush.bf16.msra.mxu0 %v3634
        %3739 = vmatpush.bf16.msra.mxu0 %v3633
        %3740 = vmatpush.bf16.msra.mxu0 %v3632
        %3741 = vmatpush.bf16.msra.mxu0 %v3631
        %3742 = vmatpush.bf16.msra.mxu0 %v3630
        %3743 = vmatmul.bf16.gmra.mxu0 %v3462
        %v3744 = vpop.f32.mrf.mxu0
        %v3745 = vadd.f32 %v3696, %v3744
        %v3746 = vpop.f32.mrf.mxu0
        %v3747 = vadd.f32 %v3698, %v3746
        %3748 = vmatmul.bf16.gmra.mxu0 %v3466
        %v3749 = vpop.f32.mrf.mxu0
        %v3750 = vadd.f32 %v3701, %v3749
        %v3751 = vpop.f32.mrf.mxu0
        %v3752 = vadd.f32 %v3703, %v3751
        %3753 = vmatmul.bf16.gmra.mxu0 %v3470
        %v3754 = vpop.f32.mrf.mxu0
        %v3755 = vadd.f32 %v3706, %v3754
        %v3756 = vpop.f32.mrf.mxu0
        %v3757 = vadd.f32 %v3708, %v3756
        %3758 = vmatmul.bf16.gmra.mxu0 %v3474
        %v3759 = vpop.f32.mrf.mxu0
        %v3760 = vadd.f32 %v3711, %v3759
        %v3761 = vpop.f32.mrf.mxu0
        %v3762 = vadd.f32 %v3713, %v3761
        %3763 = vmatmul.bf16.gmra.mxu0 %v3478
        %v3764 = vpop.f32.mrf.mxu0
        %v3765 = vadd.f32 %v3716, %v3764
        %v3766 = vpop.f32.mrf.mxu0
        %v3767 = vadd.f32 %v3718, %v3766
        %3768 = vmatmul.bf16.gmra.mxu0 %v3482
        %v3769 = vpop.f32.mrf.mxu0
        %v3770 = vadd.f32 %v3721, %v3769
        %v3771 = vpop.f32.mrf.mxu0
        %v3772 = vadd.f32 %v3723, %v3771
        %3773 = vmatmul.bf16.gmra.mxu0 %v3486
        %v3774 = vpop.f32.mrf.mxu0
        %v3775 = vadd.f32 %v3726, %v3774
        %v3776 = vpop.f32.mrf.mxu0
        %v3777 = vadd.f32 %v3728, %v3776
        %3778 = vmatmul.bf16.gmra.mxu0 %v3490
        %v3779 = vpop.f32.mrf.mxu0
        %v3780 = vadd.f32 %v3731, %v3779
        %v3781 = vpop.f32.mrf.mxu0
        %v3782 = vadd.f32 %v3733, %v3781
        %3783 = vdwg.mxu0
        %3784 = vmatpush.bf16.msra.mxu0 %v3645
        %3785 = vmatpush.bf16.msra.mxu0 %v3644
        %3786 = vmatpush.bf16.msra.mxu0 %v3643
        %3787 = vmatpush.bf16.msra.mxu0 %v3642
        %3788 = vmatpush.bf16.msra.mxu0 %v3641
        %3789 = vmatpush.bf16.msra.mxu0 %v3640
        %3790 = vmatpush.bf16.msra.mxu0 %v3639
        %3791 = vmatpush.bf16.msra.mxu0 %v3638
        %3792 = vmatmul.bf16.gmra.mxu0 %v3463
        %v3793 = vpop.f32.mrf.mxu0
        %v3794 = vadd.f32 %v3745, %v3793
        %v3795 = vpop.f32.mrf.mxu0
        %v3796 = vadd.f32 %v3747, %v3795
        %3797 = vmatmul.bf16.gmra.mxu0 %v3467
        %v3798 = vpop.f32.mrf.mxu0
        %v3799 = vadd.f32 %v3750, %v3798
        %v3800 = vpop.f32.mrf.mxu0
        %v3801 = vadd.f32 %v3752, %v3800
        %3802 = vmatmul.bf16.gmra.mxu0 %v3471
        %v3803 = vpop.f32.mrf.mxu0
        %v3804 = vadd.f32 %v3755, %v3803
        %v3805 = vpop.f32.mrf.mxu0
        %v3806 = vadd.f32 %v3757, %v3805
        %3807 = vmatmul.bf16.gmra.mxu0 %v3475
        %v3808 = vpop.f32.mrf.mxu0
        %v3809 = vadd.f32 %v3760, %v3808
        %v3810 = vpop.f32.mrf.mxu0
        %v3811 = vadd.f32 %v3762, %v3810
        %3812 = vmatmul.bf16.gmra.mxu0 %v3479
        %v3813 = vpop.f32.mrf.mxu0
        %v3814 = vadd.f32 %v3765, %v3813
        %v3815 = vpop.f32.mrf.mxu0
        %v3816 = vadd.f32 %v3767, %v3815
        %3817 = vmatmul.bf16.gmra.mxu0 %v3483
        %v3818 = vpop.f32.mrf.mxu0
        %v3819 = vadd.f32 %v3770, %v3818
        %v3820 = vpop.f32.mrf.mxu0
        %v3821 = vadd.f32 %v3772, %v3820
        %3822 = vmatmul.bf16.gmra.mxu0 %v3487
        %v3823 = vpop.f32.mrf.mxu0
        %v3824 = vadd.f32 %v3775, %v3823
        %v3825 = vpop.f32.mrf.mxu0
        %v3826 = vadd.f32 %v3777, %v3825
        %3827 = vmatmul.bf16.gmra.mxu0 %v3491
        %v3828 = vpop.f32.mrf.mxu0
        %v3829 = vadd.f32 %v3780, %v3828
        %v3830 = vpop.f32.mrf.mxu0
        %v3831 = vadd.f32 %v3782, %v3830
        %3832 = vdwg.mxu0
        %3833 = vmatpush.bf16.msra.mxu0 %v3653
        %3834 = vmatpush.bf16.msra.mxu0 %v3652
        %3835 = vmatpush.bf16.msra.mxu0 %v3651
        %3836 = vmatpush.bf16.msra.mxu0 %v3650
        %3837 = vmatpush.bf16.msra.mxu0 %v3649
        %3838 = vmatpush.bf16.msra.mxu0 %v3648
        %3839 = vmatpush.bf16.msra.mxu0 %v3647
        %3840 = vmatpush.bf16.msra.mxu0 %v3646
        %3841 = vmatmul.bf16.gmra.mxu0 %v3464
        %v3842 = vpop.f32.mrf.mxu0
        %v3843 = vadd.f32 %v3794, %v3842
        %v3844 = vpop.f32.mrf.mxu0
        %v3845 = vadd.f32 %v3796, %v3844
        %3846 = vmatmul.bf16.gmra.mxu0 %v3468
        %v3847 = vpop.f32.mrf.mxu0
        %v3848 = vadd.f32 %v3799, %v3847
        %v3849 = vpop.f32.mrf.mxu0
        %v3850 = vadd.f32 %v3801, %v3849
        %3851 = vmatmul.bf16.gmra.mxu0 %v3472
        %v3852 = vpop.f32.mrf.mxu0
        %v3853 = vadd.f32 %v3804, %v3852
        %v3854 = vpop.f32.mrf.mxu0
        %v3855 = vadd.f32 %v3806, %v3854
        %3856 = vmatmul.bf16.gmra.mxu0 %v3476
        %v3857 = vpop.f32.mrf.mxu0
        %v3858 = vadd.f32 %v3809, %v3857
        %v3859 = vpop.f32.mrf.mxu0
        %v3860 = vadd.f32 %v3811, %v3859
        %3861 = vmatmul.bf16.gmra.mxu0 %v3480
        %v3862 = vpop.f32.mrf.mxu0
        %v3863 = vadd.f32 %v3814, %v3862
        %v3864 = vpop.f32.mrf.mxu0
        %v3865 = vadd.f32 %v3816, %v3864
        %3866 = vmatmul.bf16.gmra.mxu0 %v3484
        %v3867 = vpop.f32.mrf.mxu0
        %v3868 = vadd.f32 %v3819, %v3867
        %v3869 = vpop.f32.mrf.mxu0
        %v3870 = vadd.f32 %v3821, %v3869
        %3871 = vmatmul.bf16.gmra.mxu0 %v3488
        %v3872 = vpop.f32.mrf.mxu0
        %v3873 = vadd.f32 %v3824, %v3872
        %v3874 = vpop.f32.mrf.mxu0
        %v3875 = vadd.f32 %v3826, %v3874
        %3876 = vmatmul.bf16.gmra.mxu0 %v3492
        %v3877 = vpop.f32.mrf.mxu0
        %v3878 = vadd.f32 %v3829, %v3877
        %v3879 = vpop.f32.mrf.mxu0
        %v3880 = vadd.f32 %v3831, %v3879
        %3881 = vdwg.mxu0
        %v3882 = vadd.f32 %v3843, %v2183
        %v3883 = vadd.f32 %v3845, %v2185
        %v3884 = vadd.f32 %v3848, %v2188
        %v3885 = vadd.f32 %v3850, %v2190
        %v3886 = vadd.f32 %v3853, %v2193
        %v3887 = vadd.f32 %v3855, %v2195
        %v3888 = vadd.f32 %v3858, %v2198
        %v3889 = vadd.f32 %v3860, %v2200
        %v3890 = vadd.f32 %v3863, %v2203
        %v3891 = vadd.f32 %v3865, %v2205
        %v3892 = vadd.f32 %v3868, %v2208
        %v3893 = vadd.f32 %v3870, %v2210
        %v3894 = vadd.f32 %v3873, %v2213
        %v3895 = vadd.f32 %v3875, %v2215
        %v3896 = vadd.f32 %v3878, %v2218
        %v3897 = vadd.f32 %v3880, %v2220
        %3898 = vadd.xlane.f32.xlu0 %v3882
        %v3899 = vpop.xlane.xlu0 %3898
        %3900 = vadd.xlane.f32.xlu0 %v3883
        %v3901 = vpop.xlane.xlu0 %3900
        %3902 = vadd.xlane.f32.xlu0 %v3884
        %v3903 = vpop.xlane.xlu0 %3902
        %3904 = vadd.xlane.f32.xlu0 %v3885
        %v3905 = vpop.xlane.xlu0 %3904
        %3906 = vadd.xlane.f32.xlu0 %v3886
        %v3907 = vpop.xlane.xlu0 %3906
        %3908 = vadd.xlane.f32.xlu0 %v3887
        %v3909 = vpop.xlane.xlu0 %3908
        %3910 = vadd.xlane.f32.xlu0 %v3888
        %v3911 = vpop.xlane.xlu0 %3910
        %3912 = vadd.xlane.f32.xlu0 %v3889
        %v3913 = vpop.xlane.xlu0 %3912
        %3914 = vadd.xlane.f32.xlu0 %v3890
        %v3915 = vpop.xlane.xlu0 %3914
        %3916 = vadd.xlane.f32.xlu0 %v3891
        %v3917 = vpop.xlane.xlu0 %3916
        %3918 = vadd.xlane.f32.xlu0 %v3892
        %v3919 = vpop.xlane.xlu0 %3918
        %3920 = vadd.xlane.f32.xlu0 %v3893
        %v3921 = vpop.xlane.xlu0 %3920
        %3922 = vadd.xlane.f32.xlu0 %v3894
        %v3923 = vpop.xlane.xlu0 %3922
        %3924 = vadd.xlane.f32.xlu0 %v3895
        %v3925 = vpop.xlane.xlu0 %3924
        %3926 = vadd.xlane.f32.xlu0 %v3896
        %v3927 = vpop.xlane.xlu0 %3926
        %3928 = vadd.xlane.f32.xlu0 %v3897
        %v3929 = vpop.xlane.xlu0 %3928
        %v3930 = vmul.f32 %v3899, %v645
        %v3931 = vmul.f32 %v3901, %v645
        %v3932 = vmul.f32 %v3903, %v645
        %v3933 = vmul.f32 %v3905, %v645
        %v3934 = vmul.f32 %v3907, %v645
        %v3935 = vmul.f32 %v3909, %v645
        %v3936 = vmul.f32 %v3911, %v645
        %v3937 = vmul.f32 %v3913, %v645
        %v3938 = vmul.f32 %v3915, %v645
        %v3939 = vmul.f32 %v3917, %v645
        %v3940 = vmul.f32 %v3919, %v645
        %v3941 = vmul.f32 %v3921, %v645
        %v3942 = vmul.f32 %v3923, %v645
        %v3943 = vmul.f32 %v3925, %v645
        %v3944 = vmul.f32 %v3927, %v645
        %v3945 = vmul.f32 %v3929, %v645
        %v3946 = vmul.f32 %v3882, %v3882
        %v3947 = vmul.f32 %v3883, %v3883
        %v3948 = vmul.f32 %v3884, %v3884
        %v3949 = vmul.f32 %v3885, %v3885
        %v3950 = vmul.f32 %v3886, %v3886
        %v3951 = vmul.f32 %v3887, %v3887
        %v3952 = vmul.f32 %v3888, %v3888
        %v3953 = vmul.f32 %v3889, %v3889
        %v3954 = vmul.f32 %v3890, %v3890
        %v3955 = vmul.f32 %v3891, %v3891
        %v3956 = vmul.f32 %v3892, %v3892
        %v3957 = vmul.f32 %v3893, %v3893
        %v3958 = vmul.f32 %v3894, %v3894
        %v3959 = vmul.f32 %v3895, %v3895
        %v3960 = vmul.f32 %v3896, %v3896
        %v3961 = vmul.f32 %v3897, %v3897
        %3962 = vadd.xlane.f32.xlu0 %v3946
        %v3963 = vpop.xlane.xlu0 %3962
        %3964 = vadd.xlane.f32.xlu0 %v3947
        %v3965 = vpop.xlane.xlu0 %3964
        %3966 = vadd.xlane.f32.xlu0 %v3948
        %v3967 = vpop.xlane.xlu0 %3966
        %3968 = vadd.xlane.f32.xlu0 %v3949
        %v3969 = vpop.xlane.xlu0 %3968
        %3970 = vadd.xlane.f32.xlu0 %v3950
        %v3971 = vpop.xlane.xlu0 %3970
        %3972 = vadd.xlane.f32.xlu0 %v3951
        %v3973 = vpop.xlane.xlu0 %3972
        %3974 = vadd.xlane.f32.xlu0 %v3952
        %v3975 = vpop.xlane.xlu0 %3974
        %3976 = vadd.xlane.f32.xlu0 %v3953
        %v3977 = vpop.xlane.xlu0 %3976
        %3978 = vadd.xlane.f32.xlu0 %v3954
        %v3979 = vpop.xlane.xlu0 %3978
        %3980 = vadd.xlane.f32.xlu0 %v3955
        %v3981 = vpop.xlane.xlu0 %3980
        %3982 = vadd.xlane.f32.xlu0 %v3956
        %v3983 = vpop.xlane.xlu0 %3982
        %3984 = vadd.xlane.f32.xlu0 %v3957
        %v3985 = vpop.xlane.xlu0 %3984
        %3986 = vadd.xlane.f32.xlu0 %v3958
        %v3987 = vpop.xlane.xlu0 %3986
        %3988 = vadd.xlane.f32.xlu0 %v3959
        %v3989 = vpop.xlane.xlu0 %3988
        %3990 = vadd.xlane.f32.xlu0 %v3960
        %v3991 = vpop.xlane.xlu0 %3990
        %3992 = vadd.xlane.f32.xlu0 %v3961
        %v3993 = vpop.xlane.xlu0 %3992
        %v3994 = vmul.f32 %v3963, %v645
        %v3995 = vmul.f32 %v3965, %v645
        %v3996 = vmul.f32 %v3967, %v645
        %v3997 = vmul.f32 %v3969, %v645
        %v3998 = vmul.f32 %v3971, %v645
        %v3999 = vmul.f32 %v3973, %v645
        %v4000 = vmul.f32 %v3975, %v645
        %v4001 = vmul.f32 %v3977, %v645
        %v4002 = vmul.f32 %v3979, %v645
        %v4003 = vmul.f32 %v3981, %v645
        %v4004 = vmul.f32 %v3983, %v645
        %v4005 = vmul.f32 %v3985, %v645
        %v4006 = vmul.f32 %v3987, %v645
        %v4007 = vmul.f32 %v3989, %v645
        %v4008 = vmul.f32 %v3991, %v645
        %v4009 = vmul.f32 %v3993, %v645
        %v4010 = vmul.f32 %v3930, %v3930
        %v4011 = vmul.f32 %v3931, %v3931
        %v4012 = vmul.f32 %v3932, %v3932
        %v4013 = vmul.f32 %v3933, %v3933
        %v4014 = vmul.f32 %v3934, %v3934
        %v4015 = vmul.f32 %v3935, %v3935
        %v4016 = vmul.f32 %v3936, %v3936
        %v4017 = vmul.f32 %v3937, %v3937
        %v4018 = vmul.f32 %v3938, %v3938
        %v4019 = vmul.f32 %v3939, %v3939
        %v4020 = vmul.f32 %v3940, %v3940
        %v4021 = vmul.f32 %v3941, %v3941
        %v4022 = vmul.f32 %v3942, %v3942
        %v4023 = vmul.f32 %v3943, %v3943
        %v4024 = vmul.f32 %v3944, %v3944
        %v4025 = vmul.f32 %v3945, %v3945
        %v4026 = vsub.f32 %v3994, %v4010
        %v4027 = vsub.f32 %v3995, %v4011
        %v4028 = vsub.f32 %v3996, %v4012
        %v4029 = vsub.f32 %v3997, %v4013
        %v4030 = vsub.f32 %v3998, %v4014
        %v4031 = vsub.f32 %v3999, %v4015
        %v4032 = vsub.f32 %v4000, %v4016
        %v4033 = vsub.f32 %v4001, %v4017
        %v4034 = vsub.f32 %v4002, %v4018
        %v4035 = vsub.f32 %v4003, %v4019
        %v4036 = vsub.f32 %v4004, %v4020
        %v4037 = vsub.f32 %v4005, %v4021
        %v4038 = vsub.f32 %v4006, %v4022
        %v4039 = vsub.f32 %v4007, %v4023
        %v4040 = vsub.f32 %v4008, %v4024
        %v4041 = vsub.f32 %v4009, %v4025
        %v4042 = vsub.f32 %v3882, %v3930
        %v4043 = vsub.f32 %v3883, %v3931
        %v4044 = vsub.f32 %v3884, %v3932
        %v4045 = vsub.f32 %v3885, %v3933
        %v4046 = vsub.f32 %v3886, %v3934
        %v4047 = vsub.f32 %v3887, %v3935
        %v4048 = vsub.f32 %v3888, %v3936
        %v4049 = vsub.f32 %v3889, %v3937
        %v4050 = vsub.f32 %v3890, %v3938
        %v4051 = vsub.f32 %v3891, %v3939
        %v4052 = vsub.f32 %v3892, %v3940
        %v4053 = vsub.f32 %v3893, %v3941
        %v4054 = vsub.f32 %v3894, %v3942
        %v4055 = vsub.f32 %v3895, %v3943
        %v4056 = vsub.f32 %v3896, %v3944
        %v4057 = vsub.f32 %v3897, %v3945
        %v4058 = vadd.f32 %v4026, 1e-05
        %v4059 = vadd.f32 %v4027, 1e-05
        %v4060 = vadd.f32 %v4028, 1e-05
        %v4061 = vadd.f32 %v4029, 1e-05
        %v4062 = vadd.f32 %v4030, 1e-05
        %v4063 = vadd.f32 %v4031, 1e-05
        %v4064 = vadd.f32 %v4032, 1e-05
        %v4065 = vadd.f32 %v4033, 1e-05
        %v4066 = vadd.f32 %v4034, 1e-05
        %v4067 = vadd.f32 %v4035, 1e-05
        %v4068 = vadd.f32 %v4036, 1e-05
        %v4069 = vadd.f32 %v4037, 1e-05
        %v4070 = vadd.f32 %v4038, 1e-05
        %v4071 = vadd.f32 %v4039, 1e-05
        %v4072 = vadd.f32 %v4040, 1e-05
        %v4073 = vadd.f32 %v4041, 1e-05
        %v4074 = vrsqrt.pop %v4058
        %v4075 = vmul.f32 %v4074, %v4058
        %v4076 = vmul.f32 %v4075, %v4074
        %v4077 = vmul.f32 0.5, %v4076
        %v4078 = vsub.f32 1.5, %v4077
        %v4079 = vmul.f32 %v4074, %v4078
        %vm4080 = vweird.f32 %v4058
        %vm4081 = vweird.f32 %v4074
        %vm4082 = vmor %vm4080, %vm4081
        %v4083 = vsel %vm4082, %v4074, %v4079
        %v4084 = vrsqrt.pop %v4059
        %v4085 = vmul.f32 %v4084, %v4059
        %v4086 = vmul.f32 %v4085, %v4084
        %v4087 = vmul.f32 0.5, %v4086
        %v4088 = vsub.f32 1.5, %v4087
        %v4089 = vmul.f32 %v4084, %v4088
        %vm4090 = vweird.f32 %v4059
        %vm4091 = vweird.f32 %v4084
        %vm4092 = vmor %vm4090, %vm4091
        %v4093 = vsel %vm4092, %v4084, %v4089
        %v4094 = vrsqrt.pop %v4060
        %v4095 = vmul.f32 %v4094, %v4060
        %v4096 = vmul.f32 %v4095, %v4094
        %v4097 = vmul.f32 0.5, %v4096
        %v4098 = vsub.f32 1.5, %v4097
        %v4099 = vmul.f32 %v4094, %v4098
        %vm4100 = vweird.f32 %v4060
        %vm4101 = vweird.f32 %v4094
        %vm4102 = vmor %vm4100, %vm4101
        %v4103 = vsel %vm4102, %v4094, %v4099
        %v4104 = vrsqrt.pop %v4061
        %v4105 = vmul.f32 %v4104, %v4061
        %v4106 = vmul.f32 %v4105, %v4104
        %v4107 = vmul.f32 0.5, %v4106
        %v4108 = vsub.f32 1.5, %v4107
        %v4109 = vmul.f32 %v4104, %v4108
        %vm4110 = vweird.f32 %v4061
        %vm4111 = vweird.f32 %v4104
        %vm4112 = vmor %vm4110, %vm4111
        %v4113 = vsel %vm4112, %v4104, %v4109
        %v4114 = vrsqrt.pop %v4062
        %v4115 = vmul.f32 %v4114, %v4062
        %v4116 = vmul.f32 %v4115, %v4114
        %v4117 = vmul.f32 0.5, %v4116
        %v4118 = vsub.f32 1.5, %v4117
        %v4119 = vmul.f32 %v4114, %v4118
        %vm4120 = vweird.f32 %v4062
        %vm4121 = vweird.f32 %v4114
        %vm4122 = vmor %vm4120, %vm4121
        %v4123 = vsel %vm4122, %v4114, %v4119
        %v4124 = vrsqrt.pop %v4063
        %v4125 = vmul.f32 %v4124, %v4063
        %v4126 = vmul.f32 %v4125, %v4124
        %v4127 = vmul.f32 0.5, %v4126
        %v4128 = vsub.f32 1.5, %v4127
        %v4129 = vmul.f32 %v4124, %v4128
        %vm4130 = vweird.f32 %v4063
        %vm4131 = vweird.f32 %v4124
        %vm4132 = vmor %vm4130, %vm4131
        %v4133 = vsel %vm4132, %v4124, %v4129
        %v4134 = vrsqrt.pop %v4064
        %v4135 = vmul.f32 %v4134, %v4064
        %v4136 = vmul.f32 %v4135, %v4134
        %v4137 = vmul.f32 0.5, %v4136
        %v4138 = vsub.f32 1.5, %v4137
        %v4139 = vmul.f32 %v4134, %v4138
        %vm4140 = vweird.f32 %v4064
        %vm4141 = vweird.f32 %v4134
        %vm4142 = vmor %vm4140, %vm4141
        %v4143 = vsel %vm4142, %v4134, %v4139
        %v4144 = vrsqrt.pop %v4065
        %v4145 = vmul.f32 %v4144, %v4065
        %v4146 = vmul.f32 %v4145, %v4144
        %v4147 = vmul.f32 0.5, %v4146
        %v4148 = vsub.f32 1.5, %v4147
        %v4149 = vmul.f32 %v4144, %v4148
        %vm4150 = vweird.f32 %v4065
        %vm4151 = vweird.f32 %v4144
        %vm4152 = vmor %vm4150, %vm4151
        %v4153 = vsel %vm4152, %v4144, %v4149
        %v4154 = vrsqrt.pop %v4066
        %v4155 = vmul.f32 %v4154, %v4066
        %v4156 = vmul.f32 %v4155, %v4154
        %v4157 = vmul.f32 0.5, %v4156
        %v4158 = vsub.f32 1.5, %v4157
        %v4159 = vmul.f32 %v4154, %v4158
        %vm4160 = vweird.f32 %v4066
        %vm4161 = vweird.f32 %v4154
        %vm4162 = vmor %vm4160, %vm4161
        %v4163 = vsel %vm4162, %v4154, %v4159
        %v4164 = vrsqrt.pop %v4067
        %v4165 = vmul.f32 %v4164, %v4067
        %v4166 = vmul.f32 %v4165, %v4164
        %v4167 = vmul.f32 0.5, %v4166
        %v4168 = vsub.f32 1.5, %v4167
        %v4169 = vmul.f32 %v4164, %v4168
        %vm4170 = vweird.f32 %v4067
        %vm4171 = vweird.f32 %v4164
        %vm4172 = vmor %vm4170, %vm4171
        %v4173 = vsel %vm4172, %v4164, %v4169
        %v4174 = vrsqrt.pop %v4068
        %v4175 = vmul.f32 %v4174, %v4068
        %v4176 = vmul.f32 %v4175, %v4174
        %v4177 = vmul.f32 0.5, %v4176
        %v4178 = vsub.f32 1.5, %v4177
        %v4179 = vmul.f32 %v4174, %v4178
        %vm4180 = vweird.f32 %v4068
        %vm4181 = vweird.f32 %v4174
        %vm4182 = vmor %vm4180, %vm4181
        %v4183 = vsel %vm4182, %v4174, %v4179
        %v4184 = vrsqrt.pop %v4069
        %v4185 = vmul.f32 %v4184, %v4069
        %v4186 = vmul.f32 %v4185, %v4184
        %v4187 = vmul.f32 0.5, %v4186
        %v4188 = vsub.f32 1.5, %v4187
        %v4189 = vmul.f32 %v4184, %v4188
        %vm4190 = vweird.f32 %v4069
        %vm4191 = vweird.f32 %v4184
        %vm4192 = vmor %vm4190, %vm4191
        %v4193 = vsel %vm4192, %v4184, %v4189
        %v4194 = vrsqrt.pop %v4070
        %v4195 = vmul.f32 %v4194, %v4070
        %v4196 = vmul.f32 %v4195, %v4194
        %v4197 = vmul.f32 0.5, %v4196
        %v4198 = vsub.f32 1.5, %v4197
        %v4199 = vmul.f32 %v4194, %v4198
        %vm4200 = vweird.f32 %v4070
        %vm4201 = vweird.f32 %v4194
        %vm4202 = vmor %vm4200, %vm4201
        %v4203 = vsel %vm4202, %v4194, %v4199
        %v4204 = vrsqrt.pop %v4071
        %v4205 = vmul.f32 %v4204, %v4071
        %v4206 = vmul.f32 %v4205, %v4204
        %v4207 = vmul.f32 0.5, %v4206
        %v4208 = vsub.f32 1.5, %v4207
        %v4209 = vmul.f32 %v4204, %v4208
        %vm4210 = vweird.f32 %v4071
        %vm4211 = vweird.f32 %v4204
        %vm4212 = vmor %vm4210, %vm4211
        %v4213 = vsel %vm4212, %v4204, %v4209
        %v4214 = vrsqrt.pop %v4072
        %v4215 = vmul.f32 %v4214, %v4072
        %v4216 = vmul.f32 %v4215, %v4214
        %v4217 = vmul.f32 0.5, %v4216
        %v4218 = vsub.f32 1.5, %v4217
        %v4219 = vmul.f32 %v4214, %v4218
        %vm4220 = vweird.f32 %v4072
        %vm4221 = vweird.f32 %v4214
        %vm4222 = vmor %vm4220, %vm4221
        %v4223 = vsel %vm4222, %v4214, %v4219
        %v4224 = vrsqrt.pop %v4073
        %v4225 = vmul.f32 %v4224, %v4073
        %v4226 = vmul.f32 %v4225, %v4224
        %v4227 = vmul.f32 0.5, %v4226
        %v4228 = vsub.f32 1.5, %v4227
        %v4229 = vmul.f32 %v4224, %v4228
        %vm4230 = vweird.f32 %v4073
        %vm4231 = vweird.f32 %v4224
        %vm4232 = vmor %vm4230, %vm4231
        %v4233 = vsel %vm4232, %v4224, %v4229
        %v4234 = vmul.f32 %v4042, %v4083
        %v4235 = vmul.f32 %v4043, %v4093
        %v4236 = vmul.f32 %v4044, %v4103
        %v4237 = vmul.f32 %v4045, %v4113
        %v4238 = vmul.f32 %v4046, %v4123
        %v4239 = vmul.f32 %v4047, %v4133
        %v4240 = vmul.f32 %v4048, %v4143
        %v4241 = vmul.f32 %v4049, %v4153
        %v4242 = vmul.f32 %v4050, %v4163
        %v4243 = vmul.f32 %v4051, %v4173
        %v4244 = vmul.f32 %v4052, %v4183
        %v4245 = vmul.f32 %v4053, %v4193
        %v4246 = vmul.f32 %v4054, %v4203
        %v4247 = vmul.f32 %v4055, %v4213
        %v4248 = vmul.f32 %v4056, %v4223
        %v4249 = vmul.f32 %v4057, %v4233
        %v4250 = vperm.slane %v419, 1
        %v4251 = vmul.f32 %v4234, %v4250
        %v4252 = vmul.f32 %v4235, %v4250
        %v4253 = vmul.f32 %v4236, %v4250
        %v4254 = vmul.f32 %v4237, %v4250
        %v4255 = vmul.f32 %v4238, %v4250
        %v4256 = vmul.f32 %v4239, %v4250
        %v4257 = vmul.f32 %v4240, %v4250
        %v4258 = vmul.f32 %v4241, %v4250
        %v4259 = vmul.f32 %v4242, %v4250
        %v4260 = vmul.f32 %v4243, %v4250
        %v4261 = vmul.f32 %v4244, %v4250
        %v4262 = vmul.f32 %v4245, %v4250
        %v4263 = vmul.f32 %v4246, %v4250
        %v4264 = vmul.f32 %v4247, %v4250
        %v4265 = vmul.f32 %v4248, %v4250
        %v4266 = vmul.f32 %v4249, %v4250
        %v4267 = vperm.slane %v419, 2
        %v4268 = vadd.f32 %v4251, %v4267
        %v4269 = vadd.f32 %v4252, %v4267
        %v4270 = vadd.f32 %v4253, %v4267
        %v4271 = vadd.f32 %v4254, %v4267
        %v4272 = vadd.f32 %v4255, %v4267
        %v4273 = vadd.f32 %v4256, %v4267
        %v4274 = vadd.f32 %v4257, %v4267
        %v4275 = vadd.f32 %v4258, %v4267
        %v4276 = vadd.f32 %v4259, %v4267
        %v4277 = vadd.f32 %v4260, %v4267
        %v4278 = vadd.f32 %v4261, %v4267
        %v4279 = vadd.f32 %v4262, %v4267
        %v4280 = vadd.f32 %v4263, %v4267
        %v4281 = vadd.f32 %v4264, %v4267
        %v4282 = vadd.f32 %v4265, %v4267
        %v4283 = vadd.f32 %v4266, %v4267
        %4284 = vadd.xlane.f32.xlu0 %v4268
        %v4285 = vpop.xlane.xlu0 %4284
        %4286 = vadd.xlane.f32.xlu0 %v4269
        %v4287 = vpop.xlane.xlu0 %4286
        %4288 = vadd.xlane.f32.xlu0 %v4270
        %v4289 = vpop.xlane.xlu0 %4288
        %4290 = vadd.xlane.f32.xlu0 %v4271
        %v4291 = vpop.xlane.xlu0 %4290
        %4292 = vadd.xlane.f32.xlu0 %v4272
        %v4293 = vpop.xlane.xlu0 %4292
        %4294 = vadd.xlane.f32.xlu0 %v4273
        %v4295 = vpop.xlane.xlu0 %4294
        %4296 = vadd.xlane.f32.xlu0 %v4274
        %v4297 = vpop.xlane.xlu0 %4296
        %4298 = vadd.xlane.f32.xlu0 %v4275
        %v4299 = vpop.xlane.xlu0 %4298
        %4300 = vadd.xlane.f32.xlu0 %v4276
        %v4301 = vpop.xlane.xlu0 %4300
        %4302 = vadd.xlane.f32.xlu0 %v4277
        %v4303 = vpop.xlane.xlu0 %4302
        %4304 = vadd.xlane.f32.xlu0 %v4278
        %v4305 = vpop.xlane.xlu0 %4304
        %4306 = vadd.xlane.f32.xlu0 %v4279
        %v4307 = vpop.xlane.xlu0 %4306
        %4308 = vadd.xlane.f32.xlu0 %v4280
        %v4309 = vpop.xlane.xlu0 %4308
        %4310 = vadd.xlane.f32.xlu0 %v4281
        %v4311 = vpop.xlane.xlu0 %4310
        %4312 = vadd.xlane.f32.xlu0 %v4282
        %v4313 = vpop.xlane.xlu0 %4312
        %4314 = vadd.xlane.f32.xlu0 %v4283
        %v4315 = vpop.xlane.xlu0 %4314
        %v4316 = vmul.f32 %v4285, %v645
        %v4317 = vmul.f32 %v4287, %v645
        %v4318 = vmul.f32 %v4289, %v645
        %v4319 = vmul.f32 %v4291, %v645
        %v4320 = vmul.f32 %v4293, %v645
        %v4321 = vmul.f32 %v4295, %v645
        %v4322 = vmul.f32 %v4297, %v645
        %v4323 = vmul.f32 %v4299, %v645
        %v4324 = vmul.f32 %v4301, %v645
        %v4325 = vmul.f32 %v4303, %v645
        %v4326 = vmul.f32 %v4305, %v645
        %v4327 = vmul.f32 %v4307, %v645
        %v4328 = vmul.f32 %v4309, %v645
        %v4329 = vmul.f32 %v4311, %v645
        %v4330 = vmul.f32 %v4313, %v645
        %v4331 = vmul.f32 %v4315, %v645
        %v4332 = vmul.f32 %v4268, %v4268
        %v4333 = vmul.f32 %v4269, %v4269
        %v4334 = vmul.f32 %v4270, %v4270
        %v4335 = vmul.f32 %v4271, %v4271
        %v4336 = vmul.f32 %v4272, %v4272
        %v4337 = vmul.f32 %v4273, %v4273
        %v4338 = vmul.f32 %v4274, %v4274
        %v4339 = vmul.f32 %v4275, %v4275
        %v4340 = vmul.f32 %v4276, %v4276
        %v4341 = vmul.f32 %v4277, %v4277
        %v4342 = vmul.f32 %v4278, %v4278
        %v4343 = vmul.f32 %v4279, %v4279
        %v4344 = vmul.f32 %v4280, %v4280
        %v4345 = vmul.f32 %v4281, %v4281
        %v4346 = vmul.f32 %v4282, %v4282
        %v4347 = vmul.f32 %v4283, %v4283
        %4348 = vadd.xlane.f32.xlu0 %v4332
        %v4349 = vpop.xlane.xlu0 %4348
        %4350 = vadd.xlane.f32.xlu0 %v4333
        %v4351 = vpop.xlane.xlu0 %4350
        %4352 = vadd.xlane.f32.xlu0 %v4334
        %v4353 = vpop.xlane.xlu0 %4352
        %4354 = vadd.xlane.f32.xlu0 %v4335
        %v4355 = vpop.xlane.xlu0 %4354
        %4356 = vadd.xlane.f32.xlu0 %v4336
        %v4357 = vpop.xlane.xlu0 %4356
        %4358 = vadd.xlane.f32.xlu0 %v4337
        %v4359 = vpop.xlane.xlu0 %4358
        %4360 = vadd.xlane.f32.xlu0 %v4338
        %v4361 = vpop.xlane.xlu0 %4360
        %4362 = vadd.xlane.f32.xlu0 %v4339
        %v4363 = vpop.xlane.xlu0 %4362
        %4364 = vadd.xlane.f32.xlu0 %v4340
        %v4365 = vpop.xlane.xlu0 %4364
        %4366 = vadd.xlane.f32.xlu0 %v4341
        %v4367 = vpop.xlane.xlu0 %4366
        %4368 = vadd.xlane.f32.xlu0 %v4342
        %v4369 = vpop.xlane.xlu0 %4368
        %4370 = vadd.xlane.f32.xlu0 %v4343
        %v4371 = vpop.xlane.xlu0 %4370
        %4372 = vadd.xlane.f32.xlu0 %v4344
        %v4373 = vpop.xlane.xlu0 %4372
        %4374 = vadd.xlane.f32.xlu0 %v4345
        %v4375 = vpop.xlane.xlu0 %4374
        %4376 = vadd.xlane.f32.xlu0 %v4346
        %v4377 = vpop.xlane.xlu0 %4376
        %4378 = vadd.xlane.f32.xlu0 %v4347
        %v4379 = vpop.xlane.xlu0 %4378
        %v4380 = vmul.f32 %v4349, %v645
        %v4381 = vmul.f32 %v4351, %v645
        %v4382 = vmul.f32 %v4353, %v645
        %v4383 = vmul.f32 %v4355, %v645
        %v4384 = vmul.f32 %v4357, %v645
        %v4385 = vmul.f32 %v4359, %v645
        %v4386 = vmul.f32 %v4361, %v645
        %v4387 = vmul.f32 %v4363, %v645
        %v4388 = vmul.f32 %v4365, %v645
        %v4389 = vmul.f32 %v4367, %v645
        %v4390 = vmul.f32 %v4369, %v645
        %v4391 = vmul.f32 %v4371, %v645
        %v4392 = vmul.f32 %v4373, %v645
        %v4393 = vmul.f32 %v4375, %v645
        %v4394 = vmul.f32 %v4377, %v645
        %v4395 = vmul.f32 %v4379, %v645
        %v4396 = vmul.f32 %v4316, %v4316
        %v4397 = vmul.f32 %v4317, %v4317
        %v4398 = vmul.f32 %v4318, %v4318
        %v4399 = vmul.f32 %v4319, %v4319
        %v4400 = vmul.f32 %v4320, %v4320
        %v4401 = vmul.f32 %v4321, %v4321
        %v4402 = vmul.f32 %v4322, %v4322
        %v4403 = vmul.f32 %v4323, %v4323
        %v4404 = vmul.f32 %v4324, %v4324
        %v4405 = vmul.f32 %v4325, %v4325
        %v4406 = vmul.f32 %v4326, %v4326
        %v4407 = vmul.f32 %v4327, %v4327
        %v4408 = vmul.f32 %v4328, %v4328
        %v4409 = vmul.f32 %v4329, %v4329
        %v4410 = vmul.f32 %v4330, %v4330
        %v4411 = vmul.f32 %v4331, %v4331
        %v4412 = vsub.f32 %v4380, %v4396
        %v4413 = vsub.f32 %v4381, %v4397
        %v4414 = vsub.f32 %v4382, %v4398
        %v4415 = vsub.f32 %v4383, %v4399
        %v4416 = vsub.f32 %v4384, %v4400
        %v4417 = vsub.f32 %v4385, %v4401
        %v4418 = vsub.f32 %v4386, %v4402
        %v4419 = vsub.f32 %v4387, %v4403
        %v4420 = vsub.f32 %v4388, %v4404
        %v4421 = vsub.f32 %v4389, %v4405
        %v4422 = vsub.f32 %v4390, %v4406
        %v4423 = vsub.f32 %v4391, %v4407
        %v4424 = vsub.f32 %v4392, %v4408
        %v4425 = vsub.f32 %v4393, %v4409
        %v4426 = vsub.f32 %v4394, %v4410
        %v4427 = vsub.f32 %v4395, %v4411
        %v4428 = vsub.f32 %v4268, %v4316
        %v4429 = vsub.f32 %v4269, %v4317
        %v4430 = vsub.f32 %v4270, %v4318
        %v4431 = vsub.f32 %v4271, %v4319
        %v4432 = vsub.f32 %v4272, %v4320
        %v4433 = vsub.f32 %v4273, %v4321
        %v4434 = vsub.f32 %v4274, %v4322
        %v4435 = vsub.f32 %v4275, %v4323
        %v4436 = vsub.f32 %v4276, %v4324
        %v4437 = vsub.f32 %v4277, %v4325
        %v4438 = vsub.f32 %v4278, %v4326
        %v4439 = vsub.f32 %v4279, %v4327
        %v4440 = vsub.f32 %v4280, %v4328
        %v4441 = vsub.f32 %v4281, %v4329
        %v4442 = vsub.f32 %v4282, %v4330
        %v4443 = vsub.f32 %v4283, %v4331
        %v4444 = vadd.f32 %v4412, 1e-05
        %v4445 = vadd.f32 %v4413, 1e-05
        %v4446 = vadd.f32 %v4414, 1e-05
        %v4447 = vadd.f32 %v4415, 1e-05
        %v4448 = vadd.f32 %v4416, 1e-05
        %v4449 = vadd.f32 %v4417, 1e-05
        %v4450 = vadd.f32 %v4418, 1e-05
        %v4451 = vadd.f32 %v4419, 1e-05
        %v4452 = vadd.f32 %v4420, 1e-05
        %v4453 = vadd.f32 %v4421, 1e-05
        %v4454 = vadd.f32 %v4422, 1e-05
        %v4455 = vadd.f32 %v4423, 1e-05
        %v4456 = vadd.f32 %v4424, 1e-05
        %v4457 = vadd.f32 %v4425, 1e-05
        %v4458 = vadd.f32 %v4426, 1e-05
        %v4459 = vadd.f32 %v4427, 1e-05
        %v4460 = vrsqrt.pop %v4444
        %v4461 = vmul.f32 %v4460, %v4444
        %v4462 = vmul.f32 %v4461, %v4460
        %v4463 = vmul.f32 0.5, %v4462
        %v4464 = vsub.f32 1.5, %v4463
        %v4465 = vmul.f32 %v4460, %v4464
        %vm4466 = vweird.f32 %v4444
        %vm4467 = vweird.f32 %v4460
        %vm4468 = vmor %vm4466, %vm4467
        %v4469 = vsel %vm4468, %v4460, %v4465
        %v4470 = vrsqrt.pop %v4445
        %v4471 = vmul.f32 %v4470, %v4445
        %v4472 = vmul.f32 %v4471, %v4470
        %v4473 = vmul.f32 0.5, %v4472
        %v4474 = vsub.f32 1.5, %v4473
        %v4475 = vmul.f32 %v4470, %v4474
        %vm4476 = vweird.f32 %v4445
        %vm4477 = vweird.f32 %v4470
        %vm4478 = vmor %vm4476, %vm4477
        %v4479 = vsel %vm4478, %v4470, %v4475
        %v4480 = vrsqrt.pop %v4446
        %v4481 = vmul.f32 %v4480, %v4446
        %v4482 = vmul.f32 %v4481, %v4480
        %v4483 = vmul.f32 0.5, %v4482
        %v4484 = vsub.f32 1.5, %v4483
        %v4485 = vmul.f32 %v4480, %v4484
        %vm4486 = vweird.f32 %v4446
        %vm4487 = vweird.f32 %v4480
        %vm4488 = vmor %vm4486, %vm4487
        %v4489 = vsel %vm4488, %v4480, %v4485
        %v4490 = vrsqrt.pop %v4447
        %v4491 = vmul.f32 %v4490, %v4447
        %v4492 = vmul.f32 %v4491, %v4490
        %v4493 = vmul.f32 0.5, %v4492
        %v4494 = vsub.f32 1.5, %v4493
        %v4495 = vmul.f32 %v4490, %v4494
        %vm4496 = vweird.f32 %v4447
        %vm4497 = vweird.f32 %v4490
        %vm4498 = vmor %vm4496, %vm4497
        %v4499 = vsel %vm4498, %v4490, %v4495
        %v4500 = vrsqrt.pop %v4448
        %v4501 = vmul.f32 %v4500, %v4448
        %v4502 = vmul.f32 %v4501, %v4500
        %v4503 = vmul.f32 0.5, %v4502
        %v4504 = vsub.f32 1.5, %v4503
        %v4505 = vmul.f32 %v4500, %v4504
        %vm4506 = vweird.f32 %v4448
        %vm4507 = vweird.f32 %v4500
        %vm4508 = vmor %vm4506, %vm4507
        %v4509 = vsel %vm4508, %v4500, %v4505
        %v4510 = vrsqrt.pop %v4449
        %v4511 = vmul.f32 %v4510, %v4449
        %v4512 = vmul.f32 %v4511, %v4510
        %v4513 = vmul.f32 0.5, %v4512
        %v4514 = vsub.f32 1.5, %v4513
        %v4515 = vmul.f32 %v4510, %v4514
        %vm4516 = vweird.f32 %v4449
        %vm4517 = vweird.f32 %v4510
        %vm4518 = vmor %vm4516, %vm4517
        %v4519 = vsel %vm4518, %v4510, %v4515
        %v4520 = vrsqrt.pop %v4450
        %v4521 = vmul.f32 %v4520, %v4450
        %v4522 = vmul.f32 %v4521, %v4520
        %v4523 = vmul.f32 0.5, %v4522
        %v4524 = vsub.f32 1.5, %v4523
        %v4525 = vmul.f32 %v4520, %v4524
        %vm4526 = vweird.f32 %v4450
        %vm4527 = vweird.f32 %v4520
        %vm4528 = vmor %vm4526, %vm4527
        %v4529 = vsel %vm4528, %v4520, %v4525
        %v4530 = vrsqrt.pop %v4451
        %v4531 = vmul.f32 %v4530, %v4451
        %v4532 = vmul.f32 %v4531, %v4530
        %v4533 = vmul.f32 0.5, %v4532
        %v4534 = vsub.f32 1.5, %v4533
        %v4535 = vmul.f32 %v4530, %v4534
        %vm4536 = vweird.f32 %v4451
        %vm4537 = vweird.f32 %v4530
        %vm4538 = vmor %vm4536, %vm4537
        %v4539 = vsel %vm4538, %v4530, %v4535
        %v4540 = vrsqrt.pop %v4452
        %v4541 = vmul.f32 %v4540, %v4452
        %v4542 = vmul.f32 %v4541, %v4540
        %v4543 = vmul.f32 0.5, %v4542
        %v4544 = vsub.f32 1.5, %v4543
        %v4545 = vmul.f32 %v4540, %v4544
        %vm4546 = vweird.f32 %v4452
        %vm4547 = vweird.f32 %v4540
        %vm4548 = vmor %vm4546, %vm4547
        %v4549 = vsel %vm4548, %v4540, %v4545
        %v4550 = vrsqrt.pop %v4453
        %v4551 = vmul.f32 %v4550, %v4453
        %v4552 = vmul.f32 %v4551, %v4550
        %v4553 = vmul.f32 0.5, %v4552
        %v4554 = vsub.f32 1.5, %v4553
        %v4555 = vmul.f32 %v4550, %v4554
        %vm4556 = vweird.f32 %v4453
        %vm4557 = vweird.f32 %v4550
        %vm4558 = vmor %vm4556, %vm4557
        %v4559 = vsel %vm4558, %v4550, %v4555
        %v4560 = vrsqrt.pop %v4454
        %v4561 = vmul.f32 %v4560, %v4454
        %v4562 = vmul.f32 %v4561, %v4560
        %v4563 = vmul.f32 0.5, %v4562
        %v4564 = vsub.f32 1.5, %v4563
        %v4565 = vmul.f32 %v4560, %v4564
        %vm4566 = vweird.f32 %v4454
        %vm4567 = vweird.f32 %v4560
        %vm4568 = vmor %vm4566, %vm4567
        %v4569 = vsel %vm4568, %v4560, %v4565
        %v4570 = vrsqrt.pop %v4455
        %v4571 = vmul.f32 %v4570, %v4455
        %v4572 = vmul.f32 %v4571, %v4570
        %v4573 = vmul.f32 0.5, %v4572
        %v4574 = vsub.f32 1.5, %v4573
        %v4575 = vmul.f32 %v4570, %v4574
        %vm4576 = vweird.f32 %v4455
        %vm4577 = vweird.f32 %v4570
        %vm4578 = vmor %vm4576, %vm4577
        %v4579 = vsel %vm4578, %v4570, %v4575
        %v4580 = vrsqrt.pop %v4456
        %v4581 = vmul.f32 %v4580, %v4456
        %v4582 = vmul.f32 %v4581, %v4580
        %v4583 = vmul.f32 0.5, %v4582
        %v4584 = vsub.f32 1.5, %v4583
        %v4585 = vmul.f32 %v4580, %v4584
        %vm4586 = vweird.f32 %v4456
        %vm4587 = vweird.f32 %v4580
        %vm4588 = vmor %vm4586, %vm4587
        %v4589 = vsel %vm4588, %v4580, %v4585
        %v4590 = vrsqrt.pop %v4457
        %v4591 = vmul.f32 %v4590, %v4457
        %v4592 = vmul.f32 %v4591, %v4590
        %v4593 = vmul.f32 0.5, %v4592
        %v4594 = vsub.f32 1.5, %v4593
        %v4595 = vmul.f32 %v4590, %v4594
        %vm4596 = vweird.f32 %v4457
        %vm4597 = vweird.f32 %v4590
        %vm4598 = vmor %vm4596, %vm4597
        %v4599 = vsel %vm4598, %v4590, %v4595
        %v4600 = vrsqrt.pop %v4458
        %v4601 = vmul.f32 %v4600, %v4458
        %v4602 = vmul.f32 %v4601, %v4600
        %v4603 = vmul.f32 0.5, %v4602
        %v4604 = vsub.f32 1.5, %v4603
        %v4605 = vmul.f32 %v4600, %v4604
        %vm4606 = vweird.f32 %v4458
        %vm4607 = vweird.f32 %v4600
        %vm4608 = vmor %vm4606, %vm4607
        %v4609 = vsel %vm4608, %v4600, %v4605
        %v4610 = vrsqrt.pop %v4459
        %v4611 = vmul.f32 %v4610, %v4459
        %v4612 = vmul.f32 %v4611, %v4610
        %v4613 = vmul.f32 0.5, %v4612
        %v4614 = vsub.f32 1.5, %v4613
        %v4615 = vmul.f32 %v4610, %v4614
        %vm4616 = vweird.f32 %v4459
        %vm4617 = vweird.f32 %v4610
        %vm4618 = vmor %vm4616, %vm4617
        %v4619 = vsel %vm4618, %v4610, %v4615
        %v4620 = vmul.f32 %v4428, %v4469
        %v4621 = vmul.f32 %v4429, %v4479
        %v4622 = vmul.f32 %v4430, %v4489
        %v4623 = vmul.f32 %v4431, %v4499
        %v4624 = vmul.f32 %v4432, %v4509
        %v4625 = vmul.f32 %v4433, %v4519
        %v4626 = vmul.f32 %v4434, %v4529
        %v4627 = vmul.f32 %v4435, %v4539
        %v4628 = vmul.f32 %v4436, %v4549
        %v4629 = vmul.f32 %v4437, %v4559
        %v4630 = vmul.f32 %v4438, %v4569
        %v4631 = vmul.f32 %v4439, %v4579
        %v4632 = vmul.f32 %v4440, %v4589
        %v4633 = vmul.f32 %v4441, %v4599
        %v4634 = vmul.f32 %v4442, %v4609
        %v4635 = vmul.f32 %v4443, %v4619
        %v4636 = vperm.slane %v419, 3
        %v4637 = vmul.f32 %v4620, %v4636
        %v4638 = vmul.f32 %v4621, %v4636
        %v4639 = vmul.f32 %v4622, %v4636
        %v4640 = vmul.f32 %v4623, %v4636
        %v4641 = vmul.f32 %v4624, %v4636
        %v4642 = vmul.f32 %v4625, %v4636
        %v4643 = vmul.f32 %v4626, %v4636
        %v4644 = vmul.f32 %v4627, %v4636
        %v4645 = vmul.f32 %v4628, %v4636
        %v4646 = vmul.f32 %v4629, %v4636
        %v4647 = vmul.f32 %v4630, %v4636
        %v4648 = vmul.f32 %v4631, %v4636
        %v4649 = vmul.f32 %v4632, %v4636
        %v4650 = vmul.f32 %v4633, %v4636
        %v4651 = vmul.f32 %v4634, %v4636
        %v4652 = vmul.f32 %v4635, %v4636
        %v4653 = vperm.slane %v419, 4
        %v4654 = vadd.f32 %v4637, %v4653
        %v4655 = vadd.f32 %v4638, %v4653
        %v4656 = vadd.f32 %v4639, %v4653
        %v4657 = vadd.f32 %v4640, %v4653
        %v4658 = vadd.f32 %v4641, %v4653
        %v4659 = vadd.f32 %v4642, %v4653
        %v4660 = vadd.f32 %v4643, %v4653
        %v4661 = vadd.f32 %v4644, %v4653
        %v4662 = vadd.f32 %v4645, %v4653
        %v4663 = vadd.f32 %v4646, %v4653
        %v4664 = vadd.f32 %v4647, %v4653
        %v4665 = vadd.f32 %v4648, %v4653
        %v4666 = vadd.f32 %v4649, %v4653
        %v4667 = vadd.f32 %v4650, %v4653
        %v4668 = vadd.f32 %v4651, %v4653
        %v4669 = vadd.f32 %v4652, %v4653
        %4670 = vst [vmem:[%s356] sm:$0xff] %v4654
        %4671 = vst [vmem:[%s356 + $0x8] sm:$0xff] %v4655
        %4672 = vst [vmem:[%s356 + $0x10] sm:$0xff] %v4656
        %4673 = vst [vmem:[%s356 + $0x18] sm:$0xff] %v4657
        %4674 = vst [vmem:[%s356 + $0x20] sm:$0xff] %v4658
        %4675 = vst [vmem:[%s356 + $0x28] sm:$0xff] %v4659
        %4676 = vst [vmem:[%s356 + $0x30] sm:$0xff] %v4660
        %4677 = vst [vmem:[%s356 + $0x38] sm:$0xff] %v4661
        %4678 = vst [vmem:[%s356 + $0x40] sm:$0xff] %v4662
        %4679 = vst [vmem:[%s356 + $0x48] sm:$0xff] %v4663
        %4680 = vst [vmem:[%s356 + $0x50] sm:$0xff] %v4664
        %4681 = vst [vmem:[%s356 + $0x58] sm:$0xff] %v4665
        %4682 = vst [vmem:[%s356 + $0x60] sm:$0xff] %v4666
        %4683 = vst [vmem:[%s356 + $0x68] sm:$0xff] %v4667
        %4684 = vst [vmem:[%s356 + $0x70] sm:$0xff] %v4668
        %4685 = vst [vmem:[%s356 + $0x78] sm:$0xff] %v4669
        %s4686 = sand.u32 %s208, 1
        %s4687 = scalar_lea.sflag [#allocation5], %s4686
        %s4688 = sand.u32 %s208, 1
        %s4689 = smul.addr %s4688, 128
        %s4690 = scalar_lea.vmem [#allocation9], %s4689
        // Predicated region
        $region65: #{decoder_forward.1} parent=47 // pred_check
          %p4691 = pneg %p218
        $region66: #{decoder_forward.1} parent=47 // pred_check_branch
          %4693 = sbr.rel (%p4691) target = $region68
        $region67: #{decoder_forward.1} parent=47 // pred_region
          %s4694 = smul.u32 16, %s31
          %4696 = vsyncadd %s4687, 0
          %s4697 = smul.addr %s30, 16
          %s4698 = sadd.s32 %s4694, %s4697
          %s4699 = smul.addr %s4698, 8
          %s4700 = scalar_lea.hbm %s7, %s4699
          %s4701 = sshll.u32 %s4690, 4
          %s4702 = int_to_ptr.vmem [resolvable:$true] %s4701
          %s4703 = sshll.u32 %s4700, 4
          %s4704 = int_to_ptr.hbm [resolvable:$true] %s4703
          %4709 = dma.vmem_to_hbm [thread:$0]  %s4702, 2048, %s4704, %s4687, 128, 128, 8
        $region68: #{decoder_forward.1} parent=47 // pred_fallthru
          _
      $region48: #{decoder_forward.1} parent=5 // pred_fallthru
        _
      %p4710 = scmp.le.s32.totalorder 2, %s20
      // Predicated region
      $region69: #{decoder_forward.1} parent=5 // pred_check
        %p4711 = pneg %p4710
      $region70: #{decoder_forward.1} parent=5 // pred_check_branch
        %4713 = sbr.rel (%p4711) target = $region72
      $region71: #{decoder_forward.1} parent=5 // pred_region
        %s4714 = ssub.s32 %s20, 2
        // Predicated region
        $region73: #{decoder_forward.1} parent=71 // pred_check
          %p4715 = pneg %p224
        $region74: #{decoder_forward.1} parent=71 // pred_check_branch
          %4717 = sbr.rel (%p4715) target = $region76
        $region75: #{decoder_forward.1} parent=71 // pred_region
          %s4718 = sand.u32 %s209, 1
          %s4719 = scalar_lea.sflag [#allocation5], %s4718
          %s4720 = sand.u32 %s209, 1
          %s4721 = smul.addr %s4720, 128
          %s4722 = scalar_lea.vmem [#allocation9], %s4721
          %4724 = dma.done %s4719, 2048
        $region76: #{decoder_forward.1} parent=71 // pred_fallthru
          _
      $region72: #{decoder_forward.1} parent=5 // pred_fallthru
        _
    $region6: #{decoder_forward.1} parent=1 // loop_footer
      %s24 = sadd.s32 1, %s20
    $region7: #{decoder_forward.1} parent=1 // loop_footer_branch
      %19 = sbr.rel target = $region3
    $region8: #{decoder_forward.1} parent=1 // loop_exit
      _
    %4725 = vsyncpa [#allocation4], 1
    %s4726 = scalar_lea.sflag [#allocation4], 1
    %4727 = vsyncpa %s4726, 1
    %4728 = vsyncpa [#allocation7], 1
    %4729 = vsyncpa [#allocation5], 1
    %s4730 = scalar_lea.sflag [#allocation5], 1
    %4731 = vsyncpa %s4730, 1

</llo_original>
